<compile_context>
chip_gen: v7x
topology: tpu7x:2x2x1
jax: 0.10.0
libtpu: 0.0.40
codegen_flags: <defaults>
</compile_context>

<pallas_src>
import functools
import math

import jax
import jax.numpy as jnp
from jax import lax
from jax.experimental import pallas as pl
from jax.experimental.pallas import tpu as pltpu


_INV_SQRT2 = 0.7071067811865475
_LN_EPS = 1e-5


def _gelu_exact(x):
    # matches torch.nn.functional.gelu / nn.GELU() default (erf formulation)
    return 0.5 * x * (1.0 + lax.erf(x * _INV_SQRT2))


def _layernorm(x, gamma, beta):
    x = x.astype(jnp.float32)
    mean = jnp.mean(x, axis=-1, keepdims=True)
    var = jnp.mean(jnp.square(x - mean), axis=-1, keepdims=True)
    return ((x - mean) * lax.rsqrt(var + _LN_EPS) * gamma.astype(jnp.float32)
            + beta.astype(jnp.float32))


# ---------------------------------------------------------------------------
# Fused whole-network kernel:  grid = (num_layers,)
# ---------------------------------------------------------------------------

def _fused_model_kernel(
    # inputs -----------------------------------------------------------------
    x_ref, emb_w_ref, emb_b_ref, emb_g_ref, emb_beta_ref,
    ln1_g_ref, ln1_b_ref, wqkv_ref, bqkv_ref, wo_ref, bo_ref,
    ln2_g_ref, ln2_b_ref, w1_ref, b1_ref, w2_ref, b2_ref,
    cls_g_ref, cls_beta_ref, cls_w_ref, cls_b_ref,
    # outputs ----------------------------------------------------------------
    logits_ref, pooled_ref, attn_ref,
    # scratch ----------------------------------------------------------------
    h_acc,
    *, B, S, D, H, Dh, num_layers, matmul_dtype):
  l = pl.program_id(0)
  M = B * S
  scale = 1.0 / math.sqrt(Dh)

  def mm(a, b):
    # bf16 (or f32) operands, f32 accumulation on the MXU.
    return jnp.dot(a.astype(matmul_dtype), b.astype(matmul_dtype),
                   preferred_element_type=jnp.float32)

  # ---- embedding: Linear -> LayerNorm -> GELU (-> Dropout=id), step 0 only --
  @pl.when(l == 0)
  def _():
    h0 = mm(x_ref[...], emb_w_ref[...]) + emb_b_ref[...]
    h0 = _layernorm(h0, emb_g_ref[...], emb_beta_ref[...])
    h_acc[...] = _gelu_exact(h0)

  h = h_acc[...]                                           # (M, D) f32

  # ---- pre-norm self attention ---------------------------------------------
  hn = _layernorm(h, ln1_g_ref[0], ln1_b_ref[0])
  qkv = mm(hn, wqkv_ref[0]) + bqkv_ref[0]                  # (M, 3D), lane-dense

  # head split: (M, 3D) -> (B*H, S, Dh), batch-major over b.  Built from
  # static lane slices + a leading-axis stack only; scores / PV then run as
  # a single batched MXU einsum each and the softmax is batched over B*H.
  def split_heads(base):
    pieces = [
        qkv[:, base + hh * Dh: base + (hh + 1) * Dh].reshape(B, 1, S, Dh)
        for hh in range(H)
    ]
    return jnp.concatenate(pieces, axis=1).reshape(B * H, S, Dh)

  q = split_heads(0).astype(matmul_dtype)
  k = split_heads(D).astype(matmul_dtype)
  v = split_heads(2 * D).astype(matmul_dtype)

  s = jnp.einsum("bqd,bkd->bqk", q, k,
                 preferred_element_type=jnp.float32) * scale
  s = s - jnp.max(s, axis=-1, keepdims=True)               # stable softmax (f32)
  e = jnp.exp(s)
  p = e / jnp.sum(e, axis=-1, keepdims=True)               # (B*H, S, S) f32

  # per-layer attention-prob store written directly (no in-kernel concat);
  # wrapper reshapes (L, B*H, S, S) -> (L, B, H, S, S).
  # TODO(synk): for large S*H repack into a >=128-lane slab to avoid the
  # narrow masked store; at S=8 this write is 4 KB/layer and negligible.
  attn_ref[0] = p.astype(attn_ref.dtype)

  o = jnp.einsum("bqk,bkd->bqd", p.astype(matmul_dtype), v,
                 preferred_element_type=jnp.float32)       # (B*H, S, Dh)
  o4 = o.reshape(B, H, S, Dh)
  o_m = jnp.concatenate([o4[:, hh] for hh in range(H)],
                        axis=-1).reshape(M, D)             # merge heads
  h = h + (mm(o_m, wo_ref[0]) + bo_ref[0])                 # residual add

  # ---- pre-norm feed-forward -----------------------------------------------
  hn = _layernorm(h, ln2_g_ref[0], ln2_b_ref[0])
  f = _gelu_exact(mm(hn, w1_ref[0]) + b1_ref[0])
  h = h + (mm(f, w2_ref[0]) + b2_ref[0])                   # residual add

  h_acc[...] = h                                           # carry to next layer

  # ---- pooling + classifier, last step only --------------------------------
  @pl.when(l == num_layers - 1)
  def _():
    # pooled = h3[:, 0, :]  (token-0 / CLS pool; also the S==1 squeeze case)
    # strided sublane read of rows {0, S, 2S, ...} of the resident activation.
    pooled = h_acc[pl.ds(0, B, stride=S), :]               # (B, D)
    pooled_ref[...] = pooled.astype(pooled_ref.dtype)
    pn = _layernorm(pooled, cls_g_ref[...], cls_beta_ref[...])
    logits_ref[...] = (mm(pn, cls_w_ref[...]) + cls_b_ref[...]
                       ).astype(logits_ref.dtype)          # lane-dense (B, 128)


# ---------------------------------------------------------------------------
# Wrapper
# ---------------------------------------------------------------------------

def advanced_neural_model(params, x, *, num_heads, matmul_dtype=jnp.bfloat16):
  if x.ndim == 2:                       # x.unsqueeze(1) in the PyTorch code
    x = x[:, None, :]
  B, S, Din = x.shape
  D = params["emb_w"].shape[1]
  H = num_heads
  Dh = D // H
  L = params["wqkv"].shape[0]
  F = params["w1"].shape[2]
  C = params["cls_w"].shape[1]
  M = B * S
  C_pad = max(128, ((C + 127) // 128) * 128)   # lane-dense classifier output

  x2 = x.reshape(M, Din)

  # zero-pad the classifier to 128 output lanes -> unmasked MXU output + store
  cls_w = jnp.zeros((D, C_pad), params["cls_w"].dtype).at[:, :C].set(params["cls_w"])
  cls_b = jnp.zeros((1, C_pad), params["cls_b"].dtype).at[:, :C].set(params["cls_b"])

  kernel = functools.partial(
      _fused_model_kernel, B=B, S=S, D=D, H=H, Dh=Dh,
      num_layers=L, matmul_dtype=matmul_dtype)

  in_specs = [
      pl.BlockSpec((M, Din), lambda l: (0, 0)),              # x
      pl.BlockSpec((Din, D), lambda l: (0, 0)),              # emb_w (bf16)
      pl.BlockSpec((1, D), lambda l: (0, 0)),                # emb_b
      pl.BlockSpec((1, D), lambda l: (0, 0)),                # emb_ln_g
      pl.BlockSpec((1, D), lambda l: (0, 0)),                # emb_ln_b
      pl.BlockSpec((1, 1, D), lambda l: (l, 0, 0)),          # ln1_g
      pl.BlockSpec((1, 1, D), lambda l: (l, 0, 0)),          # ln1_b
      pl.BlockSpec((1, D, 3 * D), lambda l: (l, 0, 0)),      # wqkv (bf16, fused)
      pl.BlockSpec((1, 1, 3 * D), lambda l: (l, 0, 0)),      # bqkv
      pl.BlockSpec((1, D, D), lambda l: (l, 0, 0)),          # wo (bf16)
      pl.BlockSpec((1, 1, D), lambda l: (l, 0, 0)),          # bo
      pl.BlockSpec((1, 1, D), lambda l: (l, 0, 0)),          # ln2_g
      pl.BlockSpec((1, 1, D), lambda l: (l, 0, 0)),          # ln2_b
      pl.BlockSpec((1, D, F), lambda l: (l, 0, 0)),          # w1 (bf16)
      pl.BlockSpec((1, 1, F), lambda l: (l, 0, 0)),          # b1
      pl.BlockSpec((1, F, D), lambda l: (l, 0, 0)),          # w2 (bf16)
      pl.BlockSpec((1, 1, D), lambda l: (l, 0, 0)),          # b2
      pl.BlockSpec((1, D), lambda l: (0, 0)),                # cls_ln_g
      pl.BlockSpec((1, D), lambda l: (0, 0)),                # cls_ln_b
      pl.BlockSpec((D, C_pad), lambda l: (0, 0)),            # cls_w (bf16, padded)
      pl.BlockSpec((1, C_pad), lambda l: (0, 0)),            # cls_b (padded)
  ]
  out_specs = (
      pl.BlockSpec((B, C_pad), lambda l: (0, 0)),            # logits (padded lanes)
      pl.BlockSpec((B, D), lambda l: (0, 0)),                # pooled
      pl.BlockSpec((1, B * H, S, S), lambda l: (l, 0, 0, 0)),  # attn probs
  )
  out_shape = (
      jax.ShapeDtypeStruct((B, C_pad), x.dtype),
      jax.ShapeDtypeStruct((B, D), x.dtype),
      jax.ShapeDtypeStruct((L, B * H, S, S), x.dtype),
  )

  logits_p, pooled, attn_slab = pl.pallas_call(
      kernel,
      out_shape=out_shape,
      grid=(L,),
      in_specs=in_specs,
      out_specs=out_specs,
      scratch_shapes=[pltpu.VMEM((M, D), jnp.float32)],      # resident activation h
      compiler_params=pltpu.CompilerParams(
          dimension_semantics=("arbitrary",),                # layers are sequential
          vmem_limit_bytes=32 * 1024 * 1024),                # sized for v7x (64 MiB)
  )(
      x2,
      params["emb_w"], params["emb_b"], params["emb_ln_g"], params["emb_ln_b"],
      params["ln1_g"], params["ln1_b"], params["wqkv"], params["bqkv"],
      params["wo"], params["bo"], params["ln2_g"], params["ln2_b"],
      params["w1"], params["b1"], params["w2"], params["b2"],
      params["cls_ln_g"], params["cls_ln_b"], cls_w, cls_b,
  )

  logits = logits_p[:, :C]
  attn = attn_slab.reshape(L, B, H, S, S)     # (b, h) ordering matches torch
  attentions = [attn[i] for i in range(L)]
  return logits, pooled, attentions


# ---------------------------------------------------------------------------
# Parameter init (deterministic, synthetic) — per-layer weights stacked;
# weight matrices stored bf16 in HBM, biases / LN params f32.
# ---------------------------------------------------------------------------

def init_params(key, input_dim, num_classes, embed_dim, num_layers, num_heads,
                ff_dim, weight_dtype=jnp.bfloat16):
  del num_heads  # head count only affects the in-kernel split, not the weights
  D, F, L = embed_dim, ff_dim, num_layers

  def dense(k, fan_in, fan_out):
    w = jax.random.normal(k, (fan_in, fan_out), jnp.float32) * 0.02
    b = jnp.zeros((fan_out,), jnp.float32)
    return w, b

  keys = jax.random.split(key, 2 + L)
  params = {}
  w, b = dense(keys[0], input_dim, D)
  params["emb_w"] = w.astype(weight_dtype)
  params["emb_b"] = b.reshape(1, D)
  params["emb_ln_g"] = jnp.ones((1, D), jnp.float32)
  params["emb_ln_b"] = jnp.zeros((1, D), jnp.float32)

  wqkv, bqkv, wo, bo = [], [], [], []
  w1, b1, w2, b2 = [], [], [], []
  for li in range(L):
    lk = jax.random.split(keys[2 + li], 6)
    wq, bq_ = dense(lk[0], D, D)
    wk, bk_ = dense(lk[1], D, D)
    wv, bv_ = dense(lk[2], D, D)
    wo_, bo_ = dense(lk[3], D, D)
    w1_, b1_ = dense(lk[4], D, F)
    w2_, b2_ = dense(lk[5], F, D)
    wqkv.append(jnp.concatenate([wq, wk, wv], axis=1))         # (D, 3D)
    bqkv.append(jnp.concatenate([bq_, bk_, bv_]).reshape(1, 3 * D))
    wo.append(wo_); bo.append(bo_.reshape(1, D))
    w1.append(w1_); b1.append(b1_.reshape(1, F))
    w2.append(w2_); b2.append(b2_.reshape(1, D))

  params["ln1_g"] = jnp.ones((L, 1, D), jnp.float32)
  params["ln1_b"] = jnp.zeros((L, 1, D), jnp.float32)
  params["ln2_g"] = jnp.ones((L, 1, D), jnp.float32)
  params["ln2_b"] = jnp.zeros((L, 1, D), jnp.float32)
  params["wqkv"] = jnp.stack(wqkv).astype(weight_dtype)
  params["bqkv"] = jnp.stack(bqkv)
  params["wo"] = jnp.stack(wo).astype(weight_dtype)
  params["bo"] = jnp.stack(bo)
  params["w1"] = jnp.stack(w1).astype(weight_dtype)
  params["b1"] = jnp.stack(b1)
  params["w2"] = jnp.stack(w2).astype(weight_dtype)
  params["b2"] = jnp.stack(b2)

  params["cls_ln_g"] = jnp.ones((1, D), jnp.float32)
  params["cls_ln_b"] = jnp.zeros((1, D), jnp.float32)
  cw, cb = dense(keys[1], D, num_classes)
  params["cls_w"] = cw.astype(weight_dtype)
  params["cls_b"] = cb.reshape(1, num_classes)
  return params


if __name__ == "__main__":
  B, S, input_dim = 2, 8, 32
  num_classes = 10
  embed_dim, num_layers, num_heads, ff_dim = 128, 3, 8, 512

  key = jax.random.PRNGKey(0)
  pkey, xkey = jax.random.split(key)
  params = init_params(pkey, input_dim, num_classes, embed_dim,
                       num_layers, num_heads, ff_dim)
  x = jax.random.normal(xkey, (B, S, input_dim), dtype=jnp.float32)

  fwd = jax.jit(functools.partial(advanced_neural_model, num_heads=num_heads))
  logits, pooled, attns = fwd(params, x)
  jax.block_until_ready((logits, pooled, attns))

  assert logits.shape == (B, num_classes)
  assert pooled.shape == (B, embed_dim)
  assert len(attns) == num_layers and attns[0].shape == (B, num_heads, S, S)
  # softmax rows must sum to 1 (attention probs are computed/stored in f32)
  assert bool(jnp.allclose(jnp.sum(attns[0], axis=-1), 1.0, atol=1e-3))
  print("KERNEL_OK")
</pallas_src>

<mosaic_0001>
module attributes {stable_mosaic.version = 11 : i64} {
  func.func @_fused_model_kernel(%arg0: i32, %arg1: memref<16x32xf32, #tpu.memory_space<vmem>>, %arg2: memref<32x128xbf16, #tpu.memory_space<vmem>>, %arg3: memref<1x128xf32, #tpu.memory_space<vmem>>, %arg4: memref<1x128xf32, #tpu.memory_space<vmem>>, %arg5: memref<1x128xf32, #tpu.memory_space<vmem>>, %arg6: memref<1x1x128xf32, #tpu.memory_space<vmem>>, %arg7: memref<1x1x128xf32, #tpu.memory_space<vmem>>, %arg8: memref<1x128x384xbf16, #tpu.memory_space<vmem>>, %arg9: memref<1x1x384xf32, #tpu.memory_space<vmem>>, %arg10: memref<1x128x128xbf16, #tpu.memory_space<vmem>>, %arg11: memref<1x1x128xf32, #tpu.memory_space<vmem>>, %arg12: memref<1x1x128xf32, #tpu.memory_space<vmem>>, %arg13: memref<1x1x128xf32, #tpu.memory_space<vmem>>, %arg14: memref<1x128x512xbf16, #tpu.memory_space<vmem>>, %arg15: memref<1x1x512xf32, #tpu.memory_space<vmem>>, %arg16: memref<1x512x128xbf16, #tpu.memory_space<vmem>>, %arg17: memref<1x1x128xf32, #tpu.memory_space<vmem>>, %arg18: memref<1x128xf32, #tpu.memory_space<vmem>>, %arg19: memref<1x128xf32, #tpu.memory_space<vmem>>, %arg20: memref<128x128xbf16, #tpu.memory_space<vmem>>, %arg21: memref<1x128xf32, #tpu.memory_space<vmem>>, %arg22: memref<2x128xf32, #tpu.memory_space<vmem>>, %arg23: memref<2x128xf32, #tpu.memory_space<vmem>>, %arg24: memref<1x16x8x8xf32, #tpu.memory_space<vmem>>, %arg25: memref<16x128xf32, #tpu.memory_space<vmem>>) attributes {dimension_semantics = [#tpu.dimension_semantics<arbitrary>], iteration_bounds = array<i64: 3>, scalar_prefetch = 0 : i64, scratch_operands = 1 : i64, tpu.core_type = #tpu.core_type<tc>, window_params = [{pipeline_mode = #tpu.pipeline_mode<synchronous>, transform_indices = @transform_0, window_bounds = array<i64: 16, 32>}, {pipeline_mode = #tpu.pipeline_mode<synchronous>, transform_indices = @transform_1, window_bounds = array<i64: 32, 128>}, {pipeline_mode = #tpu.pipeline_mode<synchronous>, transform_indices = @transform_2, window_bounds = array<i64: 1, 128>}, {pipeline_mode = #tpu.pipeline_mode<synchronous>, transform_indices = @transform_3, window_bounds = array<i64: 1, 128>}, {pipeline_mode = #tpu.pipeline_mode<synchronous>, transform_indices = @transform_4, window_bounds = array<i64: 1, 128>}, {transform_indices = @transform_5, window_bounds = array<i64: 1, 1, 128>}, {transform_indices = @transform_6, window_bounds = array<i64: 1, 1, 128>}, {transform_indices = @transform_7, window_bounds = array<i64: 1, 128, 384>}, {transform_indices = @transform_8, window_bounds = array<i64: 1, 1, 384>}, {transform_indices = @transform_9, window_bounds = array<i64: 1, 128, 128>}, {transform_indices = @transform_10, window_bounds = array<i64: 1, 1, 128>}, {transform_indices = @transform_11, window_bounds = array<i64: 1, 1, 128>}, {transform_indices = @transform_12, window_bounds = array<i64: 1, 1, 128>}, {transform_indices = @transform_13, window_bounds = array<i64: 1, 128, 512>}, {transform_indices = @transform_14, window_bounds = array<i64: 1, 1, 512>}, {transform_indices = @transform_15, window_bounds = array<i64: 1, 512, 128>}, {transform_indices = @transform_16, window_bounds = array<i64: 1, 1, 128>}, {pipeline_mode = #tpu.pipeline_mode<synchronous>, transform_indices = @transform_17, window_bounds = array<i64: 1, 128>}, {pipeline_mode = #tpu.pipeline_mode<synchronous>, transform_indices = @transform_18, window_bounds = array<i64: 1, 128>}, {pipeline_mode = #tpu.pipeline_mode<synchronous>, transform_indices = @transform_19, window_bounds = array<i64: 128, 128>}, {pipeline_mode = #tpu.pipeline_mode<synchronous>, transform_indices = @transform_20, window_bounds = array<i64: 1, 128>}, {pipeline_mode = #tpu.pipeline_mode<synchronous>, transform_indices = @transform_21, window_bounds = array<i64: 2, 128>}, {pipeline_mode = #tpu.pipeline_mode<synchronous>, transform_indices = @transform_22, window_bounds = array<i64: 2, 128>}, {transform_indices = @transform_23, window_bounds = array<i64: 1, 16, 8, 8>}]} {
    %c0_i32 = arith.constant 0 : i32
    %0 = arith.cmpi eq, %arg0, %c0_i32 : i32
    %1 = arith.extui %0 : i1 to i32
    %c0_i32_0 = arith.constant 0 : i32
    %2 = arith.cmpi ne, %1, %c0_i32_0 : i32
    scf.if %2 {
      %c0_66 = arith.constant 0 : index
      %c0_67 = arith.constant 0 : index
      %195 = vector.load %arg1[%c0_66, %c0_67] : memref<16x32xf32, #tpu.memory_space<vmem>>, vector<16x32xf32>
      %c0_68 = arith.constant 0 : index
      %c0_69 = arith.constant 0 : index
      %196 = vector.load %arg2[%c0_68, %c0_69] : memref<32x128xbf16, #tpu.memory_space<vmem>>, vector<32x128xbf16>
      %197 = arith.truncf %195 : vector<16x32xf32> to vector<16x32xbf16>
      %cst_70 = arith.constant dense<0.000000e+00> : vector<16x128xf32>
      %198 = tpu.matmul %197, %196, %cst_70 {dimension_numbers = #tpu.dot_dimension_numbers<[1], [0], [0], [1], [0, 0, 1, 1], [], []>} : vector<16x32xbf16>, vector<32x128xbf16>, vector<16x128xf32> -> vector<16x128xf32>
      %c0_71 = arith.constant 0 : index
      %c0_72 = arith.constant 0 : index
      %199 = vector.load %arg3[%c0_71, %c0_72] : memref<1x128xf32, #tpu.memory_space<vmem>>, vector<1x128xf32>
      %200 = vector.broadcast %199 : vector<1x128xf32> to vector<16x128xf32>
      %201 = arith.addf %198, %200 : vector<16x128xf32>
      %c0_73 = arith.constant 0 : index
      %c0_74 = arith.constant 0 : index
      %202 = vector.load %arg4[%c0_73, %c0_74] : memref<1x128xf32, #tpu.memory_space<vmem>>, vector<1x128xf32>
      %c0_75 = arith.constant 0 : index
      %c0_76 = arith.constant 0 : index
      %203 = vector.load %arg5[%c0_75, %c0_76] : memref<1x128xf32, #tpu.memory_space<vmem>>, vector<1x128xf32>
      %cst_77 = arith.constant dense<0.000000e+00> : vector<16xf32>
      %204 = vector.multi_reduction <add>, %201, %cst_77 [1] : vector<16x128xf32> to vector<16xf32>
      %205 = vector.shape_cast %204 : vector<16xf32> to vector<16x1xf32>
      %cst_78 = arith.constant 1.280000e+02 : f32
      %206 = vector.broadcast %cst_78 : f32 to vector<16x1xf32>
      %207 = arith.divf %205, %206 : vector<16x1xf32>
      %208 = vector.broadcast %207 : vector<16x1xf32> to vector<16x128xf32>
      %209 = arith.subf %201, %208 : vector<16x128xf32>
      %210 = arith.mulf %209, %209 : vector<16x128xf32>
      %cst_79 = arith.constant dense<0.000000e+00> : vector<16xf32>
      %211 = vector.multi_reduction <add>, %210, %cst_79 [1] : vector<16x128xf32> to vector<16xf32>
      %212 = vector.shape_cast %211 : vector<16xf32> to vector<16x1xf32>
      %cst_80 = arith.constant 1.280000e+02 : f32
      %213 = vector.broadcast %cst_80 : f32 to vector<16x1xf32>
      %214 = arith.divf %212, %213 : vector<16x1xf32>
      %215 = vector.broadcast %207 : vector<16x1xf32> to vector<16x128xf32>
      %216 = arith.subf %201, %215 : vector<16x128xf32>
      %cst_81 = arith.constant 9.99999974E-6 : f32
      %217 = vector.broadcast %cst_81 : f32 to vector<16x1xf32>
      %218 = arith.addf %214, %217 : vector<16x1xf32>
      %219 = math.rsqrt %218 : vector<16x1xf32>
      %220 = vector.broadcast %219 : vector<16x1xf32> to vector<16x128xf32>
      %221 = arith.mulf %216, %220 : vector<16x128xf32>
      %222 = vector.broadcast %202 : vector<1x128xf32> to vector<16x128xf32>
      %223 = arith.mulf %221, %222 : vector<16x128xf32>
      %224 = vector.broadcast %203 : vector<1x128xf32> to vector<16x128xf32>
      %225 = arith.addf %223, %224 : vector<16x128xf32>
      %cst_82 = arith.constant 5.000000e-01 : f32
      %226 = vector.broadcast %cst_82 : f32 to vector<16x128xf32>
      %227 = arith.mulf %226, %225 : vector<16x128xf32>
      %cst_83 = arith.constant 0.707106769 : f32
      %228 = vector.broadcast %cst_83 : f32 to vector<16x128xf32>
      %229 = arith.mulf %225, %228 : vector<16x128xf32>
      %230 = math.erf %229 : vector<16x128xf32>
      %cst_84 = arith.constant 1.000000e+00 : f32
      %231 = vector.broadcast %cst_84 : f32 to vector<16x128xf32>
      %232 = arith.addf %231, %230 : vector<16x128xf32>
      %233 = arith.mulf %227, %232 : vector<16x128xf32>
      %c0_85 = arith.constant 0 : index
      %c0_86 = arith.constant 0 : index
      %234 = vector.load %arg25[%c0_85, %c0_86] : memref<16x128xf32, #tpu.memory_space<vmem>>, vector<16x128xf32>
      tpu.vector_store %arg25[%c0_85, %c0_86], %233 {strides = array<i32>} : memref<16x128xf32, #tpu.memory_space<vmem>>, vector<16x128xf32>,
    } else {
    }
    %c0 = arith.constant 0 : index
    %c0_1 = arith.constant 0 : index
    %3 = vector.load %arg25[%c0, %c0_1] : memref<16x128xf32, #tpu.memory_space<vmem>>, vector<16x128xf32>
    %c0_2 = arith.constant 0 : index
    %c0_3 = arith.constant 0 : index
    %c0_4 = arith.constant 0 : index
    %4 = vector.load %arg6[%c0_2, %c0_3, %c0_4] : memref<1x1x128xf32, #tpu.memory_space<vmem>>, vector<1x1x128xf32>
    %5 = vector.shape_cast %4 : vector<1x1x128xf32> to vector<1x128xf32>
    %c0_5 = arith.constant 0 : index
    %c0_6 = arith.constant 0 : index
    %c0_7 = arith.constant 0 : index
    %6 = vector.load %arg7[%c0_5, %c0_6, %c0_7] : memref<1x1x128xf32, #tpu.memory_space<vmem>>, vector<1x1x128xf32>
    %7 = vector.shape_cast %6 : vector<1x1x128xf32> to vector<1x128xf32>
    %cst = arith.constant dense<0.000000e+00> : vector<16xf32>
    %8 = vector.multi_reduction <add>, %3, %cst [1] : vector<16x128xf32> to vector<16xf32>
    %9 = vector.shape_cast %8 : vector<16xf32> to vector<16x1xf32>
    %cst_8 = arith.constant 1.280000e+02 : f32
    %10 = vector.broadcast %cst_8 : f32 to vector<16x1xf32>
    %11 = arith.divf %9, %10 : vector<16x1xf32>
    %12 = vector.broadcast %11 : vector<16x1xf32> to vector<16x128xf32>
    %13 = arith.subf %3, %12 : vector<16x128xf32>
    %14 = arith.mulf %13, %13 : vector<16x128xf32>
    %cst_9 = arith.constant dense<0.000000e+00> : vector<16xf32>
    %15 = vector.multi_reduction <add>, %14, %cst_9 [1] : vector<16x128xf32> to vector<16xf32>
    %16 = vector.shape_cast %15 : vector<16xf32> to vector<16x1xf32>
    %cst_10 = arith.constant 1.280000e+02 : f32
    %17 = vector.broadcast %cst_10 : f32 to vector<16x1xf32>
    %18 = arith.divf %16, %17 : vector<16x1xf32>
    %19 = vector.broadcast %11 : vector<16x1xf32> to vector<16x128xf32>
    %20 = arith.subf %3, %19 : vector<16x128xf32>
    %cst_11 = arith.constant 9.99999974E-6 : f32
    %21 = vector.broadcast %cst_11 : f32 to vector<16x1xf32>
    %22 = arith.addf %18, %21 : vector<16x1xf32>
    %23 = math.rsqrt %22 : vector<16x1xf32>
    %24 = vector.broadcast %23 : vector<16x1xf32> to vector<16x128xf32>
    %25 = arith.mulf %20, %24 : vector<16x128xf32>
    %26 = vector.broadcast %5 : vector<1x128xf32> to vector<16x128xf32>
    %27 = arith.mulf %25, %26 : vector<16x128xf32>
    %28 = vector.broadcast %7 : vector<1x128xf32> to vector<16x128xf32>
    %29 = arith.addf %27, %28 : vector<16x128xf32>
    %c0_12 = arith.constant 0 : index
    %c0_13 = arith.constant 0 : index
    %c0_14 = arith.constant 0 : index
    %30 = vector.load %arg8[%c0_12, %c0_13, %c0_14] : memref<1x128x384xbf16, #tpu.memory_space<vmem>>, vector<1x128x384xbf16>
    %31 = vector.shape_cast %30 : vector<1x128x384xbf16> to vector<128x384xbf16>
    %32 = arith.truncf %29 : vector<16x128xf32> to vector<16x128xbf16>
    %cst_15 = arith.constant dense<0.000000e+00> : vector<16x384xf32>
    %33 = tpu.matmul %32, %31, %cst_15 {dimension_numbers = #tpu.dot_dimension_numbers<[1], [0], [0], [1], [0, 0, 1, 1], [], []>} : vector<16x128xbf16>, vector<128x384xbf16>, vector<16x384xf32> -> vector<16x384xf32>
    %c0_16 = arith.constant 0 : index
    %c0_17 = arith.constant 0 : index
    %c0_18 = arith.constant 0 : index
    %34 = vector.load %arg9[%c0_16, %c0_17, %c0_18] : memref<1x1x384xf32, #tpu.memory_space<vmem>>, vector<1x1x384xf32>
    %35 = vector.shape_cast %34 : vector<1x1x384xf32> to vector<1x384xf32>
    %36 = vector.broadcast %35 : vector<1x384xf32> to vector<16x384xf32>
    %37 = arith.addf %33, %36 : vector<16x384xf32>
    %38 = vector.extract_strided_slice %37 {offsets = [0, 0], sizes = [16, 16], strides = [1, 1]} : vector<16x384xf32> to vector<16x16xf32>
    %39 = vector.shape_cast %38 : vector<16x16xf32> to vector<2x1x8x16xf32>
    %40 = vector.extract_strided_slice %37 {offsets = [0, 16], sizes = [16, 16], strides = [1, 1]} : vector<16x384xf32> to vector<16x16xf32>
    %41 = vector.shape_cast %40 : vector<16x16xf32> to vector<2x1x8x16xf32>
    %42 = vector.extract_strided_slice %37 {offsets = [0, 32], sizes = [16, 16], strides = [1, 1]} : vector<16x384xf32> to vector<16x16xf32>
    %43 = vector.shape_cast %42 : vector<16x16xf32> to vector<2x1x8x16xf32>
    %44 = vector.extract_strided_slice %37 {offsets = [0, 48], sizes = [16, 16], strides = [1, 1]} : vector<16x384xf32> to vector<16x16xf32>
    %45 = vector.shape_cast %44 : vector<16x16xf32> to vector<2x1x8x16xf32>
    %46 = vector.extract_strided_slice %37 {offsets = [0, 64], sizes = [16, 16], strides = [1, 1]} : vector<16x384xf32> to vector<16x16xf32>
    %47 = vector.shape_cast %46 : vector<16x16xf32> to vector<2x1x8x16xf32>
    %48 = vector.extract_strided_slice %37 {offsets = [0, 80], sizes = [16, 16], strides = [1, 1]} : vector<16x384xf32> to vector<16x16xf32>
    %49 = vector.shape_cast %48 : vector<16x16xf32> to vector<2x1x8x16xf32>
    %50 = vector.extract_strided_slice %37 {offsets = [0, 96], sizes = [16, 16], strides = [1, 1]} : vector<16x384xf32> to vector<16x16xf32>
    %51 = vector.shape_cast %50 : vector<16x16xf32> to vector<2x1x8x16xf32>
    %52 = vector.extract_strided_slice %37 {offsets = [0, 112], sizes = [16, 16], strides = [1, 1]} : vector<16x384xf32> to vector<16x16xf32>
    %53 = vector.shape_cast %52 : vector<16x16xf32> to vector<2x1x8x16xf32>
    %54 = tpu.concatenate %39, %41, %43, %45, %47, %49, %51, %53 in 1 : vector<2x1x8x16xf32>, vector<2x1x8x16xf32>, vector<2x1x8x16xf32>, vector<2x1x8x16xf32>, vector<2x1x8x16xf32>, vector<2x1x8x16xf32>, vector<2x1x8x16xf32>, vector<2x1x8x16xf32> -> vector<2x8x8x16xf32>
    %55 = vector.shape_cast %54 : vector<2x8x8x16xf32> to vector<16x8x16xf32>
    %56 = arith.truncf %55 : vector<16x8x16xf32> to vector<16x8x16xbf16>
    %57 = vector.extract_strided_slice %37 {offsets = [0, 128], sizes = [16, 16], strides = [1, 1]} : vector<16x384xf32> to vector<16x16xf32>
    %58 = vector.shape_cast %57 : vector<16x16xf32> to vector<2x1x8x16xf32>
    %59 = vector.extract_strided_slice %37 {offsets = [0, 144], sizes = [16, 16], strides = [1, 1]} : vector<16x384xf32> to vector<16x16xf32>
    %60 = vector.shape_cast %59 : vector<16x16xf32> to vector<2x1x8x16xf32>
    %61 = vector.extract_strided_slice %37 {offsets = [0, 160], sizes = [16, 16], strides = [1, 1]} : vector<16x384xf32> to vector<16x16xf32>
    %62 = vector.shape_cast %61 : vector<16x16xf32> to vector<2x1x8x16xf32>
    %63 = vector.extract_strided_slice %37 {offsets = [0, 176], sizes = [16, 16], strides = [1, 1]} : vector<16x384xf32> to vector<16x16xf32>
    %64 = vector.shape_cast %63 : vector<16x16xf32> to vector<2x1x8x16xf32>
    %65 = vector.extract_strided_slice %37 {offsets = [0, 192], sizes = [16, 16], strides = [1, 1]} : vector<16x384xf32> to vector<16x16xf32>
    %66 = vector.shape_cast %65 : vector<16x16xf32> to vector<2x1x8x16xf32>
    %67 = vector.extract_strided_slice %37 {offsets = [0, 208], sizes = [16, 16], strides = [1, 1]} : vector<16x384xf32> to vector<16x16xf32>
    %68 = vector.shape_cast %67 : vector<16x16xf32> to vector<2x1x8x16xf32>
    %69 = vector.extract_strided_slice %37 {offsets = [0, 224], sizes = [16, 16], strides = [1, 1]} : vector<16x384xf32> to vector<16x16xf32>
    %70 = vector.shape_cast %69 : vector<16x16xf32> to vector<2x1x8x16xf32>
    %71 = vector.extract_strided_slice %37 {offsets = [0, 240], sizes = [16, 16], strides = [1, 1]} : vector<16x384xf32> to vector<16x16xf32>
    %72 = vector.shape_cast %71 : vector<16x16xf32> to vector<2x1x8x16xf32>
    %73 = tpu.concatenate %58, %60, %62, %64, %66, %68, %70, %72 in 1 : vector<2x1x8x16xf32>, vector<2x1x8x16xf32>, vector<2x1x8x16xf32>, vector<2x1x8x16xf32>, vector<2x1x8x16xf32>, vector<2x1x8x16xf32>, vector<2x1x8x16xf32>, vector<2x1x8x16xf32> -> vector<2x8x8x16xf32>
    %74 = vector.shape_cast %73 : vector<2x8x8x16xf32> to vector<16x8x16xf32>
    %75 = arith.truncf %74 : vector<16x8x16xf32> to vector<16x8x16xbf16>
    %76 = vector.extract_strided_slice %37 {offsets = [0, 256], sizes = [16, 16], strides = [1, 1]} : vector<16x384xf32> to vector<16x16xf32>
    %77 = vector.shape_cast %76 : vector<16x16xf32> to vector<2x1x8x16xf32>
    %78 = vector.extract_strided_slice %37 {offsets = [0, 272], sizes = [16, 16], strides = [1, 1]} : vector<16x384xf32> to vector<16x16xf32>
    %79 = vector.shape_cast %78 : vector<16x16xf32> to vector<2x1x8x16xf32>
    %80 = vector.extract_strided_slice %37 {offsets = [0, 288], sizes = [16, 16], strides = [1, 1]} : vector<16x384xf32> to vector<16x16xf32>
    %81 = vector.shape_cast %80 : vector<16x16xf32> to vector<2x1x8x16xf32>
    %82 = vector.extract_strided_slice %37 {offsets = [0, 304], sizes = [16, 16], strides = [1, 1]} : vector<16x384xf32> to vector<16x16xf32>
    %83 = vector.shape_cast %82 : vector<16x16xf32> to vector<2x1x8x16xf32>
    %84 = vector.extract_strided_slice %37 {offsets = [0, 320], sizes = [16, 16], strides = [1, 1]} : vector<16x384xf32> to vector<16x16xf32>
    %85 = vector.shape_cast %84 : vector<16x16xf32> to vector<2x1x8x16xf32>
    %86 = vector.extract_strided_slice %37 {offsets = [0, 336], sizes = [16, 16], strides = [1, 1]} : vector<16x384xf32> to vector<16x16xf32>
    %87 = vector.shape_cast %86 : vector<16x16xf32> to vector<2x1x8x16xf32>
    %88 = vector.extract_strided_slice %37 {offsets = [0, 352], sizes = [16, 16], strides = [1, 1]} : vector<16x384xf32> to vector<16x16xf32>
    %89 = vector.shape_cast %88 : vector<16x16xf32> to vector<2x1x8x16xf32>
    %90 = vector.extract_strided_slice %37 {offsets = [0, 368], sizes = [16, 16], strides = [1, 1]} : vector<16x384xf32> to vector<16x16xf32>
    %91 = vector.shape_cast %90 : vector<16x16xf32> to vector<2x1x8x16xf32>
    %92 = tpu.concatenate %77, %79, %81, %83, %85, %87, %89, %91 in 1 : vector<2x1x8x16xf32>, vector<2x1x8x16xf32>, vector<2x1x8x16xf32>, vector<2x1x8x16xf32>, vector<2x1x8x16xf32>, vector<2x1x8x16xf32>, vector<2x1x8x16xf32>, vector<2x1x8x16xf32> -> vector<2x8x8x16xf32>
    %93 = vector.shape_cast %92 : vector<2x8x8x16xf32> to vector<16x8x16xf32>
    %94 = arith.truncf %93 : vector<16x8x16xf32> to vector<16x8x16xbf16>
    "tpu.trace_start"() <{level = 10 : i32, message = "bqd,bkd->bqk"}> : () -> ()
    %cst_19 = arith.constant dense<0.000000e+00> : vector<16x8x8xf32>
    %95 = tpu.matmul %56, %75, %cst_19 {dimension_numbers = #tpu.dot_dimension_numbers<[2], [2], [1], [1], [0, 0, 0, 1, 1, 1], [0], [0]>} : vector<16x8x16xbf16>, vector<16x8x16xbf16>, vector<16x8x8xf32> -> vector<16x8x8xf32>
    "tpu.trace_stop"() : () -> ()
    %cst_20 = arith.constant 2.500000e-01 : f32
    %96 = vector.broadcast %cst_20 : f32 to vector<16x8x8xf32>
    %97 = arith.mulf %95, %96 : vector<16x8x8xf32>
    %cst_21 = arith.constant dense<0xFF800000> : vector<16x8xf32>
    %98 = vector.multi_reduction <maximumf>, %97, %cst_21 [2] : vector<16x8x8xf32> to vector<16x8xf32>
    %99 = vector.shape_cast %98 : vector<16x8xf32> to vector<16x8x1xf32>
    %100 = vector.broadcast %99 : vector<16x8x1xf32> to vector<16x8x8xf32>
    %101 = arith.subf %97, %100 : vector<16x8x8xf32>
    %102 = math.exp %101 : vector<16x8x8xf32>
    %cst_22 = arith.constant dense<0.000000e+00> : vector<16x8xf32>
    %103 = vector.multi_reduction <add>, %102, %cst_22 [2] : vector<16x8x8xf32> to vector<16x8xf32>
    %104 = vector.shape_cast %103 : vector<16x8xf32> to vector<16x8x1xf32>
    %105 = vector.broadcast %104 : vector<16x8x1xf32> to vector<16x8x8xf32>
    %106 = arith.divf %102, %105 : vector<16x8x8xf32>
    %c0_23 = arith.constant 0 : index
    %c0_24 = arith.constant 0 : index
    %c0_25 = arith.constant 0 : index
    %c0_26 = arith.constant 0 : index
    %107 = vector.load %arg24[%c0_23, %c0_24, %c0_25, %c0_26] : memref<1x16x8x8xf32, #tpu.memory_space<vmem>>, vector<1x16x8x8xf32>
    %108 = vector.shape_cast %107 : vector<1x16x8x8xf32> to vector<16x8x8xf32>
    %109 = vector.shape_cast %106 : vector<16x8x8xf32> to vector<1x16x8x8xf32>
    tpu.vector_store %arg24[%c0_23, %c0_24, %c0_25, %c0_26], %109 {strides = array<i32>} : memref<1x16x8x8xf32, #tpu.memory_space<vmem>>, vector<1x16x8x8xf32>,
    %110 = arith.truncf %106 : vector<16x8x8xf32> to vector<16x8x8xbf16>
    "tpu.trace_start"() <{level = 10 : i32, message = "bqk,bkd->bqd"}> : () -> ()
    %cst_27 = arith.constant dense<0.000000e+00> : vector<16x8x16xf32>
    %111 = tpu.matmul %110, %94, %cst_27 {dimension_numbers = #tpu.dot_dimension_numbers<[2], [1], [1], [2], [0, 0, 0, 1, 1, 2], [0], [0]>} : vector<16x8x8xbf16>, vector<16x8x16xbf16>, vector<16x8x16xf32> -> vector<16x8x16xf32>
    "tpu.trace_stop"() : () -> ()
    %112 = vector.shape_cast %111 : vector<16x8x16xf32> to vector<2x8x8x16xf32>
    %113 = vector.extract_strided_slice %112 {offsets = [0, 0, 0, 0], sizes = [2, 1, 8, 16], strides = [1, 1, 1, 1]} : vector<2x8x8x16xf32> to vector<2x1x8x16xf32>
    %114 = vector.shape_cast %113 : vector<2x1x8x16xf32> to vector<2x8x16xf32>
    %115 = vector.extract_strided_slice %112 {offsets = [0, 1, 0, 0], sizes = [2, 1, 8, 16], strides = [1, 1, 1, 1]} : vector<2x8x8x16xf32> to vector<2x1x8x16xf32>
    %116 = vector.shape_cast %115 : vector<2x1x8x16xf32> to vector<2x8x16xf32>
    %117 = vector.extract_strided_slice %112 {offsets = [0, 2, 0, 0], sizes = [2, 1, 8, 16], strides = [1, 1, 1, 1]} : vector<2x8x8x16xf32> to vector<2x1x8x16xf32>
    %118 = vector.shape_cast %117 : vector<2x1x8x16xf32> to vector<2x8x16xf32>
    %119 = vector.extract_strided_slice %112 {offsets = [0, 3, 0, 0], sizes = [2, 1, 8, 16], strides = [1, 1, 1, 1]} : vector<2x8x8x16xf32> to vector<2x1x8x16xf32>
    %120 = vector.shape_cast %119 : vector<2x1x8x16xf32> to vector<2x8x16xf32>
    %121 = vector.extract_strided_slice %112 {offsets = [0, 4, 0, 0], sizes = [2, 1, 8, 16], strides = [1, 1, 1, 1]} : vector<2x8x8x16xf32> to vector<2x1x8x16xf32>
    %122 = vector.shape_cast %121 : vector<2x1x8x16xf32> to vector<2x8x16xf32>
    %123 = vector.extract_strided_slice %112 {offsets = [0, 5, 0, 0], sizes = [2, 1, 8, 16], strides = [1, 1, 1, 1]} : vector<2x8x8x16xf32> to vector<2x1x8x16xf32>
    %124 = vector.shape_cast %123 : vector<2x1x8x16xf32> to vector<2x8x16xf32>
    %125 = vector.extract_strided_slice %112 {offsets = [0, 6, 0, 0], sizes = [2, 1, 8, 16], strides = [1, 1, 1, 1]} : vector<2x8x8x16xf32> to vector<2x1x8x16xf32>
    %126 = vector.shape_cast %125 : vector<2x1x8x16xf32> to vector<2x8x16xf32>
    %127 = vector.extract_strided_slice %112 {offsets = [0, 7, 0, 0], sizes = [2, 1, 8, 16], strides = [1, 1, 1, 1]} : vector<2x8x8x16xf32> to vector<2x1x8x16xf32>
    %128 = vector.shape_cast %127 : vector<2x1x8x16xf32> to vector<2x8x16xf32>
    %129 = tpu.concatenate %114, %116, %118, %120, %122, %124, %126, %128 in 2 : vector<2x8x16xf32>, vector<2x8x16xf32>, vector<2x8x16xf32>, vector<2x8x16xf32>, vector<2x8x16xf32>, vector<2x8x16xf32>, vector<2x8x16xf32>, vector<2x8x16xf32> -> vector<2x8x128xf32>
    %130 = vector.shape_cast %129 : vector<2x8x128xf32> to vector<16x128xf32>
    %c0_28 = arith.constant 0 : index
    %c0_29 = arith.constant 0 : index
    %c0_30 = arith.constant 0 : index
    %131 = vector.load %arg10[%c0_28, %c0_29, %c0_30] : memref<1x128x128xbf16, #tpu.memory_space<vmem>>, vector<1x128x128xbf16>
    %132 = vector.shape_cast %131 : vector<1x128x128xbf16> to vector<128x128xbf16>
    %133 = arith.truncf %130 : vector<16x128xf32> to vector<16x128xbf16>
    %cst_31 = arith.constant dense<0.000000e+00> : vector<16x128xf32>
    %134 = tpu.matmul %133, %132, %cst_31 {dimension_numbers = #tpu.dot_dimension_numbers<[1], [0], [0], [1], [0, 0, 1, 1], [], []>} : vector<16x128xbf16>, vector<128x128xbf16>, vector<16x128xf32> -> vector<16x128xf32>
    %c0_32 = arith.constant 0 : index
    %c0_33 = arith.constant 0 : index
    %c0_34 = arith.constant 0 : index
    %135 = vector.load %arg11[%c0_32, %c0_33, %c0_34] : memref<1x1x128xf32, #tpu.memory_space<vmem>>, vector<1x1x128xf32>
    %136 = vector.shape_cast %135 : vector<1x1x128xf32> to vector<1x128xf32>
    %137 = vector.broadcast %136 : vector<1x128xf32> to vector<16x128xf32>
    %138 = arith.addf %134, %137 : vector<16x128xf32>
    %139 = arith.addf %3, %138 : vector<16x128xf32>
    %c0_35 = arith.constant 0 : index
    %c0_36 = arith.constant 0 : index
    %c0_37 = arith.constant 0 : index
    %140 = vector.load %arg12[%c0_35, %c0_36, %c0_37] : memref<1x1x128xf32, #tpu.memory_space<vmem>>, vector<1x1x128xf32>
    %141 = vector.shape_cast %140 : vector<1x1x128xf32> to vector<1x128xf32>
    %c0_38 = arith.constant 0 : index
    %c0_39 = arith.constant 0 : index
    %c0_40 = arith.constant 0 : index
    %142 = vector.load %arg13[%c0_38, %c0_39, %c0_40] : memref<1x1x128xf32, #tpu.memory_space<vmem>>, vector<1x1x128xf32>
    %143 = vector.shape_cast %142 : vector<1x1x128xf32> to vector<1x128xf32>
    %cst_41 = arith.constant dense<0.000000e+00> : vector<16xf32>
    %144 = vector.multi_reduction <add>, %139, %cst_41 [1] : vector<16x128xf32> to vector<16xf32>
    %145 = vector.shape_cast %144 : vector<16xf32> to vector<16x1xf32>
    %cst_42 = arith.constant 1.280000e+02 : f32
    %146 = vector.broadcast %cst_42 : f32 to vector<16x1xf32>
    %147 = arith.divf %145, %146 : vector<16x1xf32>
    %148 = vector.broadcast %147 : vector<16x1xf32> to vector<16x128xf32>
    %149 = arith.subf %139, %148 : vector<16x128xf32>
    %150 = arith.mulf %149, %149 : vector<16x128xf32>
    %cst_43 = arith.constant dense<0.000000e+00> : vector<16xf32>
    %151 = vector.multi_reduction <add>, %150, %cst_43 [1] : vector<16x128xf32> to vector<16xf32>
    %152 = vector.shape_cast %151 : vector<16xf32> to vector<16x1xf32>
    %cst_44 = arith.constant 1.280000e+02 : f32
    %153 = vector.broadcast %cst_44 : f32 to vector<16x1xf32>
    %154 = arith.divf %152, %153 : vector<16x1xf32>
    %155 = vector.broadcast %147 : vector<16x1xf32> to vector<16x128xf32>
    %156 = arith.subf %139, %155 : vector<16x128xf32>
    %cst_45 = arith.constant 9.99999974E-6 : f32
    %157 = vector.broadcast %cst_45 : f32 to vector<16x1xf32>
    %158 = arith.addf %154, %157 : vector<16x1xf32>
    %159 = math.rsqrt %158 : vector<16x1xf32>
    %160 = vector.broadcast %159 : vector<16x1xf32> to vector<16x128xf32>
    %161 = arith.mulf %156, %160 : vector<16x128xf32>
    %162 = vector.broadcast %141 : vector<1x128xf32> to vector<16x128xf32>
    %163 = arith.mulf %161, %162 : vector<16x128xf32>
    %164 = vector.broadcast %143 : vector<1x128xf32> to vector<16x128xf32>
    %165 = arith.addf %163, %164 : vector<16x128xf32>
    %c0_46 = arith.constant 0 : index
    %c0_47 = arith.constant 0 : index
    %c0_48 = arith.constant 0 : index
    %166 = vector.load %arg14[%c0_46, %c0_47, %c0_48] : memref<1x128x512xbf16, #tpu.memory_space<vmem>>, vector<1x128x512xbf16>
    %167 = vector.shape_cast %166 : vector<1x128x512xbf16> to vector<128x512xbf16>
    %168 = arith.truncf %165 : vector<16x128xf32> to vector<16x128xbf16>
    %cst_49 = arith.constant dense<0.000000e+00> : vector<16x512xf32>
    %169 = tpu.matmul %168, %167, %cst_49 {dimension_numbers = #tpu.dot_dimension_numbers<[1], [0], [0], [1], [0, 0, 1, 1], [], []>} : vector<16x128xbf16>, vector<128x512xbf16>, vector<16x512xf32> -> vector<16x512xf32>
    %c0_50 = arith.constant 0 : index
    %c0_51 = arith.constant 0 : index
    %c0_52 = arith.constant 0 : index
    %170 = vector.load %arg15[%c0_50, %c0_51, %c0_52] : memref<1x1x512xf32, #tpu.memory_space<vmem>>, vector<1x1x512xf32>
    %171 = vector.shape_cast %170 : vector<1x1x512xf32> to vector<1x512xf32>
    %172 = vector.broadcast %171 : vector<1x512xf32> to vector<16x512xf32>
    %173 = arith.addf %169, %172 : vector<16x512xf32>
    %cst_53 = arith.constant 5.000000e-01 : f32
    %174 = vector.broadcast %cst_53 : f32 to vector<16x512xf32>
    %175 = arith.mulf %174, %173 : vector<16x512xf32>
    %cst_54 = arith.constant 0.707106769 : f32
    %176 = vector.broadcast %cst_54 : f32 to vector<16x512xf32>
    %177 = arith.mulf %173, %176 : vector<16x512xf32>
    %178 = math.erf %177 : vector<16x512xf32>
    %cst_55 = arith.constant 1.000000e+00 : f32
    %179 = vector.broadcast %cst_55 : f32 to vector<16x512xf32>
    %180 = arith.addf %179, %178 : vector<16x512xf32>
    %181 = arith.mulf %175, %180 : vector<16x512xf32>
    %c0_56 = arith.constant 0 : index
    %c0_57 = arith.constant 0 : index
    %c0_58 = arith.constant 0 : index
    %182 = vector.load %arg16[%c0_56, %c0_57, %c0_58] : memref<1x512x128xbf16, #tpu.memory_space<vmem>>, vector<1x512x128xbf16>
    %183 = vector.shape_cast %182 : vector<1x512x128xbf16> to vector<512x128xbf16>
    %184 = arith.truncf %181 : vector<16x512xf32> to vector<16x512xbf16>
    %cst_59 = arith.constant dense<0.000000e+00> : vector<16x128xf32>
    %185 = tpu.matmul %184, %183, %cst_59 {dimension_numbers = #tpu.dot_dimension_numbers<[1], [0], [0], [1], [0, 0, 1, 1], [], []>} : vector<16x512xbf16>, vector<512x128xbf16>, vector<16x128xf32> -> vector<16x128xf32>
    %c0_60 = arith.constant 0 : index
    %c0_61 = arith.constant 0 : index
    %c0_62 = arith.constant 0 : index
    %186 = vector.load %arg17[%c0_60, %c0_61, %c0_62] : memref<1x1x128xf32, #tpu.memory_space<vmem>>, vector<1x1x128xf32>
    %187 = vector.shape_cast %186 : vector<1x1x128xf32> to vector<1x128xf32>
    %188 = vector.broadcast %187 : vector<1x128xf32> to vector<16x128xf32>
    %189 = arith.addf %185, %188 : vector<16x128xf32>
    %190 = arith.addf %139, %189 : vector<16x128xf32>
    %c0_63 = arith.constant 0 : index
    %c0_64 = arith.constant 0 : index
    %191 = vector.load %arg25[%c0_63, %c0_64] : memref<16x128xf32, #tpu.memory_space<vmem>>, vector<16x128xf32>
    tpu.vector_store %arg25[%c0_63, %c0_64], %190 {strides = array<i32>} : memref<16x128xf32, #tpu.memory_space<vmem>>, vector<16x128xf32>,
    %c2_i32 = arith.constant 2 : i32
    %192 = arith.cmpi eq, %arg0, %c2_i32 : i32
    %193 = arith.extui %192 : i1 to i32
    %c0_i32_65 = arith.constant 0 : i32
    %194 = arith.cmpi ne, %193, %c0_i32_65 : i32
    scf.if %194 {
      %c0_66 = arith.constant 0 : index
      %c0_67 = arith.constant 0 : index
      %195 = tpu.strided_load %arg25[%c0_66, %c0_67] {strides = array<i32: 8, 1>} : memref<16x128xf32, #tpu.memory_space<vmem>>, vector<2x128xf32>
      %c0_68 = arith.constant 0 : index
      %c0_69 = arith.constant 0 : index
      %196 = vector.load %arg23[%c0_68, %c0_69] : memref<2x128xf32, #tpu.memory_space<vmem>>, vector<2x128xf32>
      tpu.vector_store %arg23[%c0_68, %c0_69], %195 {strides = array<i32>} : memref<2x128xf32, #tpu.memory_space<vmem>>, vector<2x128xf32>,
      %c0_70 = arith.constant 0 : index
      %c0_71 = arith.constant 0 : index
      %197 = vector.load %arg18[%c0_70, %c0_71] : memref<1x128xf32, #tpu.memory_space<vmem>>, vector<1x128xf32>
      %c0_72 = arith.constant 0 : index
      %c0_73 = arith.constant 0 : index
      %198 = vector.load %arg19[%c0_72, %c0_73] : memref<1x128xf32, #tpu.memory_space<vmem>>, vector<1x128xf32>
      %cst_74 = arith.constant dense<0.000000e+00> : vector<2xf32>
      %199 = vector.multi_reduction <add>, %195, %cst_74 [1] : vector<2x128xf32> to vector<2xf32>
      %200 = vector.shape_cast %199 : vector<2xf32> to vector<2x1xf32>
      %cst_75 = arith.constant 1.280000e+02 : f32
      %201 = vector.broadcast %cst_75 : f32 to vector<2x1xf32>
      %202 = arith.divf %200, %201 : vector<2x1xf32>
      %203 = vector.broadcast %202 : vector<2x1xf32> to vector<2x128xf32>
      %204 = arith.subf %195, %203 : vector<2x128xf32>
      %205 = arith.mulf %204, %204 : vector<2x128xf32>
      %cst_76 = arith.constant dense<0.000000e+00> : vector<2xf32>
      %206 = vector.multi_reduction <add>, %205, %cst_76 [1] : vector<2x128xf32> to vector<2xf32>
      %207 = vector.shape_cast %206 : vector<2xf32> to vector<2x1xf32>
      %cst_77 = arith.constant 1.280000e+02 : f32
      %208 = vector.broadcast %cst_77 : f32 to vector<2x1xf32>
      %209 = arith.divf %207, %208 : vector<2x1xf32>
      %210 = vector.broadcast %202 : vector<2x1xf32> to vector<2x128xf32>
      %211 = arith.subf %195, %210 : vector<2x128xf32>
      %cst_78 = arith.constant 9.99999974E-6 : f32
      %212 = vector.broadcast %cst_78 : f32 to vector<2x1xf32>
      %213 = arith.addf %209, %212 : vector<2x1xf32>
      %214 = math.rsqrt %213 : vector<2x1xf32>
      %215 = vector.broadcast %214 : vector<2x1xf32> to vector<2x128xf32>
      %216 = arith.mulf %211, %215 : vector<2x128xf32>
      %217 = vector.broadcast %197 : vector<1x128xf32> to vector<2x128xf32>
      %218 = arith.mulf %216, %217 : vector<2x128xf32>
      %219 = vector.broadcast %198 : vector<1x128xf32> to vector<2x128xf32>
      %220 = arith.addf %218, %219 : vector<2x128xf32>
      %c0_79 = arith.constant 0 : index
      %c0_80 = arith.constant 0 : index
      %221 = vector.load %arg20[%c0_79, %c0_80] : memref<128x128xbf16, #tpu.memory_space<vmem>>, vector<128x128xbf16>
      %222 = arith.truncf %220 : vector<2x128xf32> to vector<2x128xbf16>
      %cst_81 = arith.constant dense<0.000000e+00> : vector<2x128xf32>
      %223 = tpu.matmul %222, %221, %cst_81 {dimension_numbers = #tpu.dot_dimension_numbers<[1], [0], [0], [1], [0, 0, 1, 1], [], []>} : vector<2x128xbf16>, vector<128x128xbf16>, vector<2x128xf32> -> vector<2x128xf32>
      %c0_82 = arith.constant 0 : index
      %c0_83 = arith.constant 0 : index
      %224 = vector.load %arg21[%c0_82, %c0_83] : memref<1x128xf32, #tpu.memory_space<vmem>>, vector<1x128xf32>
      %225 = vector.broadcast %224 : vector<1x128xf32> to vector<2x128xf32>
      %226 = arith.addf %223, %225 : vector<2x128xf32>
      %c0_84 = arith.constant 0 : index
      %c0_85 = arith.constant 0 : index
      %227 = vector.load %arg22[%c0_84, %c0_85] : memref<2x128xf32, #tpu.memory_space<vmem>>, vector<2x128xf32>
      tpu.vector_store %arg22[%c0_84, %c0_85], %226 {strides = array<i32>} : memref<2x128xf32, #tpu.memory_space<vmem>>, vector<2x128xf32>,
    } else {
    }
    return
  }
  func.func @transform_0(%arg0: i32) -> (i32, i32) {
    %c0_i32 = arith.constant 0 : i32
    %c0_i32_0 = arith.constant 0 : i32
    %c0_i32_1 = arith.constant 0 : i32
    return %c0_i32, %c0_i32_0 : i32, i32
  }
  func.func @transform_1(%arg0: i32) -> (i32, i32) {
    %c0_i32 = arith.constant 0 : i32
    %c0_i32_0 = arith.constant 0 : i32
    %c0_i32_1 = arith.constant 0 : i32
    return %c0_i32, %c0_i32_0 : i32, i32
  }
  func.func @transform_2(%arg0: i32) -> (i32, i32) {
    %c0_i32 = arith.constant 0 : i32
    %c0_i32_0 = arith.constant 0 : i32
    %c0_i32_1 = arith.constant 0 : i32
    return %c0_i32, %c0_i32_0 : i32, i32
  }
  func.func @transform_3(%arg0: i32) -> (i32, i32) {
    %c0_i32 = arith.constant 0 : i32
    %c0_i32_0 = arith.constant 0 : i32
    %c0_i32_1 = arith.constant 0 : i32
    return %c0_i32, %c0_i32_0 : i32, i32
  }
  func.func @transform_4(%arg0: i32) -> (i32, i32) {
    %c0_i32 = arith.constant 0 : i32
    %c0_i32_0 = arith.constant 0 : i32
    %c0_i32_1 = arith.constant 0 : i32
    return %c0_i32, %c0_i32_0 : i32, i32
  }
  func.func @transform_5(%arg0: i32) -> (i32, i32, i32) {
    %c0_i32 = arith.constant 0 : i32
    %c0_i32_0 = arith.constant 0 : i32
    %c0_i32_1 = arith.constant 0 : i32
    return %arg0, %c0_i32, %c0_i32_0 : i32, i32, i32
  }
  func.func @transform_6(%arg0: i32) -> (i32, i32, i32) {
    %c0_i32 = arith.constant 0 : i32
    %c0_i32_0 = arith.constant 0 : i32
    %c0_i32_1 = arith.constant 0 : i32
    return %arg0, %c0_i32, %c0_i32_0 : i32, i32, i32
  }
  func.func @transform_7(%arg0: i32) -> (i32, i32, i32) {
    %c0_i32 = arith.constant 0 : i32
    %c0_i32_0 = arith.constant 0 : i32
    %c0_i32_1 = arith.constant 0 : i32
    return %arg0, %c0_i32, %c0_i32_0 : i32, i32, i32
  }
  func.func @transform_8(%arg0: i32) -> (i32, i32, i32) {
    %c0_i32 = arith.constant 0 : i32
    %c0_i32_0 = arith.constant 0 : i32
    %c0_i32_1 = arith.constant 0 : i32
    return %arg0, %c0_i32, %c0_i32_0 : i32, i32, i32
  }
  func.func @transform_9(%arg0: i32) -> (i32, i32, i32) {
    %c0_i32 = arith.constant 0 : i32
    %c0_i32_0 = arith.constant 0 : i32
    %c0_i32_1 = arith.constant 0 : i32
    return %arg0, %c0_i32, %c0_i32_0 : i32, i32, i32
  }
  func.func @transform_10(%arg0: i32) -> (i32, i32, i32) {
    %c0_i32 = arith.constant 0 : i32
    %c0_i32_0 = arith.constant 0 : i32
    %c0_i32_1 = arith.constant 0 : i32
    return %arg0, %c0_i32, %c0_i32_0 : i32, i32, i32
  }
  func.func @transform_11(%arg0: i32) -> (i32, i32, i32) {
    %c0_i32 = arith.constant 0 : i32
    %c0_i32_0 = arith.constant 0 : i32
    %c0_i32_1 = arith.constant 0 : i32
    return %arg0, %c0_i32, %c0_i32_0 : i32, i32, i32
  }
  func.func @transform_12(%arg0: i32) -> (i32, i32, i32) {
    %c0_i32 = arith.constant 0 : i32
    %c0_i32_0 = arith.constant 0 : i32
    %c0_i32_1 = arith.constant 0 : i32
    return %arg0, %c0_i32, %c0_i32_0 : i32, i32, i32
  }
  func.func @transform_13(%arg0: i32) -> (i32, i32, i32) {
    %c0_i32 = arith.constant 0 : i32
    %c0_i32_0 = arith.constant 0 : i32
    %c0_i32_1 = arith.constant 0 : i32
    return %arg0, %c0_i32, %c0_i32_0 : i32, i32, i32
  }
  func.func @transform_14(%arg0: i32) -> (i32, i32, i32) {
    %c0_i32 = arith.constant 0 : i32
    %c0_i32_0 = arith.constant 0 : i32
    %c0_i32_1 = arith.constant 0 : i32
    return %arg0, %c0_i32, %c0_i32_0 : i32, i32, i32
  }
  func.func @transform_15(%arg0: i32) -> (i32, i32, i32) {
    %c0_i32 = arith.constant 0 : i32
    %c0_i32_0 = arith.constant 0 : i32
    %c0_i32_1 = arith.constant 0 : i32
    return %arg0, %c0_i32, %c0_i32_0 : i32, i32, i32
  }
  func.func @transform_16(%arg0: i32) -> (i32, i32, i32) {
    %c0_i32 = arith.constant 0 : i32
    %c0_i32_0 = arith.constant 0 : i32
    %c0_i32_1 = arith.constant 0 : i32
    return %arg0, %c0_i32, %c0_i32_0 : i32, i32, i32
  }
  func.func @transform_17(%arg0: i32) -> (i32, i32) {
    %c0_i32 = arith.constant 0 : i32
    %c0_i32_0 = arith.constant 0 : i32
    %c0_i32_1 = arith.constant 0 : i32
    return %c0_i32, %c0_i32_0 : i32, i32
  }
  func.func @transform_18(%arg0: i32) -> (i32, i32) {
    %c0_i32 = arith.constant 0 : i32
    %c0_i32_0 = arith.constant 0 : i32
    %c0_i32_1 = arith.constant 0 : i32
    return %c0_i32, %c0_i32_0 : i32, i32
  }
  func.func @transform_19(%arg0: i32) -> (i32, i32) {
    %c0_i32 = arith.constant 0 : i32
    %c0_i32_0 = arith.constant 0 : i32
    %c0_i32_1 = arith.constant 0 : i32
    return %c0_i32, %c0_i32_0 : i32, i32
  }
  func.func @transform_20(%arg0: i32) -> (i32, i32) {
    %c0_i32 = arith.constant 0 : i32
    %c0_i32_0 = arith.constant 0 : i32
    %c0_i32_1 = arith.constant 0 : i32
    return %c0_i32, %c0_i32_0 : i32, i32
  }
  func.func @transform_21(%arg0: i32) -> (i32, i32) {
    %c0_i32 = arith.constant 0 : i32
    %c0_i32_0 = arith.constant 0 : i32
    %c0_i32_1 = arith.constant 0 : i32
    return %c0_i32, %c0_i32_0 : i32, i32
  }
  func.func @transform_22(%arg0: i32) -> (i32, i32) {
    %c0_i32 = arith.constant 0 : i32
    %c0_i32_0 = arith.constant 0 : i32
    %c0_i32_1 = arith.constant 0 : i32
    return %c0_i32, %c0_i32_0 : i32, i32
  }
  func.func @transform_23(%arg0: i32) -> (i32, i32, i32, i32) {
    %c0_i32 = arith.constant 0 : i32
    %c0_i32_0 = arith.constant 0 : i32
    %c0_i32_1 = arith.constant 0 : i32
    %c0_i32_2 = arith.constant 0 : i32
    return %arg0, %c0_i32, %c0_i32_0, %c0_i32_1 : i32, i32, i32, i32
  }
}

</mosaic_0001>

<llo_original>
// kernel: advanced_neural_model.1
$region0: #{advanced_neural_model.1}
  #allocation0 [shape = 'u32[]', space=smem, size = 0x4, offset = 0x4, fixed_abs, tag = 'smem constant byte address 0x4 - core index']
  #allocation1 [shape = 'u32[144,128]{1,0:T(1,128)}', space=vmem, size = 0x12000, scoped, tag = 'internal scratch']
  #allocation2 [shape = 'f32[16,128]{1,0:T(8,128)}', space=vmem, size = 0x2000, scoped, tag = 'scratch operand']
  %s0 = inlined_call_operand.vmem [shape: f32[16,32], index: 0, kind: input, shape index: {}]
  %s1 = inlined_call_operand.vmem [shape: bf16[32,128], index: 1, kind: input, shape index: {}]
  %s2 = inlined_call_operand.vmem [shape: f32[1,128], index: 2, kind: input, shape index: {}]
  %s3 = inlined_call_operand.vmem [shape: f32[1,128], index: 3, kind: input, shape index: {}]
  %s4 = inlined_call_operand.vmem [shape: f32[1,128], index: 4, kind: input, shape index: {}]
  %s5 = inlined_call_operand.vmem [shape: f32[3,1,128], index: 5, kind: input, shape index: {}]
  %s6 = inlined_call_operand.vmem [shape: f32[3,1,128], index: 6, kind: input, shape index: {}]
  %s7 = inlined_call_operand.hbm [shape: bf16[3,128,384], index: 7, kind: input, shape index: {}]
  %s8 = inlined_call_operand.vmem [shape: f32[3,1,384], index: 8, kind: input, shape index: {}]
  %s9 = inlined_call_operand.vmem [shape: bf16[3,128,128], index: 9, kind: input, shape index: {}]
  %s10 = inlined_call_operand.vmem [shape: f32[3,1,128], index: 10, kind: input, shape index: {}]
  %s11 = inlined_call_operand.vmem [shape: f32[3,1,128], index: 11, kind: input, shape index: {}]
  %s12 = inlined_call_operand.vmem [shape: f32[3,1,128], index: 12, kind: input, shape index: {}]
  %s13 = inlined_call_operand.hbm [shape: bf16[3,128,512], index: 13, kind: input, shape index: {}]
  %s14 = inlined_call_operand.vmem [shape: f32[3,1,512], index: 14, kind: input, shape index: {}]
  %s15 = inlined_call_operand.hbm [shape: bf16[3,512,128], index: 15, kind: input, shape index: {}]
  %s16 = inlined_call_operand.vmem [shape: f32[3,1,128], index: 16, kind: input, shape index: {}]
  %s17 = inlined_call_operand.vmem [shape: f32[1,128], index: 17, kind: input, shape index: {}]
  %s18 = inlined_call_operand.vmem [shape: f32[1,128], index: 18, kind: input, shape index: {}]
  %s19 = inlined_call_operand.vmem [shape: bf16[128,128], index: 19, kind: input, shape index: {}]
  %s20 = inlined_call_operand.vmem [shape: f32[1,128], index: 20, kind: input, shape index: {}]
  %s21 = inlined_call_operand.hbm [shape: f32[2,128], index: 21, kind: output, shape index: {0}]
  %s22 = inlined_call_operand.hbm [shape: f32[2,128], index: 22, kind: output, shape index: {1}]
  %s23 = inlined_call_operand.vmem [shape: f32[3,16,8,8], index: 23, kind: output, shape index: {2}]
  %24 = xla_tuple %s21, %s22, %s23
  %s25 = sld [smem:[#allocation0]]
  $region153: #{advanced_neural_model.1} parent=0
    _
  %s27 = ssub.s32 1, %s25
  %s28 = scalar_select 0, %s27, %s25
  $region1: #{advanced_neural_model.1} parent=0
    #allocation3 [shape = 'u8[196608]{0}', space=vmem, size = 0x30000, scoped, tag = 'input window, operand 7']
    #allocation4 [shape = 's32[2]{0}', space=sflag, size = 0x8, scoped, tag = 'scoped memory for advanced_neural_model.1']
    #allocation5 [shape = 's32[2]{0}', space=sflag, size = 0x8, scoped, tag = 'scoped memory for advanced_neural_model.1']
    #allocation6 [shape = 'u8[262144]{0}', space=vmem, size = 0x40000, scoped, tag = 'input window, operand 13']
    #allocation7 [shape = 's32[2]{0}', space=sflag, size = 0x8, scoped, tag = 'scoped memory for advanced_neural_model.1']
    #allocation8 [shape = 'u8[262144]{0}', space=vmem, size = 0x40000, scoped, tag = 'input window, operand 15']
    #allocation9 [shape = 'u8[1024]{0}', space=vmem, size = 0x400, scoped, tag = 'output window, operand 0, single buffered']
    #allocation10 [shape = 'u8[1024]{0}', space=vmem, size = 0x400, scoped, tag = 'output window, operand 1, single buffered']
    #allocation11 [shape = 's32[1]{0}', space=sflag, size = 0x4, scoped, tag = 'scoped memory for advanced_neural_model.1']
    %29 = vsyncpa [#allocation4], 0
    %s30 = scalar_lea.sflag [#allocation4], 1
    %31 = vsyncpa %s30, 0
    %32 = vsyncpa [#allocation7], 0
    %s33 = scalar_lea.sflag [#allocation7], 1
    %34 = vsyncpa %s33, 0
    %35 = vsyncpa [#allocation5], 0
    %36 = vsyncpa [#allocation11], 0
    loop: start=0, step=1, limit=5
    $region2: #{advanced_neural_model.1} parent=1 // loop_pre_header
      _
    $region3: #{advanced_neural_model.1} parent=1 // loop_header
      %s38 = sphi 0, %s42
      %p39 = scmp.ge.s32.totalorder %s38, 5
      %s46 = sphi 0, %s46
      %s48 = sphi 0, %s46
      %s49 = sphi 0, %s48
      %s63 = sphi 0, %s49
      %s67 = sphi 0, %s67
      %s69 = sphi 0, %s67
      %s70 = sphi 0, %s69
      %s84 = sphi 0, %s70
      %s88 = sphi 0, %s88
      %s90 = sphi 0, %s88
      %s91 = sphi 0, %s90
      %s105 = sphi 0, %s91
      %s109 = sphi 0, %s109
      %s111 = sphi 0, %s109
      %s112 = sphi 0, %s111
      %s126 = sphi 0, %s112
      %s130 = sphi 0, %s130
      %s132 = sphi 0, %s130
      %s133 = sphi 0, %s132
      %s147 = sphi 0, %s133
      %s153 = sphi 0, %s155
      %s156 = sphi 0, %s153
      %s157 = sphi 0, %s156
      %s173 = sphi 0, %s157
      %s179 = sphi 0, %s181
      %s182 = sphi 0, %s179
      %s183 = sphi 0, %s182
      %s199 = sphi 0, %s183
      %s205 = sphi 0, %s207
      %s208 = sphi 0, %s205
      %s209 = sphi 0, %s208
      %s225 = sphi 0, %s209
      %s231 = sphi 0, %s233
      %s234 = sphi 0, %s231
      %s235 = sphi 0, %s234
      %s251 = sphi 0, %s235
      %s257 = sphi 0, %s259
      %s260 = sphi 0, %s257
      %s261 = sphi 0, %s260
      %s277 = sphi 0, %s261
      %s283 = sphi 0, %s285
      %s286 = sphi 0, %s283
      %s287 = sphi 0, %s286
      %s303 = sphi 0, %s287
      %s309 = sphi 0, %s311
      %s312 = sphi 0, %s309
      %s313 = sphi 0, %s312
      %s329 = sphi 0, %s313
      %s335 = sphi 0, %s337
      %s338 = sphi 0, %s335
      %s339 = sphi 0, %s338
      %s355 = sphi 0, %s339
      %s361 = sphi 0, %s363
      %s364 = sphi 0, %s361
      %s365 = sphi 0, %s364
      %s381 = sphi 0, %s365
      %s387 = sphi 0, %s389
      %s390 = sphi 0, %s387
      %s391 = sphi 0, %s390
      %s407 = sphi 0, %s391
      %s413 = sphi 0, %s415
      %s416 = sphi 0, %s413
      %s417 = sphi 0, %s416
      %s433 = sphi 0, %s417
      %s439 = sphi 0, %s441
      %s442 = sphi 0, %s439
      %s443 = sphi 0, %s442
      %s459 = sphi 0, %s443
      %s463 = sphi 0, %s463
      %s465 = sphi 0, %s463
      %s466 = sphi 0, %s465
      %s480 = sphi 0, %s466
      %s484 = sphi 0, %s484
      %s486 = sphi 0, %s484
      %s487 = sphi 0, %s486
      %s501 = sphi 0, %s487
      %s505 = sphi 0, %s505
      %s507 = sphi 0, %s505
      %s508 = sphi 0, %s507
      %s522 = sphi 0, %s508
      %s526 = sphi 0, %s526
      %s528 = sphi 0, %s526
      %s529 = sphi 0, %s528
      %s543 = sphi 0, %s529
      %s547 = sphi 0, %s547
      %s549 = sphi 0, %s547
      %s550 = sphi 0, %s549
      %s564 = sphi 0, %s550
      %s568 = sphi 0, %s568
      %s570 = sphi 0, %s568
      %s571 = sphi 0, %s570
      %s585 = sphi 0, %s571
      %s591 = sphi 0, %s593
      %s594 = sphi 0, %s591
      %s595 = sphi 0, %s594
      %s611 = sphi 0, %s595
    $region4: #{advanced_neural_model.1} parent=1 // loop_header_branch
      %41 = sbr.rel (%p39) target = $region8
    $region5: #{advanced_neural_model.1} parent=1 // loop_body
      %s43 = ssub.s32 %s38, 1
      %s44 = ssub.s32 %s38, 2
      %s45 = sadd.s32 %s38, 1
      %s47 = sadd.s32 %s46, 1
      %p50 = scmp.eq.s32.totalorder %s38, 2
      %p51 = scmp.ne.s32.totalorder %s46, %s48
      %p52 = scmp.eq.s32.totalorder %s38, 0
      %p53 = por %p51, %p52
      %p54 = scmp.ne.s32.totalorder %s46, %s48
      %p55 = scmp.eq.s32.totalorder %s43, 2
      %p56 = por %p54, %p55
      %p57 = scmp.ne.s32.totalorder %s48, %s49
      %p58 = scmp.eq.s32.totalorder %s43, 0
      %p59 = por %p57, %p58
      %p60 = scmp.ne.s32.totalorder %s48, %s49
      %p61 = scmp.eq.s32.totalorder %s44, 2
      %p62 = por %p60, %p61
      %p64 = scmp.ne.s32.totalorder %s49, %s63
      %p65 = scmp.eq.s32.totalorder %s44, 0
      %p66 = por %p64, %p65
      %s68 = sadd.s32 %s67, 1
      %p71 = scmp.eq.s32.totalorder %s38, 2
      %p72 = scmp.ne.s32.totalorder %s67, %s69
      %p73 = scmp.eq.s32.totalorder %s38, 0
      %p74 = por %p72, %p73
      %p75 = scmp.ne.s32.totalorder %s67, %s69
      %p76 = scmp.eq.s32.totalorder %s43, 2
      %p77 = por %p75, %p76
      %p78 = scmp.ne.s32.totalorder %s69, %s70
      %p79 = scmp.eq.s32.totalorder %s43, 0
      %p80 = por %p78, %p79
      %p81 = scmp.ne.s32.totalorder %s69, %s70
      %p82 = scmp.eq.s32.totalorder %s44, 2
      %p83 = por %p81, %p82
      %p85 = scmp.ne.s32.totalorder %s70, %s84
      %p86 = scmp.eq.s32.totalorder %s44, 0
      %p87 = por %p85, %p86
      %s89 = sadd.s32 %s88, 1
      %p92 = scmp.eq.s32.totalorder %s38, 2
      %p93 = scmp.ne.s32.totalorder %s88, %s90
      %p94 = scmp.eq.s32.totalorder %s38, 0
      %p95 = por %p93, %p94
      %p96 = scmp.ne.s32.totalorder %s88, %s90
      %p97 = scmp.eq.s32.totalorder %s43, 2
      %p98 = por %p96, %p97
      %p99 = scmp.ne.s32.totalorder %s90, %s91
      %p100 = scmp.eq.s32.totalorder %s43, 0
      %p101 = por %p99, %p100
      %p102 = scmp.ne.s32.totalorder %s90, %s91
      %p103 = scmp.eq.s32.totalorder %s44, 2
      %p104 = por %p102, %p103
      %p106 = scmp.ne.s32.totalorder %s91, %s105
      %p107 = scmp.eq.s32.totalorder %s44, 0
      %p108 = por %p106, %p107
      %s110 = sadd.s32 %s109, 1
      %p113 = scmp.eq.s32.totalorder %s38, 2
      %p114 = scmp.ne.s32.totalorder %s109, %s111
      %p115 = scmp.eq.s32.totalorder %s38, 0
      %p116 = por %p114, %p115
      %p117 = scmp.ne.s32.totalorder %s109, %s111
      %p118 = scmp.eq.s32.totalorder %s43, 2
      %p119 = por %p117, %p118
      %p120 = scmp.ne.s32.totalorder %s111, %s112
      %p121 = scmp.eq.s32.totalorder %s43, 0
      %p122 = por %p120, %p121
      %p123 = scmp.ne.s32.totalorder %s111, %s112
      %p124 = scmp.eq.s32.totalorder %s44, 2
      %p125 = por %p123, %p124
      %p127 = scmp.ne.s32.totalorder %s112, %s126
      %p128 = scmp.eq.s32.totalorder %s44, 0
      %p129 = por %p127, %p128
      %s131 = sadd.s32 %s130, 1
      %p134 = scmp.eq.s32.totalorder %s38, 2
      %p135 = scmp.ne.s32.totalorder %s130, %s132
      %p136 = scmp.eq.s32.totalorder %s38, 0
      %p137 = por %p135, %p136
      %p138 = scmp.ne.s32.totalorder %s130, %s132
      %p139 = scmp.eq.s32.totalorder %s43, 2
      %p140 = por %p138, %p139
      %p141 = scmp.ne.s32.totalorder %s132, %s133
      %p142 = scmp.eq.s32.totalorder %s43, 0
      %p143 = por %p141, %p142
      %p144 = scmp.ne.s32.totalorder %s132, %s133
      %p145 = scmp.eq.s32.totalorder %s44, 2
      %p146 = por %p144, %p145
      %p148 = scmp.ne.s32.totalorder %s133, %s147
      %p149 = scmp.eq.s32.totalorder %s44, 0
      %p150 = por %p148, %p149
      %s151 = ssub.s32 %s38, %s45
      %p152 = scmp.eq.s32.totalorder %s151, 0
      %s154 = sadd.s32 %s153, 1
      %s155 = scalar_select %p152, %s153, %s154
      %p158 = pneg %p152
      %p159 = scmp.eq.s32.totalorder %s38, 2
      %p160 = por %p158, %p159
      %p161 = scmp.ne.s32.totalorder %s153, %s156
      %p162 = scmp.eq.s32.totalorder %s38, 0
      %p163 = por %p161, %p162
      %p164 = scmp.ne.s32.totalorder %s153, %s156
      %p165 = scmp.eq.s32.totalorder %s43, 2
      %p166 = por %p164, %p165
      %p167 = scmp.ne.s32.totalorder %s156, %s157
      %p168 = scmp.eq.s32.totalorder %s43, 0
      %p169 = por %p167, %p168
      %p170 = scmp.ne.s32.totalorder %s156, %s157
      %p171 = scmp.eq.s32.totalorder %s44, 2
      %p172 = por %p170, %p171
      %p174 = scmp.ne.s32.totalorder %s157, %s173
      %p175 = scmp.eq.s32.totalorder %s44, 0
      %p176 = por %p174, %p175
      %s177 = ssub.s32 %s38, %s45
      %p178 = scmp.eq.s32.totalorder %s177, 0
      %s180 = sadd.s32 %s179, 1
      %s181 = scalar_select %p178, %s179, %s180
      %p184 = pneg %p178
      %p185 = scmp.eq.s32.totalorder %s38, 2
      %p186 = por %p184, %p185
      %p187 = scmp.ne.s32.totalorder %s179, %s182
      %p188 = scmp.eq.s32.totalorder %s38, 0
      %p189 = por %p187, %p188
      %p190 = scmp.ne.s32.totalorder %s179, %s182
      %p191 = scmp.eq.s32.totalorder %s43, 2
      %p192 = por %p190, %p191
      %p193 = scmp.ne.s32.totalorder %s182, %s183
      %p194 = scmp.eq.s32.totalorder %s43, 0
      %p195 = por %p193, %p194
      %p196 = scmp.ne.s32.totalorder %s182, %s183
      %p197 = scmp.eq.s32.totalorder %s44, 2
      %p198 = por %p196, %p197
      %p200 = scmp.ne.s32.totalorder %s183, %s199
      %p201 = scmp.eq.s32.totalorder %s44, 0
      %p202 = por %p200, %p201
      %s203 = ssub.s32 %s38, %s45
      %p204 = scmp.eq.s32.totalorder %s203, 0
      %s206 = sadd.s32 %s205, 1
      %s207 = scalar_select %p204, %s205, %s206
      %p210 = pneg %p204
      %p211 = scmp.eq.s32.totalorder %s38, 2
      %p212 = por %p210, %p211
      %p213 = scmp.ne.s32.totalorder %s205, %s208
      %p214 = scmp.eq.s32.totalorder %s38, 0
      %p215 = por %p213, %p214
      %p216 = scmp.ne.s32.totalorder %s205, %s208
      %p217 = scmp.eq.s32.totalorder %s43, 2
      %p218 = por %p216, %p217
      %p219 = scmp.ne.s32.totalorder %s208, %s209
      %p220 = scmp.eq.s32.totalorder %s43, 0
      %p221 = por %p219, %p220
      %p222 = scmp.ne.s32.totalorder %s208, %s209
      %p223 = scmp.eq.s32.totalorder %s44, 2
      %p224 = por %p222, %p223
      %p226 = scmp.ne.s32.totalorder %s209, %s225
      %p227 = scmp.eq.s32.totalorder %s44, 0
      %p228 = por %p226, %p227
      %s229 = ssub.s32 %s38, %s45
      %p230 = scmp.eq.s32.totalorder %s229, 0
      %s232 = sadd.s32 %s231, 1
      %s233 = scalar_select %p230, %s231, %s232
      %p236 = pneg %p230
      %p237 = scmp.eq.s32.totalorder %s38, 2
      %p238 = por %p236, %p237
      %p239 = scmp.ne.s32.totalorder %s231, %s234
      %p240 = scmp.eq.s32.totalorder %s38, 0
      %p241 = por %p239, %p240
      %p242 = scmp.ne.s32.totalorder %s231, %s234
      %p243 = scmp.eq.s32.totalorder %s43, 2
      %p244 = por %p242, %p243
      %p245 = scmp.ne.s32.totalorder %s234, %s235
      %p246 = scmp.eq.s32.totalorder %s43, 0
      %p247 = por %p245, %p246
      %p248 = scmp.ne.s32.totalorder %s234, %s235
      %p249 = scmp.eq.s32.totalorder %s44, 2
      %p250 = por %p248, %p249
      %p252 = scmp.ne.s32.totalorder %s235, %s251
      %p253 = scmp.eq.s32.totalorder %s44, 0
      %p254 = por %p252, %p253
      %s255 = ssub.s32 %s38, %s45
      %p256 = scmp.eq.s32.totalorder %s255, 0
      %s258 = sadd.s32 %s257, 1
      %s259 = scalar_select %p256, %s257, %s258
      %p262 = pneg %p256
      %p263 = scmp.eq.s32.totalorder %s38, 2
      %p264 = por %p262, %p263
      %p265 = scmp.ne.s32.totalorder %s257, %s260
      %p266 = scmp.eq.s32.totalorder %s38, 0
      %p267 = por %p265, %p266
      %p268 = scmp.ne.s32.totalorder %s257, %s260
      %p269 = scmp.eq.s32.totalorder %s43, 2
      %p270 = por %p268, %p269
      %p271 = scmp.ne.s32.totalorder %s260, %s261
      %p272 = scmp.eq.s32.totalorder %s43, 0
      %p273 = por %p271, %p272
      %p274 = scmp.ne.s32.totalorder %s260, %s261
      %p275 = scmp.eq.s32.totalorder %s44, 2
      %p276 = por %p274, %p275
      %p278 = scmp.ne.s32.totalorder %s261, %s277
      %p279 = scmp.eq.s32.totalorder %s44, 0
      %p280 = por %p278, %p279
      %s281 = ssub.s32 %s38, %s45
      %p282 = scmp.eq.s32.totalorder %s281, 0
      %s284 = sadd.s32 %s283, 1
      %s285 = scalar_select %p282, %s283, %s284
      %p288 = pneg %p282
      %p289 = scmp.eq.s32.totalorder %s38, 2
      %p290 = por %p288, %p289
      %p291 = scmp.ne.s32.totalorder %s283, %s286
      %p292 = scmp.eq.s32.totalorder %s38, 0
      %p293 = por %p291, %p292
      %p294 = scmp.ne.s32.totalorder %s283, %s286
      %p295 = scmp.eq.s32.totalorder %s43, 2
      %p296 = por %p294, %p295
      %p297 = scmp.ne.s32.totalorder %s286, %s287
      %p298 = scmp.eq.s32.totalorder %s43, 0
      %p299 = por %p297, %p298
      %p300 = scmp.ne.s32.totalorder %s286, %s287
      %p301 = scmp.eq.s32.totalorder %s44, 2
      %p302 = por %p300, %p301
      %p304 = scmp.ne.s32.totalorder %s287, %s303
      %p305 = scmp.eq.s32.totalorder %s44, 0
      %p306 = por %p304, %p305
      %s307 = ssub.s32 %s38, %s45
      %p308 = scmp.eq.s32.totalorder %s307, 0
      %s310 = sadd.s32 %s309, 1
      %s311 = scalar_select %p308, %s309, %s310
      %p314 = pneg %p308
      %p315 = scmp.eq.s32.totalorder %s38, 2
      %p316 = por %p314, %p315
      %p317 = scmp.ne.s32.totalorder %s309, %s312
      %p318 = scmp.eq.s32.totalorder %s38, 0
      %p319 = por %p317, %p318
      %p320 = scmp.ne.s32.totalorder %s309, %s312
      %p321 = scmp.eq.s32.totalorder %s43, 2
      %p322 = por %p320, %p321
      %p323 = scmp.ne.s32.totalorder %s312, %s313
      %p324 = scmp.eq.s32.totalorder %s43, 0
      %p325 = por %p323, %p324
      %p326 = scmp.ne.s32.totalorder %s312, %s313
      %p327 = scmp.eq.s32.totalorder %s44, 2
      %p328 = por %p326, %p327
      %p330 = scmp.ne.s32.totalorder %s313, %s329
      %p331 = scmp.eq.s32.totalorder %s44, 0
      %p332 = por %p330, %p331
      %s333 = ssub.s32 %s38, %s45
      %p334 = scmp.eq.s32.totalorder %s333, 0
      %s336 = sadd.s32 %s335, 1
      %s337 = scalar_select %p334, %s335, %s336
      %p340 = pneg %p334
      %p341 = scmp.eq.s32.totalorder %s38, 2
      %p342 = por %p340, %p341
      %p343 = scmp.ne.s32.totalorder %s335, %s338
      %p344 = scmp.eq.s32.totalorder %s38, 0
      %p345 = por %p343, %p344
      %p346 = scmp.ne.s32.totalorder %s335, %s338
      %p347 = scmp.eq.s32.totalorder %s43, 2
      %p348 = por %p346, %p347
      %p349 = scmp.ne.s32.totalorder %s338, %s339
      %p350 = scmp.eq.s32.totalorder %s43, 0
      %p351 = por %p349, %p350
      %p352 = scmp.ne.s32.totalorder %s338, %s339
      %p353 = scmp.eq.s32.totalorder %s44, 2
      %p354 = por %p352, %p353
      %p356 = scmp.ne.s32.totalorder %s339, %s355
      %p357 = scmp.eq.s32.totalorder %s44, 0
      %p358 = por %p356, %p357
      %s359 = ssub.s32 %s38, %s45
      %p360 = scmp.eq.s32.totalorder %s359, 0
      %s362 = sadd.s32 %s361, 1
      %s363 = scalar_select %p360, %s361, %s362
      %p366 = pneg %p360
      %p367 = scmp.eq.s32.totalorder %s38, 2
      %p368 = por %p366, %p367
      %p369 = scmp.ne.s32.totalorder %s361, %s364
      %p370 = scmp.eq.s32.totalorder %s38, 0
      %p371 = por %p369, %p370
      %p372 = scmp.ne.s32.totalorder %s361, %s364
      %p373 = scmp.eq.s32.totalorder %s43, 2
      %p374 = por %p372, %p373
      %p375 = scmp.ne.s32.totalorder %s364, %s365
      %p376 = scmp.eq.s32.totalorder %s43, 0
      %p377 = por %p375, %p376
      %p378 = scmp.ne.s32.totalorder %s364, %s365
      %p379 = scmp.eq.s32.totalorder %s44, 2
      %p380 = por %p378, %p379
      %p382 = scmp.ne.s32.totalorder %s365, %s381
      %p383 = scmp.eq.s32.totalorder %s44, 0
      %p384 = por %p382, %p383
      %s385 = ssub.s32 %s38, %s45
      %p386 = scmp.eq.s32.totalorder %s385, 0
      %s388 = sadd.s32 %s387, 1
      %s389 = scalar_select %p386, %s387, %s388
      %p392 = pneg %p386
      %p393 = scmp.eq.s32.totalorder %s38, 2
      %p394 = por %p392, %p393
      %p395 = scmp.ne.s32.totalorder %s387, %s390
      %p396 = scmp.eq.s32.totalorder %s38, 0
      %p397 = por %p395, %p396
      %p398 = scmp.ne.s32.totalorder %s387, %s390
      %p399 = scmp.eq.s32.totalorder %s43, 2
      %p400 = por %p398, %p399
      %p401 = scmp.ne.s32.totalorder %s390, %s391
      %p402 = scmp.eq.s32.totalorder %s43, 0
      %p403 = por %p401, %p402
      %p404 = scmp.ne.s32.totalorder %s390, %s391
      %p405 = scmp.eq.s32.totalorder %s44, 2
      %p406 = por %p404, %p405
      %p408 = scmp.ne.s32.totalorder %s391, %s407
      %p409 = scmp.eq.s32.totalorder %s44, 0
      %p410 = por %p408, %p409
      %s411 = ssub.s32 %s38, %s45
      %p412 = scmp.eq.s32.totalorder %s411, 0
      %s414 = sadd.s32 %s413, 1
      %s415 = scalar_select %p412, %s413, %s414
      %p418 = pneg %p412
      %p419 = scmp.eq.s32.totalorder %s38, 2
      %p420 = por %p418, %p419
      %p421 = scmp.ne.s32.totalorder %s413, %s416
      %p422 = scmp.eq.s32.totalorder %s38, 0
      %p423 = por %p421, %p422
      %p424 = scmp.ne.s32.totalorder %s413, %s416
      %p425 = scmp.eq.s32.totalorder %s43, 2
      %p426 = por %p424, %p425
      %p427 = scmp.ne.s32.totalorder %s416, %s417
      %p428 = scmp.eq.s32.totalorder %s43, 0
      %p429 = por %p427, %p428
      %p430 = scmp.ne.s32.totalorder %s416, %s417
      %p431 = scmp.eq.s32.totalorder %s44, 2
      %p432 = por %p430, %p431
      %p434 = scmp.ne.s32.totalorder %s417, %s433
      %p435 = scmp.eq.s32.totalorder %s44, 0
      %p436 = por %p434, %p435
      %s437 = ssub.s32 %s38, %s45
      %p438 = scmp.eq.s32.totalorder %s437, 0
      %s440 = sadd.s32 %s439, 1
      %s441 = scalar_select %p438, %s439, %s440
      %p444 = pneg %p438
      %p445 = scmp.eq.s32.totalorder %s38, 2
      %p446 = por %p444, %p445
      %p447 = scmp.ne.s32.totalorder %s439, %s442
      %p448 = scmp.eq.s32.totalorder %s38, 0
      %p449 = por %p447, %p448
      %p450 = scmp.ne.s32.totalorder %s439, %s442
      %p451 = scmp.eq.s32.totalorder %s43, 2
      %p452 = por %p450, %p451
      %p453 = scmp.ne.s32.totalorder %s442, %s443
      %p454 = scmp.eq.s32.totalorder %s43, 0
      %p455 = por %p453, %p454
      %p456 = scmp.ne.s32.totalorder %s442, %s443
      %p457 = scmp.eq.s32.totalorder %s44, 2
      %p458 = por %p456, %p457
      %p460 = scmp.ne.s32.totalorder %s443, %s459
      %p461 = scmp.eq.s32.totalorder %s44, 0
      %p462 = por %p460, %p461
      %s464 = sadd.s32 %s463, 1
      %p467 = scmp.eq.s32.totalorder %s38, 2
      %p468 = scmp.ne.s32.totalorder %s463, %s465
      %p469 = scmp.eq.s32.totalorder %s38, 0
      %p470 = por %p468, %p469
      %p471 = scmp.ne.s32.totalorder %s463, %s465
      %p472 = scmp.eq.s32.totalorder %s43, 2
      %p473 = por %p471, %p472
      %p474 = scmp.ne.s32.totalorder %s465, %s466
      %p475 = scmp.eq.s32.totalorder %s43, 0
      %p476 = por %p474, %p475
      %p477 = scmp.ne.s32.totalorder %s465, %s466
      %p478 = scmp.eq.s32.totalorder %s44, 2
      %p479 = por %p477, %p478
      %p481 = scmp.ne.s32.totalorder %s466, %s480
      %p482 = scmp.eq.s32.totalorder %s44, 0
      %p483 = por %p481, %p482
      %s485 = sadd.s32 %s484, 1
      %p488 = scmp.eq.s32.totalorder %s38, 2
      %p489 = scmp.ne.s32.totalorder %s484, %s486
      %p490 = scmp.eq.s32.totalorder %s38, 0
      %p491 = por %p489, %p490
      %p492 = scmp.ne.s32.totalorder %s484, %s486
      %p493 = scmp.eq.s32.totalorder %s43, 2
      %p494 = por %p492, %p493
      %p495 = scmp.ne.s32.totalorder %s486, %s487
      %p496 = scmp.eq.s32.totalorder %s43, 0
      %p497 = por %p495, %p496
      %p498 = scmp.ne.s32.totalorder %s486, %s487
      %p499 = scmp.eq.s32.totalorder %s44, 2
      %p500 = por %p498, %p499
      %p502 = scmp.ne.s32.totalorder %s487, %s501
      %p503 = scmp.eq.s32.totalorder %s44, 0
      %p504 = por %p502, %p503
      %s506 = sadd.s32 %s505, 1
      %p509 = scmp.eq.s32.totalorder %s38, 2
      %p510 = scmp.ne.s32.totalorder %s505, %s507
      %p511 = scmp.eq.s32.totalorder %s38, 0
      %p512 = por %p510, %p511
      %p513 = scmp.ne.s32.totalorder %s505, %s507
      %p514 = scmp.eq.s32.totalorder %s43, 2
      %p515 = por %p513, %p514
      %p516 = scmp.ne.s32.totalorder %s507, %s508
      %p517 = scmp.eq.s32.totalorder %s43, 0
      %p518 = por %p516, %p517
      %p519 = scmp.ne.s32.totalorder %s507, %s508
      %p520 = scmp.eq.s32.totalorder %s44, 2
      %p521 = por %p519, %p520
      %p523 = scmp.ne.s32.totalorder %s508, %s522
      %p524 = scmp.eq.s32.totalorder %s44, 0
      %p525 = por %p523, %p524
      %s527 = sadd.s32 %s526, 1
      %p530 = scmp.eq.s32.totalorder %s38, 2
      %p531 = scmp.ne.s32.totalorder %s526, %s528
      %p532 = scmp.eq.s32.totalorder %s38, 0
      %p533 = por %p531, %p532
      %p534 = scmp.ne.s32.totalorder %s526, %s528
      %p535 = scmp.eq.s32.totalorder %s43, 2
      %p536 = por %p534, %p535
      %p537 = scmp.ne.s32.totalorder %s528, %s529
      %p538 = scmp.eq.s32.totalorder %s43, 0
      %p539 = por %p537, %p538
      %p540 = scmp.ne.s32.totalorder %s528, %s529
      %p541 = scmp.eq.s32.totalorder %s44, 2
      %p542 = por %p540, %p541
      %p544 = scmp.ne.s32.totalorder %s529, %s543
      %p545 = scmp.eq.s32.totalorder %s44, 0
      %p546 = por %p544, %p545
      %s548 = sadd.s32 %s547, 1
      %p551 = scmp.eq.s32.totalorder %s38, 2
      %p552 = scmp.ne.s32.totalorder %s547, %s549
      %p553 = scmp.eq.s32.totalorder %s38, 0
      %p554 = por %p552, %p553
      %p555 = scmp.ne.s32.totalorder %s547, %s549
      %p556 = scmp.eq.s32.totalorder %s43, 2
      %p557 = por %p555, %p556
      %p558 = scmp.ne.s32.totalorder %s549, %s550
      %p559 = scmp.eq.s32.totalorder %s43, 0
      %p560 = por %p558, %p559
      %p561 = scmp.ne.s32.totalorder %s549, %s550
      %p562 = scmp.eq.s32.totalorder %s44, 2
      %p563 = por %p561, %p562
      %p565 = scmp.ne.s32.totalorder %s550, %s564
      %p566 = scmp.eq.s32.totalorder %s44, 0
      %p567 = por %p565, %p566
      %s569 = sadd.s32 %s568, 1
      %p572 = scmp.eq.s32.totalorder %s38, 2
      %p573 = scmp.ne.s32.totalorder %s568, %s570
      %p574 = scmp.eq.s32.totalorder %s38, 0
      %p575 = por %p573, %p574
      %p576 = scmp.ne.s32.totalorder %s568, %s570
      %p577 = scmp.eq.s32.totalorder %s43, 2
      %p578 = por %p576, %p577
      %p579 = scmp.ne.s32.totalorder %s570, %s571
      %p580 = scmp.eq.s32.totalorder %s43, 0
      %p581 = por %p579, %p580
      %p582 = scmp.ne.s32.totalorder %s570, %s571
      %p583 = scmp.eq.s32.totalorder %s44, 2
      %p584 = por %p582, %p583
      %p586 = scmp.ne.s32.totalorder %s571, %s585
      %p587 = scmp.eq.s32.totalorder %s44, 0
      %p588 = por %p586, %p587
      %s589 = ssub.s32 %s38, %s45
      %p590 = scmp.eq.s32.totalorder %s589, 0
      %s592 = sadd.s32 %s591, 1
      %s593 = scalar_select %p590, %s591, %s592
      %p596 = pneg %p590
      %p597 = scmp.eq.s32.totalorder %s38, 2
      %p598 = por %p596, %p597
      %p599 = scmp.ne.s32.totalorder %s591, %s594
      %p600 = scmp.eq.s32.totalorder %s38, 0
      %p601 = por %p599, %p600
      %p602 = scmp.ne.s32.totalorder %s591, %s594
      %p603 = scmp.eq.s32.totalorder %s43, 2
      %p604 = por %p602, %p603
      %p605 = scmp.ne.s32.totalorder %s594, %s595
      %p606 = scmp.eq.s32.totalorder %s43, 0
      %p607 = por %p605, %p606
      %p608 = scmp.ne.s32.totalorder %s594, %s595
      %p609 = scmp.eq.s32.totalorder %s44, 2
      %p610 = por %p608, %p609
      %p612 = scmp.ne.s32.totalorder %s595, %s611
      %p613 = scmp.eq.s32.totalorder %s44, 0
      %p614 = por %p612, %p613
      %p615 = scmp.le.s32.totalorder 1, %s38
      %p616 = scmp.lt.s32.totalorder %s38, 4
      %p617 = pnand %p615, %p616
      %p618 = pneg %p617
      // Predicated region
      $region9: #{advanced_neural_model.1} parent=5 // pred_check
        _
      $region10: #{advanced_neural_model.1} parent=5 // pred_check_branch
        %620 = sbr.rel (%p617) target = $region12
      $region11: #{advanced_neural_model.1} parent=5 // pred_region
        %s621 = ssub.s32 %s38, 1
        // Predicated region
        $region13: #{advanced_neural_model.1} parent=11 // pred_check
          %p622 = pneg %p59
        $region14: #{advanced_neural_model.1} parent=11 // pred_check_branch
          %624 = sbr.rel (%p622) target = $region16
        $region15: #{advanced_neural_model.1} parent=11 // pred_region
          _
        $region16: #{advanced_neural_model.1} parent=11 // pred_fallthru
          _
        // Predicated region
        $region17: #{advanced_neural_model.1} parent=11 // pred_check
          %p625 = pneg %p80
        $region18: #{advanced_neural_model.1} parent=11 // pred_check_branch
          %627 = sbr.rel (%p625) target = $region20
        $region19: #{advanced_neural_model.1} parent=11 // pred_region
          _
        $region20: #{advanced_neural_model.1} parent=11 // pred_fallthru
          _
        // Predicated region
        $region21: #{advanced_neural_model.1} parent=11 // pred_check
          %p628 = pneg %p101
        $region22: #{advanced_neural_model.1} parent=11 // pred_check_branch
          %630 = sbr.rel (%p628) target = $region24
        $region23: #{advanced_neural_model.1} parent=11 // pred_region
          _
        $region24: #{advanced_neural_model.1} parent=11 // pred_fallthru
          _
        // Predicated region
        $region25: #{advanced_neural_model.1} parent=11 // pred_check
          %p631 = pneg %p122
        $region26: #{advanced_neural_model.1} parent=11 // pred_check_branch
          %633 = sbr.rel (%p631) target = $region28
        $region27: #{advanced_neural_model.1} parent=11 // pred_region
          _
        $region28: #{advanced_neural_model.1} parent=11 // pred_fallthru
          _
        // Predicated region
        $region29: #{advanced_neural_model.1} parent=11 // pred_check
          %p634 = pneg %p143
        $region30: #{advanced_neural_model.1} parent=11 // pred_check_branch
          %636 = sbr.rel (%p634) target = $region32
        $region31: #{advanced_neural_model.1} parent=11 // pred_region
          _
        $region32: #{advanced_neural_model.1} parent=11 // pred_fallthru
          _
        // Predicated region
        $region33: #{advanced_neural_model.1} parent=11 // pred_check
          %p637 = pneg %p476
        $region34: #{advanced_neural_model.1} parent=11 // pred_check_branch
          %639 = sbr.rel (%p637) target = $region36
        $region35: #{advanced_neural_model.1} parent=11 // pred_region
          _
        $region36: #{advanced_neural_model.1} parent=11 // pred_fallthru
          _
        // Predicated region
        $region37: #{advanced_neural_model.1} parent=11 // pred_check
          %p640 = pneg %p497
        $region38: #{advanced_neural_model.1} parent=11 // pred_check_branch
          %642 = sbr.rel (%p640) target = $region40
        $region39: #{advanced_neural_model.1} parent=11 // pred_region
          _
        $region40: #{advanced_neural_model.1} parent=11 // pred_fallthru
          _
        // Predicated region
        $region41: #{advanced_neural_model.1} parent=11 // pred_check
          %p643 = pneg %p518
        $region42: #{advanced_neural_model.1} parent=11 // pred_check_branch
          %645 = sbr.rel (%p643) target = $region44
        $region43: #{advanced_neural_model.1} parent=11 // pred_region
          _
        $region44: #{advanced_neural_model.1} parent=11 // pred_fallthru
          _
        // Predicated region
        $region45: #{advanced_neural_model.1} parent=11 // pred_check
          %p646 = pneg %p539
        $region46: #{advanced_neural_model.1} parent=11 // pred_check_branch
          %648 = sbr.rel (%p646) target = $region48
        $region47: #{advanced_neural_model.1} parent=11 // pred_region
          _
        $region48: #{advanced_neural_model.1} parent=11 // pred_fallthru
          _
      $region12: #{advanced_neural_model.1} parent=5 // pred_fallthru
        _
      %p649 = scmp.lt.s32.totalorder %s38, 3
      // Predicated region
      $region49: #{advanced_neural_model.1} parent=5 // pred_check
        %p650 = pneg %p649
      $region50: #{advanced_neural_model.1} parent=5 // pred_check_branch
        %652 = sbr.rel (%p650) target = $region52
      $region51: #{advanced_neural_model.1} parent=5 // pred_region
        // Predicated region
        $region53: #{advanced_neural_model.1} parent=51 // pred_check
          %p653 = pneg %p163
        $region54: #{advanced_neural_model.1} parent=51 // pred_check_branch
          %655 = sbr.rel (%p653) target = $region56
        $region55: #{advanced_neural_model.1} parent=51 // pred_region
          %p656 = scmp.lt.s32.totalorder %s38, 2
          %s657 = scalar_select %p656, %s38, 2
          %s658 = scalar_lea.vmem %s5, %s657
        $region56: #{advanced_neural_model.1} parent=51 // pred_fallthru
          _
        // Predicated region
        $region57: #{advanced_neural_model.1} parent=51 // pred_check
          %p659 = pneg %p189
        $region58: #{advanced_neural_model.1} parent=51 // pred_check_branch
          %661 = sbr.rel (%p659) target = $region60
        $region59: #{advanced_neural_model.1} parent=51 // pred_region
          %p662 = scmp.lt.s32.totalorder %s38, 2
          %s663 = scalar_select %p662, %s38, 2
          %s664 = scalar_lea.vmem %s6, %s663
        $region60: #{advanced_neural_model.1} parent=51 // pred_fallthru
          _
        // Predicated region
        $region61: #{advanced_neural_model.1} parent=51 // pred_check
          %p665 = pneg %p215
        $region62: #{advanced_neural_model.1} parent=51 // pred_check_branch
          %667 = sbr.rel (%p665) target = $region64
        $region63: #{advanced_neural_model.1} parent=51 // pred_region
          %s668 = sand.u32 %s205, 1
          %s669 = scalar_lea.sflag [#allocation4], %s668
          %s670 = sand.u32 %s205, 1
          %s671 = smul.addr %s670, 192
          %s672 = scalar_lea.vmem [#allocation3], %s671
          %s674 = ssub.s32 3072, 3072
          %675 = vsyncadd %s669, %s674
          %s676 = smul.addr %s38, 48
          %s677 = smul.addr %s676, 64
          %s678 = scalar_lea.hbm %s7, %s677
          %s679 = sshll.u32 %s672, 4
          %s680 = int_to_ptr.vmem [resolvable:$true] %s679
          %685 = dma.hbm_to_vmem [thread:$0]  %s678, 3072, %s680, %s669, 192, 192, 12
        $region64: #{advanced_neural_model.1} parent=51 // pred_fallthru
          _
        // Predicated region
        $region65: #{advanced_neural_model.1} parent=51 // pred_check
          %p686 = pneg %p241
        $region66: #{advanced_neural_model.1} parent=51 // pred_check_branch
          %688 = sbr.rel (%p686) target = $region68
        $region67: #{advanced_neural_model.1} parent=51 // pred_region
          %p689 = scmp.lt.s32.totalorder %s38, 2
          %s690 = scalar_select %p689, %s38, 2
          %s691 = smul.addr %s690, 3
          %s692 = scalar_lea.vmem %s8, %s691
        $region68: #{advanced_neural_model.1} parent=51 // pred_fallthru
          _
        // Predicated region
        $region69: #{advanced_neural_model.1} parent=51 // pred_check
          %p693 = pneg %p267
        $region70: #{advanced_neural_model.1} parent=51 // pred_check_branch
          %695 = sbr.rel (%p693) target = $region72
        $region71: #{advanced_neural_model.1} parent=51 // pred_region
          %p696 = scmp.lt.s32.totalorder %s38, 2
          %s697 = scalar_select %p696, %s38, 2
          %s698 = smul.addr %s697, 16
          %s699 = smul.addr %s698, 4
          %s700 = scalar_lea.vmem %s9, %s699
        $region72: #{advanced_neural_model.1} parent=51 // pred_fallthru
          _
        // Predicated region
        $region73: #{advanced_neural_model.1} parent=51 // pred_check
          %p701 = pneg %p293
        $region74: #{advanced_neural_model.1} parent=51 // pred_check_branch
          %703 = sbr.rel (%p701) target = $region76
        $region75: #{advanced_neural_model.1} parent=51 // pred_region
          %p704 = scmp.lt.s32.totalorder %s38, 2
          %s705 = scalar_select %p704, %s38, 2
          %s706 = scalar_lea.vmem %s10, %s705
        $region76: #{advanced_neural_model.1} parent=51 // pred_fallthru
          _
        // Predicated region
        $region77: #{advanced_neural_model.1} parent=51 // pred_check
          %p707 = pneg %p319
        $region78: #{advanced_neural_model.1} parent=51 // pred_check_branch
          %709 = sbr.rel (%p707) target = $region80
        $region79: #{advanced_neural_model.1} parent=51 // pred_region
          %p710 = scmp.lt.s32.totalorder %s38, 2
          %s711 = scalar_select %p710, %s38, 2
          %s712 = scalar_lea.vmem %s11, %s711
        $region80: #{advanced_neural_model.1} parent=51 // pred_fallthru
          _
        // Predicated region
        $region81: #{advanced_neural_model.1} parent=51 // pred_check
          %p713 = pneg %p345
        $region82: #{advanced_neural_model.1} parent=51 // pred_check_branch
          %715 = sbr.rel (%p713) target = $region84
        $region83: #{advanced_neural_model.1} parent=51 // pred_region
          %p716 = scmp.lt.s32.totalorder %s38, 2
          %s717 = scalar_select %p716, %s38, 2
          %s718 = scalar_lea.vmem %s12, %s717
        $region84: #{advanced_neural_model.1} parent=51 // pred_fallthru
          _
        // Predicated region
        $region85: #{advanced_neural_model.1} parent=51 // pred_check
          %p719 = pneg %p371
        $region86: #{advanced_neural_model.1} parent=51 // pred_check_branch
          %721 = sbr.rel (%p719) target = $region88
        $region87: #{advanced_neural_model.1} parent=51 // pred_region
          %s722 = sand.u32 %s38, 1
          %s723 = scalar_lea.sflag [#allocation7], %s722
          %s724 = sand.u32 %s361, 1
          %s725 = smul.addr %s724, 256
          %s726 = scalar_lea.vmem [#allocation6], %s725
          %s728 = ssub.s32 4096, 4096
          %729 = vsyncadd %s723, %s728
          %s730 = smul.addr %s38, 64
          %s731 = smul.addr %s730, 64
          %s732 = scalar_lea.hbm %s13, %s731
          %s733 = sshll.u32 %s726, 4
          %s734 = int_to_ptr.vmem [resolvable:$true] %s733
          %739 = dma.hbm_to_vmem [thread:$0]  %s732, 4096, %s734, %s723, 256, 256, 16
        $region88: #{advanced_neural_model.1} parent=51 // pred_fallthru
          _
        // Predicated region
        $region89: #{advanced_neural_model.1} parent=51 // pred_check
          %p740 = pneg %p397
        $region90: #{advanced_neural_model.1} parent=51 // pred_check_branch
          %742 = sbr.rel (%p740) target = $region92
        $region91: #{advanced_neural_model.1} parent=51 // pred_region
          %p743 = scmp.lt.s32.totalorder %s38, 2
          %s744 = scalar_select %p743, %s38, 2
          %s745 = smul.addr %s744, 4
          %s746 = scalar_lea.vmem %s14, %s745
        $region92: #{advanced_neural_model.1} parent=51 // pred_fallthru
          _
        // Predicated region
        $region93: #{advanced_neural_model.1} parent=51 // pred_check
          %p747 = pneg %p423
        $region94: #{advanced_neural_model.1} parent=51 // pred_check_branch
          %749 = sbr.rel (%p747) target = $region96
        $region95: #{advanced_neural_model.1} parent=51 // pred_region
          %s750 = sand.u32 %s38, 1
          %s751 = scalar_lea.sflag [#allocation7], %s750
          %s752 = sand.u32 %s413, 1
          %s753 = smul.addr %s752, 256
          %s754 = scalar_lea.vmem [#allocation8], %s753
          %s756 = ssub.s32 4096, 4096
          %757 = vsyncadd %s751, %s756
          %s758 = smul.addr %s38, 64
          %s759 = smul.addr %s758, 64
          %s760 = scalar_lea.hbm %s15, %s759
          %s761 = sshll.u32 %s754, 4
          %s762 = int_to_ptr.vmem [resolvable:$true] %s761
          %767 = dma.hbm_to_vmem [thread:$0]  %s760, 4096, %s762, %s751, 64, 64, 4
        $region96: #{advanced_neural_model.1} parent=51 // pred_fallthru
          _
        // Predicated region
        $region97: #{advanced_neural_model.1} parent=51 // pred_check
          %p768 = pneg %p449
        $region98: #{advanced_neural_model.1} parent=51 // pred_check_branch
          %770 = sbr.rel (%p768) target = $region100
        $region99: #{advanced_neural_model.1} parent=51 // pred_region
          %p771 = scmp.lt.s32.totalorder %s38, 2
          %s772 = scalar_select %p771, %s38, 2
          %s773 = scalar_lea.vmem %s16, %s772
        $region100: #{advanced_neural_model.1} parent=51 // pred_fallthru
          _
      $region52: #{advanced_neural_model.1} parent=5 // pred_fallthru
        _
      %p774 = scmp.le.s32.totalorder 1, %s38
      %p775 = scmp.lt.s32.totalorder %s38, 4
      %p776 = pnand %p774, %p775
      %p777 = pneg %p776
      // Predicated region
      $region101: #{advanced_neural_model.1} parent=5 // pred_check
        _
      $region102: #{advanced_neural_model.1} parent=5 // pred_check_branch
        %779 = sbr.rel (%p776) target = $region104
      $region103: #{advanced_neural_model.1} parent=5 // pred_region
        %s780 = ssub.s32 %s38, 1
        %s781 = sand.u32 %s208, 1
        %s782 = scalar_lea.sflag [#allocation4], %s781
        %s783 = sand.u32 %s208, 1
        %s784 = smul.addr %s783, 192
        %s785 = scalar_lea.vmem [#allocation3], %s784
        // Predicated region
        $region105: #{advanced_neural_model.1} parent=103 // pred_check
          %p786 = pneg %p221
        $region106: #{advanced_neural_model.1} parent=103 // pred_check_branch
          %788 = sbr.rel (%p786) target = $region108
        $region107: #{advanced_neural_model.1} parent=103 // pred_region
          %789 = dma.done %s782, 3072
        $region108: #{advanced_neural_model.1} parent=103 // pred_fallthru
          _
        %s790 = sand.u32 %s43, 1
        %s791 = scalar_lea.sflag [#allocation7], %s790
        %s792 = sand.u32 %s364, 1
        %s793 = smul.addr %s792, 256
        %s794 = scalar_lea.vmem [#allocation6], %s793
        // Predicated region
        $region109: #{advanced_neural_model.1} parent=103 // pred_check
          %p795 = pneg %p377
        $region110: #{advanced_neural_model.1} parent=103 // pred_check_branch
          %797 = sbr.rel (%p795) target = $region112
        $region111: #{advanced_neural_model.1} parent=103 // pred_region
          %798 = dma.done %s791, 4096
        $region112: #{advanced_neural_model.1} parent=103 // pred_fallthru
          _
        %s799 = sand.u32 %s43, 1
        %s800 = scalar_lea.sflag [#allocation7], %s799
        %s801 = sand.u32 %s416, 1
        %s802 = smul.addr %s801, 256
        %s803 = scalar_lea.vmem [#allocation8], %s802
        // Predicated region
        $region113: #{advanced_neural_model.1} parent=103 // pred_check
          %p804 = pneg %p429
        $region114: #{advanced_neural_model.1} parent=103 // pred_check_branch
          %806 = sbr.rel (%p804) target = $region116
        $region115: #{advanced_neural_model.1} parent=103 // pred_region
          %807 = dma.done %s800, 4096
        $region116: #{advanced_neural_model.1} parent=103 // pred_fallthru
          _
        %p808 = pneg %p59
        %p809 = pneg %p56
        %p810 = pneg %p80
        %p811 = pneg %p77
        %p812 = pneg %p101
        %p813 = pneg %p98
        %p814 = pneg %p122
        %p815 = pneg %p119
        %p816 = pneg %p143
        %p817 = pneg %p140
        %p818 = scmp.lt.s32.totalorder %s43, 2
        %s819 = scalar_select %p818, %s43, 2
        %s820 = scalar_lea.vmem %s5, %s819
        %p821 = pneg %p169
        %p822 = pneg %p166
        %p823 = scmp.lt.s32.totalorder %s43, 2
        %s824 = scalar_select %p823, %s43, 2
        %s825 = scalar_lea.vmem %s6, %s824
        %p826 = pneg %p195
        %p827 = pneg %p192
        %s828 = sand.u32 %s208, 1
        %s829 = scalar_lea.sflag [#allocation4], %s828
        %s830 = sand.u32 %s208, 1
        %s831 = smul.addr %s830, 192
        %s832 = scalar_lea.vmem [#allocation3], %s831
        %p833 = pneg %p221
        %p834 = pneg %p218
        %p835 = scmp.lt.s32.totalorder %s43, 2
        %s836 = scalar_select %p835, %s43, 2
        %s837 = smul.addr %s836, 3
        %s838 = scalar_lea.vmem %s8, %s837
        %p839 = pneg %p247
        %p840 = pneg %p244
        %p841 = scmp.lt.s32.totalorder %s43, 2
        %s842 = scalar_select %p841, %s43, 2
        %s843 = smul.addr %s842, 16
        %s844 = smul.addr %s843, 4
        %s845 = scalar_lea.vmem %s9, %s844
        %p846 = pneg %p273
        %p847 = pneg %p270
        %p848 = scmp.lt.s32.totalorder %s43, 2
        %s849 = scalar_select %p848, %s43, 2
        %s850 = scalar_lea.vmem %s10, %s849
        %p851 = pneg %p299
        %p852 = pneg %p296
        %p853 = scmp.lt.s32.totalorder %s43, 2
        %s854 = scalar_select %p853, %s43, 2
        %s855 = scalar_lea.vmem %s11, %s854
        %p856 = pneg %p325
        %p857 = pneg %p322
        %p858 = scmp.lt.s32.totalorder %s43, 2
        %s859 = scalar_select %p858, %s43, 2
        %s860 = scalar_lea.vmem %s12, %s859
        %p861 = pneg %p351
        %p862 = pneg %p348
        %s863 = sand.u32 %s43, 1
        %s864 = scalar_lea.sflag [#allocation7], %s863
        %s865 = sand.u32 %s364, 1
        %s866 = smul.addr %s865, 256
        %s867 = scalar_lea.vmem [#allocation6], %s866
        %p868 = pneg %p377
        %p869 = pneg %p374
        %p870 = scmp.lt.s32.totalorder %s43, 2
        %s871 = scalar_select %p870, %s43, 2
        %s872 = smul.addr %s871, 4
        %s873 = scalar_lea.vmem %s14, %s872
        %p874 = pneg %p403
        %p875 = pneg %p400
        %s876 = sand.u32 %s43, 1
        %s877 = scalar_lea.sflag [#allocation7], %s876
        %s878 = sand.u32 %s416, 1
        %s879 = smul.addr %s878, 256
        %s880 = scalar_lea.vmem [#allocation8], %s879
        %p881 = pneg %p429
        %p882 = pneg %p426
        %p883 = scmp.lt.s32.totalorder %s43, 2
        %s884 = scalar_select %p883, %s43, 2
        %s885 = scalar_lea.vmem %s16, %s884
        %p886 = pneg %p455
        %p887 = pneg %p452
        %p888 = pneg %p476
        %p889 = pneg %p473
        %p890 = pneg %p497
        %p891 = pneg %p494
        %p892 = pneg %p518
        %p893 = pneg %p515
        %p894 = pneg %p539
        %p895 = pneg %p536
        %p896 = pneg %p560
        %p897 = pneg %p557
        %p898 = pneg %p581
        %p899 = pneg %p578
        %p900 = pneg %p607
        %p901 = pneg %p604
        %p902 = scmp.lt.s32.totalorder %s43, 2
        %s903 = scalar_select %p902, %s43, 2
        %s904 = smul.addr %s903, 16
        %s905 = smul.addr %s904, 8
        %s906 = scalar_lea.vmem %s23, %s905
        %p907 = scmp.lt.s32.totalorder %s43, 2
        %s908 = scalar_select %p907, %s43, 2
        %s909 = scalar_lea.vmem %s5, %s908
        %p910 = scmp.lt.s32.totalorder %s43, 2
        %s911 = scalar_select %p910, %s43, 2
        %s912 = scalar_lea.vmem %s6, %s911
        %p913 = scmp.lt.s32.totalorder %s43, 2
        %s914 = scalar_select %p913, %s43, 2
        %s915 = smul.addr %s914, 3
        %s916 = scalar_lea.vmem %s8, %s915
        %p917 = scmp.lt.s32.totalorder %s43, 2
        %s918 = scalar_select %p917, %s43, 2
        %s919 = smul.addr %s918, 16
        %s920 = smul.addr %s919, 4
        %s921 = scalar_lea.vmem %s9, %s920
        %p922 = scmp.lt.s32.totalorder %s43, 2
        %s923 = scalar_select %p922, %s43, 2
        %s924 = scalar_lea.vmem %s10, %s923
        %p925 = scmp.lt.s32.totalorder %s43, 2
        %s926 = scalar_select %p925, %s43, 2
        %s927 = scalar_lea.vmem %s11, %s926
        %p928 = scmp.lt.s32.totalorder %s43, 2
        %s929 = scalar_select %p928, %s43, 2
        %s930 = scalar_lea.vmem %s12, %s929
        %p931 = scmp.lt.s32.totalorder %s43, 2
        %s932 = scalar_select %p931, %s43, 2
        %s933 = smul.addr %s932, 4
        %s934 = scalar_lea.vmem %s14, %s933
        %p935 = scmp.lt.s32.totalorder %s43, 2
        %s936 = scalar_select %p935, %s43, 2
        %s937 = scalar_lea.vmem %s16, %s936
        %p938 = scmp.lt.s32.totalorder %s43, 2
        %s939 = scalar_select %p938, %s43, 2
        %s940 = smul.addr %s939, 16
        %s941 = smul.addr %s940, 8
        %s942 = scalar_lea.vmem %s23, %s941
        %p944 = scmp.eq.s32.totalorder %s43, 0
        // Predicated region
        $region117: #{advanced_neural_model.1} parent=103 // pred_check
          %p945 = pneg %p944
        $region118: #{advanced_neural_model.1} parent=103 // pred_check_branch
          %947 = sbr.rel (%p945) target = $region120
        $region119: #{advanced_neural_model.1} parent=103 // pred_region
          %v948 = vld [vmem:[%s0] sm:$0xff]
          %v949 = vld [vmem:[%s0 + $0x8] sm:$0xff]
          %v950 = vld [vmem:[%s1] sm:$0xf]
          %v951 = vld [vmem:[%s1 + $0x4] sm:$0xf]
          %v952 = vld [vmem:[%s1 + $0x8] sm:$0xf]
          %v953 = vld [vmem:[%s1 + $0xc] sm:$0xf]
          %v954 = vpack.c.bf16 %v949, %v948
          %v955 = vld [vmem:[%s2] sm:$0x1]
          %v957 = vlaneseq
          %v958 = vshrl.u32 %v957, 7
          %v959 = vsub.s32 0, %v958
          %v960 = vrot.slane %v955, %v959
          %v966 = vunpack.c.l.b16 %v950
          %v967 = vunpack.c.l.b16 %v951
          %v968 = vunpack.c.l.b16 %v952
          %v969 = vunpack.c.l.b16 %v953
          %v970 = vpack.c.b16 %v967, %v966
          %v971 = vpack.c.b16 %v969, %v968
          %vm974 = vcmask 261120
          %v976 = vsel %vm974, %v954, 0
          %978 = vmatprep.subr.bf16.mxu0 0
          %979 = vmatpush1.bf16.msra.mxu0 %v970
          %980 = vmatprep.subr.bf16.mxu0 0
          %981 = vmatpush1.bf16.msra.mxu0 %v971
          %982 = vmatprep.subr.bf16.mxu0 0
          %983 = vmatpush1.bf16.msra.mxu0 0
          %984 = vmatprep.subr.bf16.mxu0 0
          %985 = vmatpush1.bf16.msra.mxu0 0
          %986 = vmatprep.subr.bf16.mxu0 0
          %987 = vmatpush1.bf16.msra.mxu0 0
          %988 = vmatprep.subr.bf16.mxu0 0
          %989 = vmatpush1.bf16.msra.mxu0 0
          %990 = vmatprep.subr.bf16.mxu0 0
          %991 = vmatpush1.bf16.msra.mxu0 0
          %992 = vmatprep.subr.bf16.mxu0 0
          %993 = vmatpush1.bf16.msra.mxu0 0
          %994 = vmatprep.subr.bf16.mxu0 0
          %995 = vmatpush1.bf16.msra.mxu0 0
          %996 = vmatprep.subr.bf16.mxu0 0
          %997 = vmatpush1.bf16.msra.mxu0 0
          %998 = vmatprep.subr.bf16.mxu0 0
          %999 = vmatpush1.bf16.msra.mxu0 0
          %1000 = vmatprep.subr.bf16.mxu0 0
          %1001 = vmatpush1.bf16.msra.mxu0 0
          %1002 = vmatprep.subr.bf16.mxu0 0
          %1003 = vmatpush1.bf16.msra.mxu0 0
          %1004 = vmatprep.subr.bf16.mxu0 0
          %1005 = vmatpush1.bf16.msra.mxu0 0
          %1006 = vmatprep.subr.bf16.mxu0 0
          %1007 = vmatpush1.bf16.msra.mxu0 0
          %1008 = vmatprep.subr.bf16.mxu0 0
          %1009 = vmatpush1.bf16.msra.mxu0 0
          %1010 = vmatprep.mubr.bf16.mxu0 0
          %1011 = vmatmul.mubr.bf16.gmra.mrb[0].mxu0 %v976
          %v1012 = vpop.f32.mrb[0].mxu0
          %v1013 = vadd.f32 %v960, %v1012
          %v1014 = vpop.f32.mrb[0].mxu0
          %v1015 = vpop.f32.mrb[0].mxu0
          %v1016 = vadd.f32 %v960, %v1015
          %v1017 = vpop.f32.mrb[0].mxu0
          %1018 = vdwg.mxu0
          %v1019 = vld [vmem:[%s3] sm:$0x1]
          %v1020 = vld [vmem:[%s4] sm:$0x1]
          %1021 = vadd.xlane.f32.xlu0 %v1013
          %v1022 = vpop.xlane.xlu0 %1021
          %1023 = vadd.xlane.f32.xlu0 %v1016
          %v1024 = vpop.xlane.xlu0 %1023
          %v1025 = vrcp.pop 128.0
          %v1026 = vmul.f32 %v1022, %v1025
          %v1027 = vmul.f32 %v1024, %v1025
          %v1028 = vsub.f32 %v1013, %v1026
          %v1029 = vsub.f32 %v1016, %v1027
          %v1030 = vmul.f32 %v1028, %v1028
          %v1031 = vmul.f32 %v1029, %v1029
          %1032 = vadd.xlane.f32.xlu0 %v1030
          %v1033 = vpop.xlane.xlu0 %1032
          %1034 = vadd.xlane.f32.xlu0 %v1031
          %v1035 = vpop.xlane.xlu0 %1034
          %v1036 = vmul.f32 %v1033, %v1025
          %v1037 = vmul.f32 %v1035, %v1025
          %v1038 = vadd.f32 %v1036, 1e-05
          %v1039 = vadd.f32 %v1037, 1e-05
          %v1040 = vrsqrt.pop %v1038
          %v1041 = vrsqrt.pop %v1039
          %v1042 = vmul.f32 %v1028, %v1040
          %v1043 = vmul.f32 %v1029, %v1041
          %v1045 = vlaneseq
          %v1046 = vshrl.u32 %v1045, 7
          %v1047 = vsub.s32 0, %v1046
          %v1048 = vrot.slane %v1019, %v1047
          %v1050 = vmul.f32 %v1042, %v1048
          %v1051 = vmul.f32 %v1043, %v1048
          %v1053 = vlaneseq
          %v1054 = vshrl.u32 %v1053, 7
          %v1055 = vsub.s32 0, %v1054
          %v1056 = vrot.slane %v1020, %v1055
          %v1058 = vadd.f32 %v1050, %v1056
          %v1059 = vadd.f32 %v1051, %v1056
          %v1060 = vmul.f32 %v1058, 0.5
          %v1061 = vmul.f32 %v1059, 0.5
          %v1062 = vmul.f32 %v1058, 0.70710677
          %v1063 = vmul.f32 %v1059, 0.70710677
          %v1064 = verf.f32.pop %v1062
          %v1065 = verf.f32.pop %v1063
          %v1066 = vadd.f32 %v1064, 1.0
          %v1067 = vadd.f32 %v1065, 1.0
          %v1068 = vmul.f32 %v1060, %v1066
          %v1069 = vmul.f32 %v1061, %v1067
          %1070 = vst [vmem:[#allocation2] sm:$0xff] %v1068
          %1071 = vst [vmem:[#allocation2 + $0x8] sm:$0xff] %v1069
        $region120: #{advanced_neural_model.1} parent=103 // pred_fallthru
          _
        %v1072 = vld [vmem:[#allocation2] sm:$0xff]
        %v1073 = vld [vmem:[#allocation2 + $0x8] sm:$0xff]
        %v1074 = vld [vmem:[%s909] sm:$0x1]
        %v1075 = vld [vmem:[%s912] sm:$0x1]
        %1076 = vadd.xlane.f32.xlu0 %v1072
        %v1077 = vpop.xlane.xlu0 %1076
        %1078 = vadd.xlane.f32.xlu0 %v1073
        %v1079 = vpop.xlane.xlu0 %1078
        %v1080 = vrcp.pop 128.0
        %v1081 = vmul.f32 %v1077, %v1080
        %v1082 = vmul.f32 %v1079, %v1080
        %v1083 = vsub.f32 %v1072, %v1081
        %v1084 = vsub.f32 %v1073, %v1082
        %v1085 = vmul.f32 %v1083, %v1083
        %v1086 = vmul.f32 %v1084, %v1084
        %1087 = vadd.xlane.f32.xlu0 %v1085
        %v1088 = vpop.xlane.xlu0 %1087
        %1089 = vadd.xlane.f32.xlu0 %v1086
        %v1090 = vpop.xlane.xlu0 %1089
        %v1091 = vmul.f32 %v1088, %v1080
        %v1092 = vmul.f32 %v1090, %v1080
        %v1093 = vadd.f32 %v1091, 1e-05
        %v1094 = vadd.f32 %v1092, 1e-05
        %v1095 = vrsqrt.pop %v1093
        %v1096 = vrsqrt.pop %v1094
        %v1097 = vmul.f32 %v1083, %v1095
        %v1098 = vmul.f32 %v1084, %v1096
        %v1100 = vlaneseq
        %v1101 = vshrl.u32 %v1100, 7
        %v1102 = vsub.s32 0, %v1101
        %v1103 = vrot.slane %v1074, %v1102
        %v1105 = vmul.f32 %v1097, %v1103
        %v1106 = vmul.f32 %v1098, %v1103
        %v1108 = vlaneseq
        %v1109 = vshrl.u32 %v1108, 7
        %v1110 = vsub.s32 0, %v1109
        %v1111 = vrot.slane %v1075, %v1110
        %v1113 = vadd.f32 %v1105, %v1111
        %v1114 = vadd.f32 %v1106, %v1111
        %v1115 = vld [vmem:[%s785] sm:$0xff]
        %v1116 = vld [vmem:[%s785 + $0x8] sm:$0xf]
        %v1117 = vld [vmem:[%s785 + $0xc] sm:$0xff]
        %v1118 = vld [vmem:[%s785 + $0x14] sm:$0xf]
        %v1119 = vld [vmem:[%s785 + $0x18] sm:$0xff]
        %v1120 = vld [vmem:[%s785 + $0x20] sm:$0xf]
        %v1121 = vld [vmem:[%s785 + $0x24] sm:$0xff]
        %v1122 = vld [vmem:[%s785 + $0x2c] sm:$0xf]
        %v1123 = vld [vmem:[%s785 + $0x30] sm:$0xff]
        %v1124 = vld [vmem:[%s785 + $0x38] sm:$0xf]
        %v1125 = vld [vmem:[%s785 + $0x3c] sm:$0xff]
        %v1126 = vld [vmem:[%s785 + $0x44] sm:$0xf]
        %v1127 = vld [vmem:[%s785 + $0x48] sm:$0xff]
        %v1128 = vld [vmem:[%s785 + $0x50] sm:$0xf]
        %v1129 = vld [vmem:[%s785 + $0x54] sm:$0xff]
        %v1130 = vld [vmem:[%s785 + $0x5c] sm:$0xf]
        %v1131 = vld [vmem:[%s785 + $0x60] sm:$0xff]
        %v1132 = vld [vmem:[%s785 + $0x68] sm:$0xf]
        %v1133 = vld [vmem:[%s785 + $0x6c] sm:$0xff]
        %v1134 = vld [vmem:[%s785 + $0x74] sm:$0xf]
        %v1135 = vld [vmem:[%s785 + $0x78] sm:$0xff]
        %v1136 = vld [vmem:[%s785 + $0x80] sm:$0xf]
        %v1137 = vld [vmem:[%s785 + $0x84] sm:$0xff]
        %v1138 = vld [vmem:[%s785 + $0x8c] sm:$0xf]
        %v1139 = vld [vmem:[%s785 + $0x90] sm:$0xff]
        %v1140 = vld [vmem:[%s785 + $0x98] sm:$0xf]
        %v1141 = vld [vmem:[%s785 + $0x9c] sm:$0xff]
        %v1142 = vld [vmem:[%s785 + $0xa4] sm:$0xf]
        %v1143 = vld [vmem:[%s785 + $0xa8] sm:$0xff]
        %v1144 = vld [vmem:[%s785 + $0xb0] sm:$0xf]
        %v1145 = vld [vmem:[%s785 + $0xb4] sm:$0xff]
        %v1146 = vld [vmem:[%s785 + $0xbc] sm:$0xf]
        %v1147 = vpack.c.bf16 %v1114, %v1113
        %v1148 = vld [vmem:[%s916] sm:$0x7]
        %v1150 = vlaneseq
        %v1151 = vshrl.u32 %v1150, 7
        %v1152 = vsub.s32 0, %v1151
        %v1153 = vrot.slane %v1148, %v1152
        %v1154 = vlaneseq
        %v1155 = vshrl.u32 %v1154, 7
        %v1156 = vsub.s32 1, %v1155
        %v1157 = vrot.slane %v1148, %v1156
        %v1158 = vlaneseq
        %v1159 = vshrl.u32 %v1158, 7
        %v1160 = vsub.s32 2, %v1159
        %v1161 = vrot.slane %v1148, %v1160
        %v1197 = vunpack.c.l.b16 %v1115
        %v1198 = vunpack.c.h.b16 %v1115
        %v1199 = vunpack.c.l.b16 %v1116
        %v1200 = vunpack.c.l.b16 %v1117
        %v1201 = vunpack.c.h.b16 %v1117
        %v1202 = vunpack.c.l.b16 %v1118
        %v1203 = vunpack.c.l.b16 %v1119
        %v1204 = vunpack.c.h.b16 %v1119
        %v1205 = vunpack.c.l.b16 %v1120
        %v1206 = vunpack.c.l.b16 %v1121
        %v1207 = vunpack.c.h.b16 %v1121
        %v1208 = vunpack.c.l.b16 %v1122
        %v1209 = vunpack.c.l.b16 %v1123
        %v1210 = vunpack.c.h.b16 %v1123
        %v1211 = vunpack.c.l.b16 %v1124
        %v1212 = vunpack.c.l.b16 %v1125
        %v1213 = vunpack.c.h.b16 %v1125
        %v1214 = vunpack.c.l.b16 %v1126
        %v1215 = vunpack.c.l.b16 %v1127
        %v1216 = vunpack.c.h.b16 %v1127
        %v1217 = vunpack.c.l.b16 %v1128
        %v1218 = vunpack.c.l.b16 %v1129
        %v1219 = vunpack.c.h.b16 %v1129
        %v1220 = vunpack.c.l.b16 %v1130
        %v1221 = vunpack.c.l.b16 %v1131
        %v1222 = vunpack.c.h.b16 %v1131
        %v1223 = vunpack.c.l.b16 %v1132
        %v1224 = vunpack.c.l.b16 %v1133
        %v1225 = vunpack.c.h.b16 %v1133
        %v1226 = vunpack.c.l.b16 %v1134
        %v1227 = vunpack.c.l.b16 %v1135
        %v1228 = vunpack.c.h.b16 %v1135
        %v1229 = vunpack.c.l.b16 %v1136
        %v1230 = vunpack.c.l.b16 %v1137
        %v1231 = vunpack.c.h.b16 %v1137
        %v1232 = vunpack.c.l.b16 %v1138
        %v1233 = vunpack.c.l.b16 %v1139
        %v1234 = vunpack.c.h.b16 %v1139
        %v1235 = vunpack.c.l.b16 %v1140
        %v1236 = vunpack.c.l.b16 %v1141
        %v1237 = vunpack.c.h.b16 %v1141
        %v1238 = vunpack.c.l.b16 %v1142
        %v1239 = vunpack.c.l.b16 %v1143
        %v1240 = vunpack.c.h.b16 %v1143
        %v1241 = vunpack.c.l.b16 %v1144
        %v1242 = vunpack.c.l.b16 %v1145
        %v1243 = vunpack.c.h.b16 %v1145
        %v1244 = vunpack.c.l.b16 %v1146
        %v1245 = vpack.c.b16 %v1200, %v1197
        %v1246 = vpack.c.b16 %v1201, %v1198
        %v1247 = vpack.c.b16 %v1202, %v1199
        %v1248 = vpack.c.b16 %v1206, %v1203
        %v1249 = vpack.c.b16 %v1207, %v1204
        %v1250 = vpack.c.b16 %v1208, %v1205
        %v1251 = vpack.c.b16 %v1212, %v1209
        %v1252 = vpack.c.b16 %v1213, %v1210
        %v1253 = vpack.c.b16 %v1214, %v1211
        %v1254 = vpack.c.b16 %v1218, %v1215
        %v1255 = vpack.c.b16 %v1219, %v1216
        %v1256 = vpack.c.b16 %v1220, %v1217
        %v1257 = vpack.c.b16 %v1224, %v1221
        %v1258 = vpack.c.b16 %v1225, %v1222
        %v1259 = vpack.c.b16 %v1226, %v1223
        %v1260 = vpack.c.b16 %v1230, %v1227
        %v1261 = vpack.c.b16 %v1231, %v1228
        %v1262 = vpack.c.b16 %v1232, %v1229
        %v1263 = vpack.c.b16 %v1236, %v1233
        %v1264 = vpack.c.b16 %v1237, %v1234
        %v1265 = vpack.c.b16 %v1238, %v1235
        %v1266 = vpack.c.b16 %v1242, %v1239
        %v1267 = vpack.c.b16 %v1243, %v1240
        %v1268 = vpack.c.b16 %v1244, %v1241
        %1293 = vmatprep.subr.bf16.mxu0 %v1246
        %1294 = vmatpush1.bf16.msra.mxu0 %v1245
        %1295 = vmatprep.subr.bf16.mxu0 %v1249
        %1296 = vmatpush1.bf16.msra.mxu0 %v1248
        %1297 = vmatprep.subr.bf16.mxu0 %v1252
        %1298 = vmatpush1.bf16.msra.mxu0 %v1251
        %1299 = vmatprep.subr.bf16.mxu0 %v1255
        %1300 = vmatpush1.bf16.msra.mxu0 %v1254
        %1301 = vmatprep.subr.bf16.mxu0 %v1258
        %1302 = vmatpush1.bf16.msra.mxu0 %v1257
        %1303 = vmatprep.subr.bf16.mxu0 %v1261
        %1304 = vmatpush1.bf16.msra.mxu0 %v1260
        %1305 = vmatprep.subr.bf16.mxu0 %v1264
        %1306 = vmatpush1.bf16.msra.mxu0 %v1263
        %1307 = vmatprep.subr.bf16.mxu0 %v1267
        %1308 = vmatpush1.bf16.msra.mxu0 %v1266
        %1309 = vmatprep.subr.bf16.mxu0 0
        %1310 = vmatpush1.bf16.msra.mxu0 0
        %1311 = vmatprep.subr.bf16.mxu0 0
        %1312 = vmatpush1.bf16.msra.mxu0 0
        %1313 = vmatprep.subr.bf16.mxu0 0
        %1314 = vmatpush1.bf16.msra.mxu0 0
        %1315 = vmatprep.subr.bf16.mxu0 0
        %1316 = vmatpush1.bf16.msra.mxu0 0
        %1317 = vmatprep.subr.bf16.mxu0 0
        %1318 = vmatpush1.bf16.msra.mxu0 0
        %1319 = vmatprep.subr.bf16.mxu0 0
        %1320 = vmatpush1.bf16.msra.mxu0 0
        %1321 = vmatprep.subr.bf16.mxu0 0
        %1322 = vmatpush1.bf16.msra.mxu0 0
        %1323 = vmatprep.subr.bf16.mxu0 0
        %1324 = vmatpush1.bf16.msra.mxu0 0
        %1325 = vmatprep.mubr.bf16.mxu0 0
        %1326 = vmatmul.mubr.bf16.gmra.mrb[0].mxu0 %v1147
        %v1327 = vpop.f32.mrb[0].mxu0
        %v1328 = vadd.f32 %v1153, %v1327
        %v1329 = vpop.f32.mrb[0].mxu0
        %v1330 = vadd.f32 %v1157, %v1329
        %v1331 = vpop.f32.mrb[0].mxu0
        %v1332 = vadd.f32 %v1153, %v1331
        %v1333 = vpop.f32.mrb[0].mxu0
        %v1334 = vadd.f32 %v1157, %v1333
        %1335 = vdwg.mxu0
        %1336 = vmatprep.subr.bf16.mxu0 0
        %1337 = vmatpush1.bf16.msra.mxu0 %v1247
        %1338 = vmatprep.subr.bf16.mxu0 0
        %1339 = vmatpush1.bf16.msra.mxu0 %v1250
        %1340 = vmatprep.subr.bf16.mxu0 0
        %1341 = vmatpush1.bf16.msra.mxu0 %v1253
        %1342 = vmatprep.subr.bf16.mxu0 0
        %1343 = vmatpush1.bf16.msra.mxu0 %v1256
        %1344 = vmatprep.subr.bf16.mxu0 0
        %1345 = vmatpush1.bf16.msra.mxu0 %v1259
        %1346 = vmatprep.subr.bf16.mxu0 0
        %1347 = vmatpush1.bf16.msra.mxu0 %v1262
        %1348 = vmatprep.subr.bf16.mxu0 0
        %1349 = vmatpush1.bf16.msra.mxu0 %v1265
        %1350 = vmatprep.subr.bf16.mxu0 0
        %1351 = vmatpush1.bf16.msra.mxu0 %v1268
        %1352 = vmatprep.subr.bf16.mxu0 0
        %1353 = vmatpush1.bf16.msra.mxu0 0
        %1354 = vmatprep.subr.bf16.mxu0 0
        %1355 = vmatpush1.bf16.msra.mxu0 0
        %1356 = vmatprep.subr.bf16.mxu0 0
        %1357 = vmatpush1.bf16.msra.mxu0 0
        %1358 = vmatprep.subr.bf16.mxu0 0
        %1359 = vmatpush1.bf16.msra.mxu0 0
        %1360 = vmatprep.subr.bf16.mxu0 0
        %1361 = vmatpush1.bf16.msra.mxu0 0
        %1362 = vmatprep.subr.bf16.mxu0 0
        %1363 = vmatpush1.bf16.msra.mxu0 0
        %1364 = vmatprep.subr.bf16.mxu0 0
        %1365 = vmatpush1.bf16.msra.mxu0 0
        %1366 = vmatprep.subr.bf16.mxu0 0
        %1367 = vmatpush1.bf16.msra.mxu0 0
        %1368 = vmatprep.mubr.bf16.mxu0 0
        %1369 = vmatmul.mubr.bf16.gmra.mrb[0].mxu0 %v1147
        %v1370 = vpop.f32.mrb[0].mxu0
        %v1371 = vadd.f32 %v1161, %v1370
        %v1372 = vpop.f32.mrb[0].mxu0
        %v1373 = vpop.f32.mrb[0].mxu0
        %v1374 = vadd.f32 %v1161, %v1373
        %v1375 = vpop.f32.mrb[0].mxu0
        %1376 = vdwg.mxu0
        %1379 = vrot.lane.b32.xlu0 %v1328, 112
        %v1380 = vpop.permute.xlu0 %1379
        %1381 = vrot.lane.b32.xlu0 %v1332, 112
        %v1382 = vpop.permute.xlu0 %1381
        %1385 = vrot.lane.b32.xlu0 %v1328, 96
        %v1386 = vpop.permute.xlu0 %1385
        %1387 = vrot.lane.b32.xlu0 %v1332, 96
        %v1388 = vpop.permute.xlu0 %1387
        %1391 = vrot.lane.b32.xlu0 %v1328, 80
        %v1392 = vpop.permute.xlu0 %1391
        %1393 = vrot.lane.b32.xlu0 %v1332, 80
        %v1394 = vpop.permute.xlu0 %1393
        %1397 = vrot.lane.b32.xlu0 %v1328, 64
        %v1398 = vpop.permute.xlu0 %1397
        %1399 = vrot.lane.b32.xlu0 %v1332, 64
        %v1400 = vpop.permute.xlu0 %1399
        %1403 = vrot.lane.b32.xlu0 %v1328, 48
        %v1404 = vpop.permute.xlu0 %1403
        %1405 = vrot.lane.b32.xlu0 %v1332, 48
        %v1406 = vpop.permute.xlu0 %1405
        %1409 = vrot.lane.b32.xlu0 %v1328, 32
        %v1410 = vpop.permute.xlu0 %1409
        %1411 = vrot.lane.b32.xlu0 %v1332, 32
        %v1412 = vpop.permute.xlu0 %1411
        %1415 = vrot.lane.b32.xlu0 %v1328, 16
        %v1416 = vpop.permute.xlu0 %1415
        %1417 = vrot.lane.b32.xlu0 %v1332, 16
        %v1418 = vpop.permute.xlu0 %1417
        %v1421 = vpack.c.bf16 %v1328, %v1328
        %v1422 = vpack.c.bf16 %v1380, %v1380
        %v1423 = vpack.c.bf16 %v1386, %v1386
        %v1424 = vpack.c.bf16 %v1392, %v1392
        %v1425 = vpack.c.bf16 %v1398, %v1398
        %v1426 = vpack.c.bf16 %v1404, %v1404
        %v1427 = vpack.c.bf16 %v1410, %v1410
        %v1428 = vpack.c.bf16 %v1416, %v1416
        %v1429 = vpack.c.bf16 %v1332, %v1332
        %v1430 = vpack.c.bf16 %v1382, %v1382
        %v1431 = vpack.c.bf16 %v1388, %v1388
        %v1432 = vpack.c.bf16 %v1394, %v1394
        %v1433 = vpack.c.bf16 %v1400, %v1400
        %v1434 = vpack.c.bf16 %v1406, %v1406
        %v1435 = vpack.c.bf16 %v1412, %v1412
        %v1436 = vpack.c.bf16 %v1418, %v1418
        %1439 = vrot.lane.b32.xlu0 %v1330, 112
        %v1440 = vpop.permute.xlu0 %1439
        %1441 = vrot.lane.b32.xlu0 %v1334, 112
        %v1442 = vpop.permute.xlu0 %1441
        %1445 = vrot.lane.b32.xlu0 %v1330, 96
        %v1446 = vpop.permute.xlu0 %1445
        %1447 = vrot.lane.b32.xlu0 %v1334, 96
        %v1448 = vpop.permute.xlu0 %1447
        %1451 = vrot.lane.b32.xlu0 %v1330, 80
        %v1452 = vpop.permute.xlu0 %1451
        %1453 = vrot.lane.b32.xlu0 %v1334, 80
        %v1454 = vpop.permute.xlu0 %1453
        %1457 = vrot.lane.b32.xlu0 %v1330, 64
        %v1458 = vpop.permute.xlu0 %1457
        %1459 = vrot.lane.b32.xlu0 %v1334, 64
        %v1460 = vpop.permute.xlu0 %1459
        %1463 = vrot.lane.b32.xlu0 %v1330, 48
        %v1464 = vpop.permute.xlu0 %1463
        %1465 = vrot.lane.b32.xlu0 %v1334, 48
        %v1466 = vpop.permute.xlu0 %1465
        %1469 = vrot.lane.b32.xlu0 %v1330, 32
        %v1470 = vpop.permute.xlu0 %1469
        %1471 = vrot.lane.b32.xlu0 %v1334, 32
        %v1472 = vpop.permute.xlu0 %1471
        %1475 = vrot.lane.b32.xlu0 %v1330, 16
        %v1476 = vpop.permute.xlu0 %1475
        %1477 = vrot.lane.b32.xlu0 %v1334, 16
        %v1478 = vpop.permute.xlu0 %1477
        %v1481 = vpack.c.bf16 %v1330, %v1330
        %v1482 = vpack.c.bf16 %v1440, %v1440
        %v1483 = vpack.c.bf16 %v1446, %v1446
        %v1484 = vpack.c.bf16 %v1452, %v1452
        %v1485 = vpack.c.bf16 %v1458, %v1458
        %v1486 = vpack.c.bf16 %v1464, %v1464
        %v1487 = vpack.c.bf16 %v1470, %v1470
        %v1488 = vpack.c.bf16 %v1476, %v1476
        %v1489 = vpack.c.bf16 %v1334, %v1334
        %v1490 = vpack.c.bf16 %v1442, %v1442
        %v1491 = vpack.c.bf16 %v1448, %v1448
        %v1492 = vpack.c.bf16 %v1454, %v1454
        %v1493 = vpack.c.bf16 %v1460, %v1460
        %v1494 = vpack.c.bf16 %v1466, %v1466
        %v1495 = vpack.c.bf16 %v1472, %v1472
        %v1496 = vpack.c.bf16 %v1478, %v1478
        %1499 = vrot.lane.b32.xlu0 %v1371, 112
        %v1500 = vpop.permute.xlu0 %1499
        %1501 = vrot.lane.b32.xlu0 %v1374, 112
        %v1502 = vpop.permute.xlu0 %1501
        %1505 = vrot.lane.b32.xlu0 %v1371, 96
        %v1506 = vpop.permute.xlu0 %1505
        %1507 = vrot.lane.b32.xlu0 %v1374, 96
        %v1508 = vpop.permute.xlu0 %1507
        %1511 = vrot.lane.b32.xlu0 %v1371, 80
        %v1512 = vpop.permute.xlu0 %1511
        %1513 = vrot.lane.b32.xlu0 %v1374, 80
        %v1514 = vpop.permute.xlu0 %1513
        %1517 = vrot.lane.b32.xlu0 %v1371, 64
        %v1518 = vpop.permute.xlu0 %1517
        %1519 = vrot.lane.b32.xlu0 %v1374, 64
        %v1520 = vpop.permute.xlu0 %1519
        %1523 = vrot.lane.b32.xlu0 %v1371, 48
        %v1524 = vpop.permute.xlu0 %1523
        %1525 = vrot.lane.b32.xlu0 %v1374, 48
        %v1526 = vpop.permute.xlu0 %1525
        %1529 = vrot.lane.b32.xlu0 %v1371, 32
        %v1530 = vpop.permute.xlu0 %1529
        %1531 = vrot.lane.b32.xlu0 %v1374, 32
        %v1532 = vpop.permute.xlu0 %1531
        %1535 = vrot.lane.b32.xlu0 %v1371, 16
        %v1536 = vpop.permute.xlu0 %1535
        %1537 = vrot.lane.b32.xlu0 %v1374, 16
        %v1538 = vpop.permute.xlu0 %1537
        %v1541 = vpack.c.bf16 %v1371, %v1371
        %v1542 = vpack.c.bf16 %v1500, %v1500
        %v1543 = vpack.c.bf16 %v1506, %v1506
        %v1544 = vpack.c.bf16 %v1512, %v1512
        %v1545 = vpack.c.bf16 %v1518, %v1518
        %v1546 = vpack.c.bf16 %v1524, %v1524
        %v1547 = vpack.c.bf16 %v1530, %v1530
        %v1548 = vpack.c.bf16 %v1536, %v1536
        %v1549 = vpack.c.bf16 %v1374, %v1374
        %v1550 = vpack.c.bf16 %v1502, %v1502
        %v1551 = vpack.c.bf16 %v1508, %v1508
        %v1552 = vpack.c.bf16 %v1514, %v1514
        %v1553 = vpack.c.bf16 %v1520, %v1520
        %v1554 = vpack.c.bf16 %v1526, %v1526
        %v1555 = vpack.c.bf16 %v1532, %v1532
        %v1556 = vpack.c.bf16 %v1538, %v1538
        %vm1557 = vcmask 130048
        %v1559 = vsel %vm1557, %v1421, 0
        %v1562 = vsel %vm1557, %v1481, 0
        %1564 = vmatprep.subr.bf16.mxu0 0
        %1565 = vmatpush1.bf16.xpose.msra.mxu0 %v1562
        %1566 = vmatprep.subr.bf16.mxu0 0
        %1567 = vmatpush1.bf16.xpose.msra.mxu0 0
        %1568 = vmatprep.subr.bf16.mxu0 0
        %1569 = vmatpush1.bf16.xpose.msra.mxu0 0
        %1570 = vmatprep.subr.bf16.mxu0 0
        %1571 = vmatpush1.bf16.xpose.msra.mxu0 0
        %1572 = vmatprep.subr.bf16.mxu0 0
        %1573 = vmatpush1.bf16.xpose.msra.mxu0 0
        %1574 = vmatprep.subr.bf16.mxu0 0
        %1575 = vmatpush1.bf16.xpose.msra.mxu0 0
        %1576 = vmatprep.subr.bf16.mxu0 0
        %1577 = vmatpush1.bf16.xpose.msra.mxu0 0
        %1578 = vmatprep.subr.bf16.mxu0 0
        %1579 = vmatpush1.bf16.xpose.msra.mxu0 0
        %1580 = vmatprep.subr.bf16.mxu0 0
        %1581 = vmatpush1.bf16.xpose.msra.mxu0 0
        %1582 = vmatprep.subr.bf16.mxu0 0
        %1583 = vmatpush1.bf16.xpose.msra.mxu0 0
        %1584 = vmatprep.subr.bf16.mxu0 0
        %1585 = vmatpush1.bf16.xpose.msra.mxu0 0
        %1586 = vmatprep.subr.bf16.mxu0 0
        %1587 = vmatpush1.bf16.xpose.msra.mxu0 0
        %1588 = vmatprep.subr.bf16.mxu0 0
        %1589 = vmatpush1.bf16.xpose.msra.mxu0 0
        %1590 = vmatprep.subr.bf16.mxu0 0
        %1591 = vmatpush1.bf16.xpose.msra.mxu0 0
        %1592 = vmatprep.subr.bf16.mxu0 0
        %1593 = vmatpush1.bf16.xpose.msra.mxu0 0
        %1594 = vmatprep.subr.bf16.mxu0 0
        %1595 = vmatpush1.bf16.xpose.msra.mxu0 0
        %1596 = vmatprep.mubr.bf16.mxu0 0
        %1597 = vmatmul.mubr.bf16.gmra.mrb[0].mxu0 %v1559
        %v1598 = vpop.f32.mrb[0].mxu0
        %v1599 = vadd.f32 0.0, %v1598
        %v1600 = vpop.f32.mrb[0].mxu0
        %v1601 = vpop.f32.mrb[0].mxu0
        %v1602 = vpop.f32.mrb[0].mxu0
        %1603 = vdwg.mxu0
        %v1605 = vsel %vm1557, %v1422, 0
        %v1608 = vsel %vm1557, %v1482, 0
        %1610 = vmatprep.subr.bf16.mxu0 0
        %1611 = vmatpush1.bf16.xpose.msra.mxu0 %v1608
        %1612 = vmatprep.subr.bf16.mxu0 0
        %1613 = vmatpush1.bf16.xpose.msra.mxu0 0
        %1614 = vmatprep.subr.bf16.mxu0 0
        %1615 = vmatpush1.bf16.xpose.msra.mxu0 0
        %1616 = vmatprep.subr.bf16.mxu0 0
        %1617 = vmatpush1.bf16.xpose.msra.mxu0 0
        %1618 = vmatprep.subr.bf16.mxu0 0
        %1619 = vmatpush1.bf16.xpose.msra.mxu0 0
        %1620 = vmatprep.subr.bf16.mxu0 0
        %1621 = vmatpush1.bf16.xpose.msra.mxu0 0
        %1622 = vmatprep.subr.bf16.mxu0 0
        %1623 = vmatpush1.bf16.xpose.msra.mxu0 0
        %1624 = vmatprep.subr.bf16.mxu0 0
        %1625 = vmatpush1.bf16.xpose.msra.mxu0 0
        %1626 = vmatprep.subr.bf16.mxu0 0
        %1627 = vmatpush1.bf16.xpose.msra.mxu0 0
        %1628 = vmatprep.subr.bf16.mxu0 0
        %1629 = vmatpush1.bf16.xpose.msra.mxu0 0
        %1630 = vmatprep.subr.bf16.mxu0 0
        %1631 = vmatpush1.bf16.xpose.msra.mxu0 0
        %1632 = vmatprep.subr.bf16.mxu0 0
        %1633 = vmatpush1.bf16.xpose.msra.mxu0 0
        %1634 = vmatprep.subr.bf16.mxu0 0
        %1635 = vmatpush1.bf16.xpose.msra.mxu0 0
        %1636 = vmatprep.subr.bf16.mxu0 0
        %1637 = vmatpush1.bf16.xpose.msra.mxu0 0
        %1638 = vmatprep.subr.bf16.mxu0 0
        %1639 = vmatpush1.bf16.xpose.msra.mxu0 0
        %1640 = vmatprep.subr.bf16.mxu0 0
        %1641 = vmatpush1.bf16.xpose.msra.mxu0 0
        %1642 = vmatprep.mubr.bf16.mxu0 0
        %1643 = vmatmul.mubr.bf16.gmra.mrb[0].mxu0 %v1605
        %v1644 = vpop.f32.mrb[0].mxu0
        %v1645 = vadd.f32 0.0, %v1644
        %v1646 = vpop.f32.mrb[0].mxu0
        %v1647 = vpop.f32.mrb[0].mxu0
        %v1648 = vpop.f32.mrb[0].mxu0
        %1649 = vdwg.mxu0
        %v1651 = vsel %vm1557, %v1423, 0
        %v1654 = vsel %vm1557, %v1483, 0
        %1656 = vmatprep.subr.bf16.mxu0 0
        %1657 = vmatpush1.bf16.xpose.msra.mxu0 %v1654
        %1658 = vmatprep.subr.bf16.mxu0 0
        %1659 = vmatpush1.bf16.xpose.msra.mxu0 0
        %1660 = vmatprep.subr.bf16.mxu0 0
        %1661 = vmatpush1.bf16.xpose.msra.mxu0 0
        %1662 = vmatprep.subr.bf16.mxu0 0
        %1663 = vmatpush1.bf16.xpose.msra.mxu0 0
        %1664 = vmatprep.subr.bf16.mxu0 0
        %1665 = vmatpush1.bf16.xpose.msra.mxu0 0
        %1666 = vmatprep.subr.bf16.mxu0 0
        %1667 = vmatpush1.bf16.xpose.msra.mxu0 0
        %1668 = vmatprep.subr.bf16.mxu0 0
        %1669 = vmatpush1.bf16.xpose.msra.mxu0 0
        %1670 = vmatprep.subr.bf16.mxu0 0
        %1671 = vmatpush1.bf16.xpose.msra.mxu0 0
        %1672 = vmatprep.subr.bf16.mxu0 0
        %1673 = vmatpush1.bf16.xpose.msra.mxu0 0
        %1674 = vmatprep.subr.bf16.mxu0 0
        %1675 = vmatpush1.bf16.xpose.msra.mxu0 0
        %1676 = vmatprep.subr.bf16.mxu0 0
        %1677 = vmatpush1.bf16.xpose.msra.mxu0 0
        %1678 = vmatprep.subr.bf16.mxu0 0
        %1679 = vmatpush1.bf16.xpose.msra.mxu0 0
        %1680 = vmatprep.subr.bf16.mxu0 0
        %1681 = vmatpush1.bf16.xpose.msra.mxu0 0
        %1682 = vmatprep.subr.bf16.mxu0 0
        %1683 = vmatpush1.bf16.xpose.msra.mxu0 0
        %1684 = vmatprep.subr.bf16.mxu0 0
        %1685 = vmatpush1.bf16.xpose.msra.mxu0 0
        %1686 = vmatprep.subr.bf16.mxu0 0
        %1687 = vmatpush1.bf16.xpose.msra.mxu0 0
        %1688 = vmatprep.mubr.bf16.mxu0 0
        %1689 = vmatmul.mubr.bf16.gmra.mrb[0].mxu0 %v1651
        %v1690 = vpop.f32.mrb[0].mxu0
        %v1691 = vadd.f32 0.0, %v1690
        %v1692 = vpop.f32.mrb[0].mxu0
        %v1693 = vpop.f32.mrb[0].mxu0
        %v1694 = vpop.f32.mrb[0].mxu0
        %1695 = vdwg.mxu0
        %v1697 = vsel %vm1557, %v1424, 0
        %v1700 = vsel %vm1557, %v1484, 0
        %1702 = vmatprep.subr.bf16.mxu0 0
        %1703 = vmatpush1.bf16.xpose.msra.mxu0 %v1700
        %1704 = vmatprep.subr.bf16.mxu0 0
        %1705 = vmatpush1.bf16.xpose.msra.mxu0 0
        %1706 = vmatprep.subr.bf16.mxu0 0
        %1707 = vmatpush1.bf16.xpose.msra.mxu0 0
        %1708 = vmatprep.subr.bf16.mxu0 0
        %1709 = vmatpush1.bf16.xpose.msra.mxu0 0
        %1710 = vmatprep.subr.bf16.mxu0 0
        %1711 = vmatpush1.bf16.xpose.msra.mxu0 0
        %1712 = vmatprep.subr.bf16.mxu0 0
        %1713 = vmatpush1.bf16.xpose.msra.mxu0 0
        %1714 = vmatprep.subr.bf16.mxu0 0
        %1715 = vmatpush1.bf16.xpose.msra.mxu0 0
        %1716 = vmatprep.subr.bf16.mxu0 0
        %1717 = vmatpush1.bf16.xpose.msra.mxu0 0
        %1718 = vmatprep.subr.bf16.mxu0 0
        %1719 = vmatpush1.bf16.xpose.msra.mxu0 0
        %1720 = vmatprep.subr.bf16.mxu0 0
        %1721 = vmatpush1.bf16.xpose.msra.mxu0 0
        %1722 = vmatprep.subr.bf16.mxu0 0
        %1723 = vmatpush1.bf16.xpose.msra.mxu0 0
        %1724 = vmatprep.subr.bf16.mxu0 0
        %1725 = vmatpush1.bf16.xpose.msra.mxu0 0
        %1726 = vmatprep.subr.bf16.mxu0 0
        %1727 = vmatpush1.bf16.xpose.msra.mxu0 0
        %1728 = vmatprep.subr.bf16.mxu0 0
        %1729 = vmatpush1.bf16.xpose.msra.mxu0 0
        %1730 = vmatprep.subr.bf16.mxu0 0
        %1731 = vmatpush1.bf16.xpose.msra.mxu0 0
        %1732 = vmatprep.subr.bf16.mxu0 0
        %1733 = vmatpush1.bf16.xpose.msra.mxu0 0
        %1734 = vmatprep.mubr.bf16.mxu0 0
        %1735 = vmatmul.mubr.bf16.gmra.mrb[0].mxu0 %v1697
        %v1736 = vpop.f32.mrb[0].mxu0
        %v1737 = vadd.f32 0.0, %v1736
        %v1738 = vpop.f32.mrb[0].mxu0
        %v1739 = vpop.f32.mrb[0].mxu0
        %v1740 = vpop.f32.mrb[0].mxu0
        %1741 = vdwg.mxu0
        %v1743 = vsel %vm1557, %v1425, 0
        %v1746 = vsel %vm1557, %v1485, 0
        %1748 = vmatprep.subr.bf16.mxu0 0
        %1749 = vmatpush1.bf16.xpose.msra.mxu0 %v1746
        %1750 = vmatprep.subr.bf16.mxu0 0
        %1751 = vmatpush1.bf16.xpose.msra.mxu0 0
        %1752 = vmatprep.subr.bf16.mxu0 0
        %1753 = vmatpush1.bf16.xpose.msra.mxu0 0
        %1754 = vmatprep.subr.bf16.mxu0 0
        %1755 = vmatpush1.bf16.xpose.msra.mxu0 0
        %1756 = vmatprep.subr.bf16.mxu0 0
        %1757 = vmatpush1.bf16.xpose.msra.mxu0 0
        %1758 = vmatprep.subr.bf16.mxu0 0
        %1759 = vmatpush1.bf16.xpose.msra.mxu0 0
        %1760 = vmatprep.subr.bf16.mxu0 0
        %1761 = vmatpush1.bf16.xpose.msra.mxu0 0
        %1762 = vmatprep.subr.bf16.mxu0 0
        %1763 = vmatpush1.bf16.xpose.msra.mxu0 0
        %1764 = vmatprep.subr.bf16.mxu0 0
        %1765 = vmatpush1.bf16.xpose.msra.mxu0 0
        %1766 = vmatprep.subr.bf16.mxu0 0
        %1767 = vmatpush1.bf16.xpose.msra.mxu0 0
        %1768 = vmatprep.subr.bf16.mxu0 0
        %1769 = vmatpush1.bf16.xpose.msra.mxu0 0
        %1770 = vmatprep.subr.bf16.mxu0 0
        %1771 = vmatpush1.bf16.xpose.msra.mxu0 0
        %1772 = vmatprep.subr.bf16.mxu0 0
        %1773 = vmatpush1.bf16.xpose.msra.mxu0 0
        %1774 = vmatprep.subr.bf16.mxu0 0
        %1775 = vmatpush1.bf16.xpose.msra.mxu0 0
        %1776 = vmatprep.subr.bf16.mxu0 0
        %1777 = vmatpush1.bf16.xpose.msra.mxu0 0
        %1778 = vmatprep.subr.bf16.mxu0 0
        %1779 = vmatpush1.bf16.xpose.msra.mxu0 0
        %1780 = vmatprep.mubr.bf16.mxu0 0
        %1781 = vmatmul.mubr.bf16.gmra.mrb[0].mxu0 %v1743
        %v1782 = vpop.f32.mrb[0].mxu0
        %v1783 = vadd.f32 0.0, %v1782
        %v1784 = vpop.f32.mrb[0].mxu0
        %v1785 = vpop.f32.mrb[0].mxu0
        %v1786 = vpop.f32.mrb[0].mxu0
        %1787 = vdwg.mxu0
        %v1789 = vsel %vm1557, %v1426, 0
        %v1792 = vsel %vm1557, %v1486, 0
        %1794 = vmatprep.subr.bf16.mxu0 0
        %1795 = vmatpush1.bf16.xpose.msra.mxu0 %v1792
        %1796 = vmatprep.subr.bf16.mxu0 0
        %1797 = vmatpush1.bf16.xpose.msra.mxu0 0
        %1798 = vmatprep.subr.bf16.mxu0 0
        %1799 = vmatpush1.bf16.xpose.msra.mxu0 0
        %1800 = vmatprep.subr.bf16.mxu0 0
        %1801 = vmatpush1.bf16.xpose.msra.mxu0 0
        %1802 = vmatprep.subr.bf16.mxu0 0
        %1803 = vmatpush1.bf16.xpose.msra.mxu0 0
        %1804 = vmatprep.subr.bf16.mxu0 0
        %1805 = vmatpush1.bf16.xpose.msra.mxu0 0
        %1806 = vmatprep.subr.bf16.mxu0 0
        %1807 = vmatpush1.bf16.xpose.msra.mxu0 0
        %1808 = vmatprep.subr.bf16.mxu0 0
        %1809 = vmatpush1.bf16.xpose.msra.mxu0 0
        %1810 = vmatprep.subr.bf16.mxu0 0
        %1811 = vmatpush1.bf16.xpose.msra.mxu0 0
        %1812 = vmatprep.subr.bf16.mxu0 0
        %1813 = vmatpush1.bf16.xpose.msra.mxu0 0
        %1814 = vmatprep.subr.bf16.mxu0 0
        %1815 = vmatpush1.bf16.xpose.msra.mxu0 0
        %1816 = vmatprep.subr.bf16.mxu0 0
        %1817 = vmatpush1.bf16.xpose.msra.mxu0 0
        %1818 = vmatprep.subr.bf16.mxu0 0
        %1819 = vmatpush1.bf16.xpose.msra.mxu0 0
        %1820 = vmatprep.subr.bf16.mxu0 0
        %1821 = vmatpush1.bf16.xpose.msra.mxu0 0
        %1822 = vmatprep.subr.bf16.mxu0 0
        %1823 = vmatpush1.bf16.xpose.msra.mxu0 0
        %1824 = vmatprep.subr.bf16.mxu0 0
        %1825 = vmatpush1.bf16.xpose.msra.mxu0 0
        %1826 = vmatprep.mubr.bf16.mxu0 0
        %1827 = vmatmul.mubr.bf16.gmra.mrb[0].mxu0 %v1789
        %v1828 = vpop.f32.mrb[0].mxu0
        %v1829 = vadd.f32 0.0, %v1828
        %v1830 = vpop.f32.mrb[0].mxu0
        %v1831 = vpop.f32.mrb[0].mxu0
        %v1832 = vpop.f32.mrb[0].mxu0
        %1833 = vdwg.mxu0
        %v1835 = vsel %vm1557, %v1427, 0
        %v1838 = vsel %vm1557, %v1487, 0
        %1840 = vmatprep.subr.bf16.mxu0 0
        %1841 = vmatpush1.bf16.xpose.msra.mxu0 %v1838
        %1842 = vmatprep.subr.bf16.mxu0 0
        %1843 = vmatpush1.bf16.xpose.msra.mxu0 0
        %1844 = vmatprep.subr.bf16.mxu0 0
        %1845 = vmatpush1.bf16.xpose.msra.mxu0 0
        %1846 = vmatprep.subr.bf16.mxu0 0
        %1847 = vmatpush1.bf16.xpose.msra.mxu0 0
        %1848 = vmatprep.subr.bf16.mxu0 0
        %1849 = vmatpush1.bf16.xpose.msra.mxu0 0
        %1850 = vmatprep.subr.bf16.mxu0 0
        %1851 = vmatpush1.bf16.xpose.msra.mxu0 0
        %1852 = vmatprep.subr.bf16.mxu0 0
        %1853 = vmatpush1.bf16.xpose.msra.mxu0 0
        %1854 = vmatprep.subr.bf16.mxu0 0
        %1855 = vmatpush1.bf16.xpose.msra.mxu0 0
        %1856 = vmatprep.subr.bf16.mxu0 0
        %1857 = vmatpush1.bf16.xpose.msra.mxu0 0
        %1858 = vmatprep.subr.bf16.mxu0 0
        %1859 = vmatpush1.bf16.xpose.msra.mxu0 0
        %1860 = vmatprep.subr.bf16.mxu0 0
        %1861 = vmatpush1.bf16.xpose.msra.mxu0 0
        %1862 = vmatprep.subr.bf16.mxu0 0
        %1863 = vmatpush1.bf16.xpose.msra.mxu0 0
        %1864 = vmatprep.subr.bf16.mxu0 0
        %1865 = vmatpush1.bf16.xpose.msra.mxu0 0
        %1866 = vmatprep.subr.bf16.mxu0 0
        %1867 = vmatpush1.bf16.xpose.msra.mxu0 0
        %1868 = vmatprep.subr.bf16.mxu0 0
        %1869 = vmatpush1.bf16.xpose.msra.mxu0 0
        %1870 = vmatprep.subr.bf16.mxu0 0
        %1871 = vmatpush1.bf16.xpose.msra.mxu0 0
        %1872 = vmatprep.mubr.bf16.mxu0 0
        %1873 = vmatmul.mubr.bf16.gmra.mrb[0].mxu0 %v1835
        %v1874 = vpop.f32.mrb[0].mxu0
        %v1875 = vadd.f32 0.0, %v1874
        %v1876 = vpop.f32.mrb[0].mxu0
        %v1877 = vpop.f32.mrb[0].mxu0
        %v1878 = vpop.f32.mrb[0].mxu0
        %1879 = vdwg.mxu0
        %v1881 = vsel %vm1557, %v1428, 0
        %v1884 = vsel %vm1557, %v1488, 0
        %1886 = vmatprep.subr.bf16.mxu0 0
        %1887 = vmatpush1.bf16.xpose.msra.mxu0 %v1884
        %1888 = vmatprep.subr.bf16.mxu0 0
        %1889 = vmatpush1.bf16.xpose.msra.mxu0 0
        %1890 = vmatprep.subr.bf16.mxu0 0
        %1891 = vmatpush1.bf16.xpose.msra.mxu0 0
        %1892 = vmatprep.subr.bf16.mxu0 0
        %1893 = vmatpush1.bf16.xpose.msra.mxu0 0
        %1894 = vmatprep.subr.bf16.mxu0 0
        %1895 = vmatpush1.bf16.xpose.msra.mxu0 0
        %1896 = vmatprep.subr.bf16.mxu0 0
        %1897 = vmatpush1.bf16.xpose.msra.mxu0 0
        %1898 = vmatprep.subr.bf16.mxu0 0
        %1899 = vmatpush1.bf16.xpose.msra.mxu0 0
        %1900 = vmatprep.subr.bf16.mxu0 0
        %1901 = vmatpush1.bf16.xpose.msra.mxu0 0
        %1902 = vmatprep.subr.bf16.mxu0 0
        %1903 = vmatpush1.bf16.xpose.msra.mxu0 0
        %1904 = vmatprep.subr.bf16.mxu0 0
        %1905 = vmatpush1.bf16.xpose.msra.mxu0 0
        %1906 = vmatprep.subr.bf16.mxu0 0
        %1907 = vmatpush1.bf16.xpose.msra.mxu0 0
        %1908 = vmatprep.subr.bf16.mxu0 0
        %1909 = vmatpush1.bf16.xpose.msra.mxu0 0
        %1910 = vmatprep.subr.bf16.mxu0 0
        %1911 = vmatpush1.bf16.xpose.msra.mxu0 0
        %1912 = vmatprep.subr.bf16.mxu0 0
        %1913 = vmatpush1.bf16.xpose.msra.mxu0 0
        %1914 = vmatprep.subr.bf16.mxu0 0
        %1915 = vmatpush1.bf16.xpose.msra.mxu0 0
        %1916 = vmatprep.subr.bf16.mxu0 0
        %1917 = vmatpush1.bf16.xpose.msra.mxu0 0
        %1918 = vmatprep.mubr.bf16.mxu0 0
        %1919 = vmatmul.mubr.bf16.gmra.mrb[0].mxu0 %v1881
        %v1920 = vpop.f32.mrb[0].mxu0
        %v1921 = vadd.f32 0.0, %v1920
        %v1922 = vpop.f32.mrb[0].mxu0
        %v1923 = vpop.f32.mrb[0].mxu0
        %v1924 = vpop.f32.mrb[0].mxu0
        %1925 = vdwg.mxu0
        %v1927 = vsel %vm1557, %v1429, 0
        %v1930 = vsel %vm1557, %v1489, 0
        %1932 = vmatprep.subr.bf16.mxu0 0
        %1933 = vmatpush1.bf16.xpose.msra.mxu0 %v1930
        %1934 = vmatprep.subr.bf16.mxu0 0
        %1935 = vmatpush1.bf16.xpose.msra.mxu0 0
        %1936 = vmatprep.subr.bf16.mxu0 0
        %1937 = vmatpush1.bf16.xpose.msra.mxu0 0
        %1938 = vmatprep.subr.bf16.mxu0 0
        %1939 = vmatpush1.bf16.xpose.msra.mxu0 0
        %1940 = vmatprep.subr.bf16.mxu0 0
        %1941 = vmatpush1.bf16.xpose.msra.mxu0 0
        %1942 = vmatprep.subr.bf16.mxu0 0
        %1943 = vmatpush1.bf16.xpose.msra.mxu0 0
        %1944 = vmatprep.subr.bf16.mxu0 0
        %1945 = vmatpush1.bf16.xpose.msra.mxu0 0
        %1946 = vmatprep.subr.bf16.mxu0 0
        %1947 = vmatpush1.bf16.xpose.msra.mxu0 0
        %1948 = vmatprep.subr.bf16.mxu0 0
        %1949 = vmatpush1.bf16.xpose.msra.mxu0 0
        %1950 = vmatprep.subr.bf16.mxu0 0
        %1951 = vmatpush1.bf16.xpose.msra.mxu0 0
        %1952 = vmatprep.subr.bf16.mxu0 0
        %1953 = vmatpush1.bf16.xpose.msra.mxu0 0
        %1954 = vmatprep.subr.bf16.mxu0 0
        %1955 = vmatpush1.bf16.xpose.msra.mxu0 0
        %1956 = vmatprep.subr.bf16.mxu0 0
        %1957 = vmatpush1.bf16.xpose.msra.mxu0 0
        %1958 = vmatprep.subr.bf16.mxu0 0
        %1959 = vmatpush1.bf16.xpose.msra.mxu0 0
        %1960 = vmatprep.subr.bf16.mxu0 0
        %1961 = vmatpush1.bf16.xpose.msra.mxu0 0
        %1962 = vmatprep.subr.bf16.mxu0 0
        %1963 = vmatpush1.bf16.xpose.msra.mxu0 0
        %1964 = vmatprep.mubr.bf16.mxu0 0
        %1965 = vmatmul.mubr.bf16.gmra.mrb[0].mxu0 %v1927
        %v1966 = vpop.f32.mrb[0].mxu0
        %v1967 = vadd.f32 0.0, %v1966
        %v1968 = vpop.f32.mrb[0].mxu0
        %v1969 = vpop.f32.mrb[0].mxu0
        %v1970 = vpop.f32.mrb[0].mxu0
        %1971 = vdwg.mxu0
        %v1973 = vsel %vm1557, %v1430, 0
        %v1976 = vsel %vm1557, %v1490, 0
        %1978 = vmatprep.subr.bf16.mxu0 0
        %1979 = vmatpush1.bf16.xpose.msra.mxu0 %v1976
        %1980 = vmatprep.subr.bf16.mxu0 0
        %1981 = vmatpush1.bf16.xpose.msra.mxu0 0
        %1982 = vmatprep.subr.bf16.mxu0 0
        %1983 = vmatpush1.bf16.xpose.msra.mxu0 0
        %1984 = vmatprep.subr.bf16.mxu0 0
        %1985 = vmatpush1.bf16.xpose.msra.mxu0 0
        %1986 = vmatprep.subr.bf16.mxu0 0
        %1987 = vmatpush1.bf16.xpose.msra.mxu0 0
        %1988 = vmatprep.subr.bf16.mxu0 0
        %1989 = vmatpush1.bf16.xpose.msra.mxu0 0
        %1990 = vmatprep.subr.bf16.mxu0 0
        %1991 = vmatpush1.bf16.xpose.msra.mxu0 0
        %1992 = vmatprep.subr.bf16.mxu0 0
        %1993 = vmatpush1.bf16.xpose.msra.mxu0 0
        %1994 = vmatprep.subr.bf16.mxu0 0
        %1995 = vmatpush1.bf16.xpose.msra.mxu0 0
        %1996 = vmatprep.subr.bf16.mxu0 0
        %1997 = vmatpush1.bf16.xpose.msra.mxu0 0
        %1998 = vmatprep.subr.bf16.mxu0 0
        %1999 = vmatpush1.bf16.xpose.msra.mxu0 0
        %2000 = vmatprep.subr.bf16.mxu0 0
        %2001 = vmatpush1.bf16.xpose.msra.mxu0 0
        %2002 = vmatprep.subr.bf16.mxu0 0
        %2003 = vmatpush1.bf16.xpose.msra.mxu0 0
        %2004 = vmatprep.subr.bf16.mxu0 0
        %2005 = vmatpush1.bf16.xpose.msra.mxu0 0
        %2006 = vmatprep.subr.bf16.mxu0 0
        %2007 = vmatpush1.bf16.xpose.msra.mxu0 0
        %2008 = vmatprep.subr.bf16.mxu0 0
        %2009 = vmatpush1.bf16.xpose.msra.mxu0 0
        %2010 = vmatprep.mubr.bf16.mxu0 0
        %2011 = vmatmul.mubr.bf16.gmra.mrb[0].mxu0 %v1973
        %v2012 = vpop.f32.mrb[0].mxu0
        %v2013 = vadd.f32 0.0, %v2012
        %v2014 = vpop.f32.mrb[0].mxu0
        %v2015 = vpop.f32.mrb[0].mxu0
        %v2016 = vpop.f32.mrb[0].mxu0
        %2017 = vdwg.mxu0
        %v2019 = vsel %vm1557, %v1431, 0
        %v2022 = vsel %vm1557, %v1491, 0
        %2024 = vmatprep.subr.bf16.mxu0 0
        %2025 = vmatpush1.bf16.xpose.msra.mxu0 %v2022
        %2026 = vmatprep.subr.bf16.mxu0 0
        %2027 = vmatpush1.bf16.xpose.msra.mxu0 0
        %2028 = vmatprep.subr.bf16.mxu0 0
        %2029 = vmatpush1.bf16.xpose.msra.mxu0 0
        %2030 = vmatprep.subr.bf16.mxu0 0
        %2031 = vmatpush1.bf16.xpose.msra.mxu0 0
        %2032 = vmatprep.subr.bf16.mxu0 0
        %2033 = vmatpush1.bf16.xpose.msra.mxu0 0
        %2034 = vmatprep.subr.bf16.mxu0 0
        %2035 = vmatpush1.bf16.xpose.msra.mxu0 0
        %2036 = vmatprep.subr.bf16.mxu0 0
        %2037 = vmatpush1.bf16.xpose.msra.mxu0 0
        %2038 = vmatprep.subr.bf16.mxu0 0
        %2039 = vmatpush1.bf16.xpose.msra.mxu0 0
        %2040 = vmatprep.subr.bf16.mxu0 0
        %2041 = vmatpush1.bf16.xpose.msra.mxu0 0
        %2042 = vmatprep.subr.bf16.mxu0 0
        %2043 = vmatpush1.bf16.xpose.msra.mxu0 0
        %2044 = vmatprep.subr.bf16.mxu0 0
        %2045 = vmatpush1.bf16.xpose.msra.mxu0 0
        %2046 = vmatprep.subr.bf16.mxu0 0
        %2047 = vmatpush1.bf16.xpose.msra.mxu0 0
        %2048 = vmatprep.subr.bf16.mxu0 0
        %2049 = vmatpush1.bf16.xpose.msra.mxu0 0
        %2050 = vmatprep.subr.bf16.mxu0 0
        %2051 = vmatpush1.bf16.xpose.msra.mxu0 0
        %2052 = vmatprep.subr.bf16.mxu0 0
        %2053 = vmatpush1.bf16.xpose.msra.mxu0 0
        %2054 = vmatprep.subr.bf16.mxu0 0
        %2055 = vmatpush1.bf16.xpose.msra.mxu0 0
        %2056 = vmatprep.mubr.bf16.mxu0 0
        %2057 = vmatmul.mubr.bf16.gmra.mrb[0].mxu0 %v2019
        %v2058 = vpop.f32.mrb[0].mxu0
        %v2059 = vadd.f32 0.0, %v2058
        %v2060 = vpop.f32.mrb[0].mxu0
        %v2061 = vpop.f32.mrb[0].mxu0
        %v2062 = vpop.f32.mrb[0].mxu0
        %2063 = vdwg.mxu0
        %v2065 = vsel %vm1557, %v1432, 0
        %v2068 = vsel %vm1557, %v1492, 0
        %2070 = vmatprep.subr.bf16.mxu0 0
        %2071 = vmatpush1.bf16.xpose.msra.mxu0 %v2068
        %2072 = vmatprep.subr.bf16.mxu0 0
        %2073 = vmatpush1.bf16.xpose.msra.mxu0 0
        %2074 = vmatprep.subr.bf16.mxu0 0
        %2075 = vmatpush1.bf16.xpose.msra.mxu0 0
        %2076 = vmatprep.subr.bf16.mxu0 0
        %2077 = vmatpush1.bf16.xpose.msra.mxu0 0
        %2078 = vmatprep.subr.bf16.mxu0 0
        %2079 = vmatpush1.bf16.xpose.msra.mxu0 0
        %2080 = vmatprep.subr.bf16.mxu0 0
        %2081 = vmatpush1.bf16.xpose.msra.mxu0 0
        %2082 = vmatprep.subr.bf16.mxu0 0
        %2083 = vmatpush1.bf16.xpose.msra.mxu0 0
        %2084 = vmatprep.subr.bf16.mxu0 0
        %2085 = vmatpush1.bf16.xpose.msra.mxu0 0
        %2086 = vmatprep.subr.bf16.mxu0 0
        %2087 = vmatpush1.bf16.xpose.msra.mxu0 0
        %2088 = vmatprep.subr.bf16.mxu0 0
        %2089 = vmatpush1.bf16.xpose.msra.mxu0 0
        %2090 = vmatprep.subr.bf16.mxu0 0
        %2091 = vmatpush1.bf16.xpose.msra.mxu0 0
        %2092 = vmatprep.subr.bf16.mxu0 0
        %2093 = vmatpush1.bf16.xpose.msra.mxu0 0
        %2094 = vmatprep.subr.bf16.mxu0 0
        %2095 = vmatpush1.bf16.xpose.msra.mxu0 0
        %2096 = vmatprep.subr.bf16.mxu0 0
        %2097 = vmatpush1.bf16.xpose.msra.mxu0 0
        %2098 = vmatprep.subr.bf16.mxu0 0
        %2099 = vmatpush1.bf16.xpose.msra.mxu0 0
        %2100 = vmatprep.subr.bf16.mxu0 0
        %2101 = vmatpush1.bf16.xpose.msra.mxu0 0
        %2102 = vmatprep.mubr.bf16.mxu0 0
        %2103 = vmatmul.mubr.bf16.gmra.mrb[0].mxu0 %v2065
        %v2104 = vpop.f32.mrb[0].mxu0
        %v2105 = vadd.f32 0.0, %v2104
        %v2106 = vpop.f32.mrb[0].mxu0
        %v2107 = vpop.f32.mrb[0].mxu0
        %v2108 = vpop.f32.mrb[0].mxu0
        %2109 = vdwg.mxu0
        %v2111 = vsel %vm1557, %v1433, 0
        %v2114 = vsel %vm1557, %v1493, 0
        %2116 = vmatprep.subr.bf16.mxu0 0
        %2117 = vmatpush1.bf16.xpose.msra.mxu0 %v2114
        %2118 = vmatprep.subr.bf16.mxu0 0
        %2119 = vmatpush1.bf16.xpose.msra.mxu0 0
        %2120 = vmatprep.subr.bf16.mxu0 0
        %2121 = vmatpush1.bf16.xpose.msra.mxu0 0
        %2122 = vmatprep.subr.bf16.mxu0 0
        %2123 = vmatpush1.bf16.xpose.msra.mxu0 0
        %2124 = vmatprep.subr.bf16.mxu0 0
        %2125 = vmatpush1.bf16.xpose.msra.mxu0 0
        %2126 = vmatprep.subr.bf16.mxu0 0
        %2127 = vmatpush1.bf16.xpose.msra.mxu0 0
        %2128 = vmatprep.subr.bf16.mxu0 0
        %2129 = vmatpush1.bf16.xpose.msra.mxu0 0
        %2130 = vmatprep.subr.bf16.mxu0 0
        %2131 = vmatpush1.bf16.xpose.msra.mxu0 0
        %2132 = vmatprep.subr.bf16.mxu0 0
        %2133 = vmatpush1.bf16.xpose.msra.mxu0 0
        %2134 = vmatprep.subr.bf16.mxu0 0
        %2135 = vmatpush1.bf16.xpose.msra.mxu0 0
        %2136 = vmatprep.subr.bf16.mxu0 0
        %2137 = vmatpush1.bf16.xpose.msra.mxu0 0
        %2138 = vmatprep.subr.bf16.mxu0 0
        %2139 = vmatpush1.bf16.xpose.msra.mxu0 0
        %2140 = vmatprep.subr.bf16.mxu0 0
        %2141 = vmatpush1.bf16.xpose.msra.mxu0 0
        %2142 = vmatprep.subr.bf16.mxu0 0
        %2143 = vmatpush1.bf16.xpose.msra.mxu0 0
        %2144 = vmatprep.subr.bf16.mxu0 0
        %2145 = vmatpush1.bf16.xpose.msra.mxu0 0
        %2146 = vmatprep.subr.bf16.mxu0 0
        %2147 = vmatpush1.bf16.xpose.msra.mxu0 0
        %2148 = vmatprep.mubr.bf16.mxu0 0
        %2149 = vmatmul.mubr.bf16.gmra.mrb[0].mxu0 %v2111
        %v2150 = vpop.f32.mrb[0].mxu0
        %v2151 = vadd.f32 0.0, %v2150
        %v2152 = vpop.f32.mrb[0].mxu0
        %v2153 = vpop.f32.mrb[0].mxu0
        %v2154 = vpop.f32.mrb[0].mxu0
        %2155 = vdwg.mxu0
        %v2157 = vsel %vm1557, %v1434, 0
        %v2160 = vsel %vm1557, %v1494, 0
        %2162 = vmatprep.subr.bf16.mxu0 0
        %2163 = vmatpush1.bf16.xpose.msra.mxu0 %v2160
        %2164 = vmatprep.subr.bf16.mxu0 0
        %2165 = vmatpush1.bf16.xpose.msra.mxu0 0
        %2166 = vmatprep.subr.bf16.mxu0 0
        %2167 = vmatpush1.bf16.xpose.msra.mxu0 0
        %2168 = vmatprep.subr.bf16.mxu0 0
        %2169 = vmatpush1.bf16.xpose.msra.mxu0 0
        %2170 = vmatprep.subr.bf16.mxu0 0
        %2171 = vmatpush1.bf16.xpose.msra.mxu0 0
        %2172 = vmatprep.subr.bf16.mxu0 0
        %2173 = vmatpush1.bf16.xpose.msra.mxu0 0
        %2174 = vmatprep.subr.bf16.mxu0 0
        %2175 = vmatpush1.bf16.xpose.msra.mxu0 0
        %2176 = vmatprep.subr.bf16.mxu0 0
        %2177 = vmatpush1.bf16.xpose.msra.mxu0 0
        %2178 = vmatprep.subr.bf16.mxu0 0
        %2179 = vmatpush1.bf16.xpose.msra.mxu0 0
        %2180 = vmatprep.subr.bf16.mxu0 0
        %2181 = vmatpush1.bf16.xpose.msra.mxu0 0
        %2182 = vmatprep.subr.bf16.mxu0 0
        %2183 = vmatpush1.bf16.xpose.msra.mxu0 0
        %2184 = vmatprep.subr.bf16.mxu0 0
        %2185 = vmatpush1.bf16.xpose.msra.mxu0 0
        %2186 = vmatprep.subr.bf16.mxu0 0
        %2187 = vmatpush1.bf16.xpose.msra.mxu0 0
        %2188 = vmatprep.subr.bf16.mxu0 0
        %2189 = vmatpush1.bf16.xpose.msra.mxu0 0
        %2190 = vmatprep.subr.bf16.mxu0 0
        %2191 = vmatpush1.bf16.xpose.msra.mxu0 0
        %2192 = vmatprep.subr.bf16.mxu0 0
        %2193 = vmatpush1.bf16.xpose.msra.mxu0 0
        %2194 = vmatprep.mubr.bf16.mxu0 0
        %2195 = vmatmul.mubr.bf16.gmra.mrb[0].mxu0 %v2157
        %v2196 = vpop.f32.mrb[0].mxu0
        %v2197 = vadd.f32 0.0, %v2196
        %v2198 = vpop.f32.mrb[0].mxu0
        %v2199 = vpop.f32.mrb[0].mxu0
        %v2200 = vpop.f32.mrb[0].mxu0
        %2201 = vdwg.mxu0
        %v2203 = vsel %vm1557, %v1435, 0
        %v2206 = vsel %vm1557, %v1495, 0
        %2208 = vmatprep.subr.bf16.mxu0 0
        %2209 = vmatpush1.bf16.xpose.msra.mxu0 %v2206
        %2210 = vmatprep.subr.bf16.mxu0 0
        %2211 = vmatpush1.bf16.xpose.msra.mxu0 0
        %2212 = vmatprep.subr.bf16.mxu0 0
        %2213 = vmatpush1.bf16.xpose.msra.mxu0 0
        %2214 = vmatprep.subr.bf16.mxu0 0
        %2215 = vmatpush1.bf16.xpose.msra.mxu0 0
        %2216 = vmatprep.subr.bf16.mxu0 0
        %2217 = vmatpush1.bf16.xpose.msra.mxu0 0
        %2218 = vmatprep.subr.bf16.mxu0 0
        %2219 = vmatpush1.bf16.xpose.msra.mxu0 0
        %2220 = vmatprep.subr.bf16.mxu0 0
        %2221 = vmatpush1.bf16.xpose.msra.mxu0 0
        %2222 = vmatprep.subr.bf16.mxu0 0
        %2223 = vmatpush1.bf16.xpose.msra.mxu0 0
        %2224 = vmatprep.subr.bf16.mxu0 0
        %2225 = vmatpush1.bf16.xpose.msra.mxu0 0
        %2226 = vmatprep.subr.bf16.mxu0 0
        %2227 = vmatpush1.bf16.xpose.msra.mxu0 0
        %2228 = vmatprep.subr.bf16.mxu0 0
        %2229 = vmatpush1.bf16.xpose.msra.mxu0 0
        %2230 = vmatprep.subr.bf16.mxu0 0
        %2231 = vmatpush1.bf16.xpose.msra.mxu0 0
        %2232 = vmatprep.subr.bf16.mxu0 0
        %2233 = vmatpush1.bf16.xpose.msra.mxu0 0
        %2234 = vmatprep.subr.bf16.mxu0 0
        %2235 = vmatpush1.bf16.xpose.msra.mxu0 0
        %2236 = vmatprep.subr.bf16.mxu0 0
        %2237 = vmatpush1.bf16.xpose.msra.mxu0 0
        %2238 = vmatprep.subr.bf16.mxu0 0
        %2239 = vmatpush1.bf16.xpose.msra.mxu0 0
        %2240 = vmatprep.mubr.bf16.mxu0 0
        %2241 = vmatmul.mubr.bf16.gmra.mrb[0].mxu0 %v2203
        %v2242 = vpop.f32.mrb[0].mxu0
        %v2243 = vadd.f32 0.0, %v2242
        %v2244 = vpop.f32.mrb[0].mxu0
        %v2245 = vpop.f32.mrb[0].mxu0
        %v2246 = vpop.f32.mrb[0].mxu0
        %2247 = vdwg.mxu0
        %v2249 = vsel %vm1557, %v1436, 0
        %v2252 = vsel %vm1557, %v1496, 0
        %2254 = vmatprep.subr.bf16.mxu0 0
        %2255 = vmatpush1.bf16.xpose.msra.mxu0 %v2252
        %2256 = vmatprep.subr.bf16.mxu0 0
        %2257 = vmatpush1.bf16.xpose.msra.mxu0 0
        %2258 = vmatprep.subr.bf16.mxu0 0
        %2259 = vmatpush1.bf16.xpose.msra.mxu0 0
        %2260 = vmatprep.subr.bf16.mxu0 0
        %2261 = vmatpush1.bf16.xpose.msra.mxu0 0
        %2262 = vmatprep.subr.bf16.mxu0 0
        %2263 = vmatpush1.bf16.xpose.msra.mxu0 0
        %2264 = vmatprep.subr.bf16.mxu0 0
        %2265 = vmatpush1.bf16.xpose.msra.mxu0 0
        %2266 = vmatprep.subr.bf16.mxu0 0
        %2267 = vmatpush1.bf16.xpose.msra.mxu0 0
        %2268 = vmatprep.subr.bf16.mxu0 0
        %2269 = vmatpush1.bf16.xpose.msra.mxu0 0
        %2270 = vmatprep.subr.bf16.mxu0 0
        %2271 = vmatpush1.bf16.xpose.msra.mxu0 0
        %2272 = vmatprep.subr.bf16.mxu0 0
        %2273 = vmatpush1.bf16.xpose.msra.mxu0 0
        %2274 = vmatprep.subr.bf16.mxu0 0
        %2275 = vmatpush1.bf16.xpose.msra.mxu0 0
        %2276 = vmatprep.subr.bf16.mxu0 0
        %2277 = vmatpush1.bf16.xpose.msra.mxu0 0
        %2278 = vmatprep.subr.bf16.mxu0 0
        %2279 = vmatpush1.bf16.xpose.msra.mxu0 0
        %2280 = vmatprep.subr.bf16.mxu0 0
        %2281 = vmatpush1.bf16.xpose.msra.mxu0 0
        %2282 = vmatprep.subr.bf16.mxu0 0
        %2283 = vmatpush1.bf16.xpose.msra.mxu0 0
        %2284 = vmatprep.subr.bf16.mxu0 0
        %2285 = vmatpush1.bf16.xpose.msra.mxu0 0
        %2286 = vmatprep.mubr.bf16.mxu0 0
        %2287 = vmatmul.mubr.bf16.gmra.mrb[0].mxu0 %v2249
        %v2288 = vpop.f32.mrb[0].mxu0
        %v2289 = vadd.f32 0.0, %v2288
        %v2290 = vpop.f32.mrb[0].mxu0
        %v2291 = vpop.f32.mrb[0].mxu0
        %v2292 = vpop.f32.mrb[0].mxu0
        %2293 = vdwg.mxu0
        %v2294 = vmul.f32 %v1599, 0.25
        %v2295 = vmul.f32 %v1645, 0.25
        %v2296 = vmul.f32 %v1691, 0.25
        %v2297 = vmul.f32 %v1737, 0.25
        %v2298 = vmul.f32 %v1783, 0.25
        %v2299 = vmul.f32 %v1829, 0.25
        %v2300 = vmul.f32 %v1875, 0.25
        %v2301 = vmul.f32 %v1921, 0.25
        %v2302 = vmul.f32 %v1967, 0.25
        %v2303 = vmul.f32 %v2013, 0.25
        %v2304 = vmul.f32 %v2059, 0.25
        %v2305 = vmul.f32 %v2105, 0.25
        %v2306 = vmul.f32 %v2151, 0.25
        %v2307 = vmul.f32 %v2197, 0.25
        %v2308 = vmul.f32 %v2243, 0.25
        %v2309 = vmul.f32 %v2289, 0.25
        %vm2310 = vcmask 64512
        %v2311 = vsel %vm2310, %v2294, -inf
        %2312 = vmax.xlane.f32.xlu0 %v2311
        %v2313 = vpop.xlane.xlu0 %2312
        %v2314 = vsel %vm2310, %v2295, -inf
        %2315 = vmax.xlane.f32.xlu0 %v2314
        %v2316 = vpop.xlane.xlu0 %2315
        %v2317 = vsel %vm2310, %v2296, -inf
        %2318 = vmax.xlane.f32.xlu0 %v2317
        %v2319 = vpop.xlane.xlu0 %2318
        %v2320 = vsel %vm2310, %v2297, -inf
        %2321 = vmax.xlane.f32.xlu0 %v2320
        %v2322 = vpop.xlane.xlu0 %2321
        %v2323 = vsel %vm2310, %v2298, -inf
        %2324 = vmax.xlane.f32.xlu0 %v2323
        %v2325 = vpop.xlane.xlu0 %2324
        %v2326 = vsel %vm2310, %v2299, -inf
        %2327 = vmax.xlane.f32.xlu0 %v2326
        %v2328 = vpop.xlane.xlu0 %2327
        %v2329 = vsel %vm2310, %v2300, -inf
        %2330 = vmax.xlane.f32.xlu0 %v2329
        %v2331 = vpop.xlane.xlu0 %2330
        %v2332 = vsel %vm2310, %v2301, -inf
        %2333 = vmax.xlane.f32.xlu0 %v2332
        %v2334 = vpop.xlane.xlu0 %2333
        %v2335 = vsel %vm2310, %v2302, -inf
        %2336 = vmax.xlane.f32.xlu0 %v2335
        %v2337 = vpop.xlane.xlu0 %2336
        %v2338 = vsel %vm2310, %v2303, -inf
        %2339 = vmax.xlane.f32.xlu0 %v2338
        %v2340 = vpop.xlane.xlu0 %2339
        %v2341 = vsel %vm2310, %v2304, -inf
        %2342 = vmax.xlane.f32.xlu0 %v2341
        %v2343 = vpop.xlane.xlu0 %2342
        %v2344 = vsel %vm2310, %v2305, -inf
        %2345 = vmax.xlane.f32.xlu0 %v2344
        %v2346 = vpop.xlane.xlu0 %2345
        %v2347 = vsel %vm2310, %v2306, -inf
        %2348 = vmax.xlane.f32.xlu0 %v2347
        %v2349 = vpop.xlane.xlu0 %2348
        %v2350 = vsel %vm2310, %v2307, -inf
        %2351 = vmax.xlane.f32.xlu0 %v2350
        %v2352 = vpop.xlane.xlu0 %2351
        %v2353 = vsel %vm2310, %v2308, -inf
        %2354 = vmax.xlane.f32.xlu0 %v2353
        %v2355 = vpop.xlane.xlu0 %2354
        %v2356 = vsel %vm2310, %v2309, -inf
        %2357 = vmax.xlane.f32.xlu0 %v2356
        %v2358 = vpop.xlane.xlu0 %2357
        %v2359 = vsub.f32 %v2294, %v2313
        %v2360 = vsub.f32 %v2295, %v2316
        %v2361 = vsub.f32 %v2296, %v2319
        %v2362 = vsub.f32 %v2297, %v2322
        %v2363 = vsub.f32 %v2298, %v2325
        %v2364 = vsub.f32 %v2299, %v2328
        %v2365 = vsub.f32 %v2300, %v2331
        %v2366 = vsub.f32 %v2301, %v2334
        %v2367 = vsub.f32 %v2302, %v2337
        %v2368 = vsub.f32 %v2303, %v2340
        %v2369 = vsub.f32 %v2304, %v2343
        %v2370 = vsub.f32 %v2305, %v2346
        %v2371 = vsub.f32 %v2306, %v2349
        %v2372 = vsub.f32 %v2307, %v2352
        %v2373 = vsub.f32 %v2308, %v2355
        %v2374 = vsub.f32 %v2309, %v2358
        %v2375 = vmul.f32 %v2359, 1.442695
        %v2376 = vpow.pop %v2375
        %v2377 = vmul.f32 %v2360, 1.442695
        %v2378 = vpow.pop %v2377
        %v2379 = vmul.f32 %v2361, 1.442695
        %v2380 = vpow.pop %v2379
        %v2381 = vmul.f32 %v2362, 1.442695
        %v2382 = vpow.pop %v2381
        %v2383 = vmul.f32 %v2363, 1.442695
        %v2384 = vpow.pop %v2383
        %v2385 = vmul.f32 %v2364, 1.442695
        %v2386 = vpow.pop %v2385
        %v2387 = vmul.f32 %v2365, 1.442695
        %v2388 = vpow.pop %v2387
        %v2389 = vmul.f32 %v2366, 1.442695
        %v2390 = vpow.pop %v2389
        %v2391 = vmul.f32 %v2367, 1.442695
        %v2392 = vpow.pop %v2391
        %v2393 = vmul.f32 %v2368, 1.442695
        %v2394 = vpow.pop %v2393
        %v2395 = vmul.f32 %v2369, 1.442695
        %v2396 = vpow.pop %v2395
        %v2397 = vmul.f32 %v2370, 1.442695
        %v2398 = vpow.pop %v2397
        %v2399 = vmul.f32 %v2371, 1.442695
        %v2400 = vpow.pop %v2399
        %v2401 = vmul.f32 %v2372, 1.442695
        %v2402 = vpow.pop %v2401
        %v2403 = vmul.f32 %v2373, 1.442695
        %v2404 = vpow.pop %v2403
        %v2405 = vmul.f32 %v2374, 1.442695
        %v2406 = vpow.pop %v2405
        %v2407 = vsel %vm2310, %v2376, 0.0
        %2408 = vadd.xlane.f32.xlu0 %v2407
        %v2409 = vpop.xlane.xlu0 %2408
        %v2410 = vsel %vm2310, %v2378, 0.0
        %2411 = vadd.xlane.f32.xlu0 %v2410
        %v2412 = vpop.xlane.xlu0 %2411
        %v2413 = vsel %vm2310, %v2380, 0.0
        %2414 = vadd.xlane.f32.xlu0 %v2413
        %v2415 = vpop.xlane.xlu0 %2414
        %v2416 = vsel %vm2310, %v2382, 0.0
        %2417 = vadd.xlane.f32.xlu0 %v2416
        %v2418 = vpop.xlane.xlu0 %2417
        %v2419 = vsel %vm2310, %v2384, 0.0
        %2420 = vadd.xlane.f32.xlu0 %v2419
        %v2421 = vpop.xlane.xlu0 %2420
        %v2422 = vsel %vm2310, %v2386, 0.0
        %2423 = vadd.xlane.f32.xlu0 %v2422
        %v2424 = vpop.xlane.xlu0 %2423
        %v2425 = vsel %vm2310, %v2388, 0.0
        %2426 = vadd.xlane.f32.xlu0 %v2425
        %v2427 = vpop.xlane.xlu0 %2426
        %v2428 = vsel %vm2310, %v2390, 0.0
        %2429 = vadd.xlane.f32.xlu0 %v2428
        %v2430 = vpop.xlane.xlu0 %2429
        %v2431 = vsel %vm2310, %v2392, 0.0
        %2432 = vadd.xlane.f32.xlu0 %v2431
        %v2433 = vpop.xlane.xlu0 %2432
        %v2434 = vsel %vm2310, %v2394, 0.0
        %2435 = vadd.xlane.f32.xlu0 %v2434
        %v2436 = vpop.xlane.xlu0 %2435
        %v2437 = vsel %vm2310, %v2396, 0.0
        %2438 = vadd.xlane.f32.xlu0 %v2437
        %v2439 = vpop.xlane.xlu0 %2438
        %v2440 = vsel %vm2310, %v2398, 0.0
        %2441 = vadd.xlane.f32.xlu0 %v2440
        %v2442 = vpop.xlane.xlu0 %2441
        %v2443 = vsel %vm2310, %v2400, 0.0
        %2444 = vadd.xlane.f32.xlu0 %v2443
        %v2445 = vpop.xlane.xlu0 %2444
        %v2446 = vsel %vm2310, %v2402, 0.0
        %2447 = vadd.xlane.f32.xlu0 %v2446
        %v2448 = vpop.xlane.xlu0 %2447
        %v2449 = vsel %vm2310, %v2404, 0.0
        %2450 = vadd.xlane.f32.xlu0 %v2449
        %v2451 = vpop.xlane.xlu0 %2450
        %v2452 = vsel %vm2310, %v2406, 0.0
        %2453 = vadd.xlane.f32.xlu0 %v2452
        %v2454 = vpop.xlane.xlu0 %2453
        %v2455 = vrcp.pop %v2409
        %v2456 = vmul.f32 %v2376, %v2455
        %v2457 = vrcp.pop %v2412
        %v2458 = vmul.f32 %v2378, %v2457
        %v2459 = vrcp.pop %v2415
        %v2460 = vmul.f32 %v2380, %v2459
        %v2461 = vrcp.pop %v2418
        %v2462 = vmul.f32 %v2382, %v2461
        %v2463 = vrcp.pop %v2421
        %v2464 = vmul.f32 %v2384, %v2463
        %v2465 = vrcp.pop %v2424
        %v2466 = vmul.f32 %v2386, %v2465
        %v2467 = vrcp.pop %v2427
        %v2468 = vmul.f32 %v2388, %v2467
        %v2469 = vrcp.pop %v2430
        %v2470 = vmul.f32 %v2390, %v2469
        %v2471 = vrcp.pop %v2433
        %v2472 = vmul.f32 %v2392, %v2471
        %v2473 = vrcp.pop %v2436
        %v2474 = vmul.f32 %v2394, %v2473
        %v2475 = vrcp.pop %v2439
        %v2476 = vmul.f32 %v2396, %v2475
        %v2477 = vrcp.pop %v2442
        %v2478 = vmul.f32 %v2398, %v2477
        %v2479 = vrcp.pop %v2445
        %v2480 = vmul.f32 %v2400, %v2479
        %v2481 = vrcp.pop %v2448
        %v2482 = vmul.f32 %v2402, %v2481
        %v2483 = vrcp.pop %v2451
        %v2484 = vmul.f32 %v2404, %v2483
        %v2485 = vrcp.pop %v2454
        %v2486 = vmul.f32 %v2406, %v2485
        %2487 = vst.msk [vmem:[%s942] sm:$0xff] %vm2310, %v2456
        %2488 = vst.msk [vmem:[%s942 + $0x8] sm:$0xff] %vm2310, %v2458
        %2489 = vst.msk [vmem:[%s942 + $0x10] sm:$0xff] %vm2310, %v2460
        %2490 = vst.msk [vmem:[%s942 + $0x18] sm:$0xff] %vm2310, %v2462
        %2491 = vst.msk [vmem:[%s942 + $0x20] sm:$0xff] %vm2310, %v2464
        %2492 = vst.msk [vmem:[%s942 + $0x28] sm:$0xff] %vm2310, %v2466
        %2493 = vst.msk [vmem:[%s942 + $0x30] sm:$0xff] %vm2310, %v2468
        %2494 = vst.msk [vmem:[%s942 + $0x38] sm:$0xff] %vm2310, %v2470
        %2495 = vst.msk [vmem:[%s942 + $0x40] sm:$0xff] %vm2310, %v2472
        %2496 = vst.msk [vmem:[%s942 + $0x48] sm:$0xff] %vm2310, %v2474
        %2497 = vst.msk [vmem:[%s942 + $0x50] sm:$0xff] %vm2310, %v2476
        %2498 = vst.msk [vmem:[%s942 + $0x58] sm:$0xff] %vm2310, %v2478
        %2499 = vst.msk [vmem:[%s942 + $0x60] sm:$0xff] %vm2310, %v2480
        %2500 = vst.msk [vmem:[%s942 + $0x68] sm:$0xff] %vm2310, %v2482
        %2501 = vst.msk [vmem:[%s942 + $0x70] sm:$0xff] %vm2310, %v2484
        %2502 = vst.msk [vmem:[%s942 + $0x78] sm:$0xff] %vm2310, %v2486
        %v2503 = vpack.c.bf16 %v2456, %v2456
        %v2504 = vpack.c.bf16 %v2458, %v2458
        %v2505 = vpack.c.bf16 %v2460, %v2460
        %v2506 = vpack.c.bf16 %v2462, %v2462
        %v2507 = vpack.c.bf16 %v2464, %v2464
        %v2508 = vpack.c.bf16 %v2466, %v2466
        %v2509 = vpack.c.bf16 %v2468, %v2468
        %v2510 = vpack.c.bf16 %v2470, %v2470
        %v2511 = vpack.c.bf16 %v2472, %v2472
        %v2512 = vpack.c.bf16 %v2474, %v2474
        %v2513 = vpack.c.bf16 %v2476, %v2476
        %v2514 = vpack.c.bf16 %v2478, %v2478
        %v2515 = vpack.c.bf16 %v2480, %v2480
        %v2516 = vpack.c.bf16 %v2482, %v2482
        %v2517 = vpack.c.bf16 %v2484, %v2484
        %v2518 = vpack.c.bf16 %v2486, %v2486
        %v2520 = vsel %vm2310, %v2503, 0
        %vm2522 = vcmask 1043456
        %v2524 = vsel %vm2522, %v1541, 0
        %2526 = vmatprep.subr.bf16.mxu0 0
        %2527 = vmatpush1.bf16.msra.mxu0 %v2524
        %2528 = vmatprep.subr.bf16.mxu0 0
        %2529 = vmatpush1.bf16.msra.mxu0 0
        %2530 = vmatprep.subr.bf16.mxu0 0
        %2531 = vmatpush1.bf16.msra.mxu0 0
        %2532 = vmatprep.subr.bf16.mxu0 0
        %2533 = vmatpush1.bf16.msra.mxu0 0
        %2534 = vmatprep.subr.bf16.mxu0 0
        %2535 = vmatpush1.bf16.msra.mxu0 0
        %2536 = vmatprep.subr.bf16.mxu0 0
        %2537 = vmatpush1.bf16.msra.mxu0 0
        %2538 = vmatprep.subr.bf16.mxu0 0
        %2539 = vmatpush1.bf16.msra.mxu0 0
        %2540 = vmatprep.subr.bf16.mxu0 0
        %2541 = vmatpush1.bf16.msra.mxu0 0
        %2542 = vmatprep.subr.bf16.mxu0 0
        %2543 = vmatpush1.bf16.msra.mxu0 0
        %2544 = vmatprep.subr.bf16.mxu0 0
        %2545 = vmatpush1.bf16.msra.mxu0 0
        %2546 = vmatprep.subr.bf16.mxu0 0
        %2547 = vmatpush1.bf16.msra.mxu0 0
        %2548 = vmatprep.subr.bf16.mxu0 0
        %2549 = vmatpush1.bf16.msra.mxu0 0
        %2550 = vmatprep.subr.bf16.mxu0 0
        %2551 = vmatpush1.bf16.msra.mxu0 0
        %2552 = vmatprep.subr.bf16.mxu0 0
        %2553 = vmatpush1.bf16.msra.mxu0 0
        %2554 = vmatprep.subr.bf16.mxu0 0
        %2555 = vmatpush1.bf16.msra.mxu0 0
        %2556 = vmatprep.subr.bf16.mxu0 0
        %2557 = vmatpush1.bf16.msra.mxu0 0
        %2558 = vmatprep.mubr.bf16.mxu0 0
        %2559 = vmatmul.mubr.bf16.gmra.mrb[0].mxu0 %v2520
        %v2560 = vpop.f32.mrb[0].mxu0
        %v2561 = vadd.f32 0.0, %v2560
        %v2562 = vpop.f32.mrb[0].mxu0
        %v2563 = vpop.f32.mrb[0].mxu0
        %v2564 = vpop.f32.mrb[0].mxu0
        %2565 = vdwg.mxu0
        %v2567 = vsel %vm2310, %v2504, 0
        %v2570 = vsel %vm2522, %v1542, 0
        %2572 = vmatprep.subr.bf16.mxu0 0
        %2573 = vmatpush1.bf16.msra.mxu0 %v2570
        %2574 = vmatprep.subr.bf16.mxu0 0
        %2575 = vmatpush1.bf16.msra.mxu0 0
        %2576 = vmatprep.subr.bf16.mxu0 0
        %2577 = vmatpush1.bf16.msra.mxu0 0
        %2578 = vmatprep.subr.bf16.mxu0 0
        %2579 = vmatpush1.bf16.msra.mxu0 0
        %2580 = vmatprep.subr.bf16.mxu0 0
        %2581 = vmatpush1.bf16.msra.mxu0 0
        %2582 = vmatprep.subr.bf16.mxu0 0
        %2583 = vmatpush1.bf16.msra.mxu0 0
        %2584 = vmatprep.subr.bf16.mxu0 0
        %2585 = vmatpush1.bf16.msra.mxu0 0
        %2586 = vmatprep.subr.bf16.mxu0 0
        %2587 = vmatpush1.bf16.msra.mxu0 0
        %2588 = vmatprep.subr.bf16.mxu0 0
        %2589 = vmatpush1.bf16.msra.mxu0 0
        %2590 = vmatprep.subr.bf16.mxu0 0
        %2591 = vmatpush1.bf16.msra.mxu0 0
        %2592 = vmatprep.subr.bf16.mxu0 0
        %2593 = vmatpush1.bf16.msra.mxu0 0
        %2594 = vmatprep.subr.bf16.mxu0 0
        %2595 = vmatpush1.bf16.msra.mxu0 0
        %2596 = vmatprep.subr.bf16.mxu0 0
        %2597 = vmatpush1.bf16.msra.mxu0 0
        %2598 = vmatprep.subr.bf16.mxu0 0
        %2599 = vmatpush1.bf16.msra.mxu0 0
        %2600 = vmatprep.subr.bf16.mxu0 0
        %2601 = vmatpush1.bf16.msra.mxu0 0
        %2602 = vmatprep.subr.bf16.mxu0 0
        %2603 = vmatpush1.bf16.msra.mxu0 0
        %2604 = vmatprep.mubr.bf16.mxu0 0
        %2605 = vmatmul.mubr.bf16.gmra.mrb[0].mxu0 %v2567
        %v2606 = vpop.f32.mrb[0].mxu0
        %v2607 = vadd.f32 0.0, %v2606
        %v2608 = vpop.f32.mrb[0].mxu0
        %v2609 = vpop.f32.mrb[0].mxu0
        %v2610 = vpop.f32.mrb[0].mxu0
        %2611 = vdwg.mxu0
        %v2613 = vsel %vm2310, %v2505, 0
        %v2616 = vsel %vm2522, %v1543, 0
        %2618 = vmatprep.subr.bf16.mxu0 0
        %2619 = vmatpush1.bf16.msra.mxu0 %v2616
        %2620 = vmatprep.subr.bf16.mxu0 0
        %2621 = vmatpush1.bf16.msra.mxu0 0
        %2622 = vmatprep.subr.bf16.mxu0 0
        %2623 = vmatpush1.bf16.msra.mxu0 0
        %2624 = vmatprep.subr.bf16.mxu0 0
        %2625 = vmatpush1.bf16.msra.mxu0 0
        %2626 = vmatprep.subr.bf16.mxu0 0
        %2627 = vmatpush1.bf16.msra.mxu0 0
        %2628 = vmatprep.subr.bf16.mxu0 0
        %2629 = vmatpush1.bf16.msra.mxu0 0
        %2630 = vmatprep.subr.bf16.mxu0 0
        %2631 = vmatpush1.bf16.msra.mxu0 0
        %2632 = vmatprep.subr.bf16.mxu0 0
        %2633 = vmatpush1.bf16.msra.mxu0 0
        %2634 = vmatprep.subr.bf16.mxu0 0
        %2635 = vmatpush1.bf16.msra.mxu0 0
        %2636 = vmatprep.subr.bf16.mxu0 0
        %2637 = vmatpush1.bf16.msra.mxu0 0
        %2638 = vmatprep.subr.bf16.mxu0 0
        %2639 = vmatpush1.bf16.msra.mxu0 0
        %2640 = vmatprep.subr.bf16.mxu0 0
        %2641 = vmatpush1.bf16.msra.mxu0 0
        %2642 = vmatprep.subr.bf16.mxu0 0
        %2643 = vmatpush1.bf16.msra.mxu0 0
        %2644 = vmatprep.subr.bf16.mxu0 0
        %2645 = vmatpush1.bf16.msra.mxu0 0
        %2646 = vmatprep.subr.bf16.mxu0 0
        %2647 = vmatpush1.bf16.msra.mxu0 0
        %2648 = vmatprep.subr.bf16.mxu0 0
        %2649 = vmatpush1.bf16.msra.mxu0 0
        %2650 = vmatprep.mubr.bf16.mxu0 0
        %2651 = vmatmul.mubr.bf16.gmra.mrb[0].mxu0 %v2613
        %v2652 = vpop.f32.mrb[0].mxu0
        %v2653 = vadd.f32 0.0, %v2652
        %v2654 = vpop.f32.mrb[0].mxu0
        %v2655 = vpop.f32.mrb[0].mxu0
        %v2656 = vpop.f32.mrb[0].mxu0
        %2657 = vdwg.mxu0
        %v2659 = vsel %vm2310, %v2506, 0
        %v2662 = vsel %vm2522, %v1544, 0
        %2664 = vmatprep.subr.bf16.mxu0 0
        %2665 = vmatpush1.bf16.msra.mxu0 %v2662
        %2666 = vmatprep.subr.bf16.mxu0 0
        %2667 = vmatpush1.bf16.msra.mxu0 0
        %2668 = vmatprep.subr.bf16.mxu0 0
        %2669 = vmatpush1.bf16.msra.mxu0 0
        %2670 = vmatprep.subr.bf16.mxu0 0
        %2671 = vmatpush1.bf16.msra.mxu0 0
        %2672 = vmatprep.subr.bf16.mxu0 0
        %2673 = vmatpush1.bf16.msra.mxu0 0
        %2674 = vmatprep.subr.bf16.mxu0 0
        %2675 = vmatpush1.bf16.msra.mxu0 0
        %2676 = vmatprep.subr.bf16.mxu0 0
        %2677 = vmatpush1.bf16.msra.mxu0 0
        %2678 = vmatprep.subr.bf16.mxu0 0
        %2679 = vmatpush1.bf16.msra.mxu0 0
        %2680 = vmatprep.subr.bf16.mxu0 0
        %2681 = vmatpush1.bf16.msra.mxu0 0
        %2682 = vmatprep.subr.bf16.mxu0 0
        %2683 = vmatpush1.bf16.msra.mxu0 0
        %2684 = vmatprep.subr.bf16.mxu0 0
        %2685 = vmatpush1.bf16.msra.mxu0 0
        %2686 = vmatprep.subr.bf16.mxu0 0
        %2687 = vmatpush1.bf16.msra.mxu0 0
        %2688 = vmatprep.subr.bf16.mxu0 0
        %2689 = vmatpush1.bf16.msra.mxu0 0
        %2690 = vmatprep.subr.bf16.mxu0 0
        %2691 = vmatpush1.bf16.msra.mxu0 0
        %2692 = vmatprep.subr.bf16.mxu0 0
        %2693 = vmatpush1.bf16.msra.mxu0 0
        %2694 = vmatprep.subr.bf16.mxu0 0
        %2695 = vmatpush1.bf16.msra.mxu0 0
        %2696 = vmatprep.mubr.bf16.mxu0 0
        %2697 = vmatmul.mubr.bf16.gmra.mrb[0].mxu0 %v2659
        %v2698 = vpop.f32.mrb[0].mxu0
        %v2699 = vadd.f32 0.0, %v2698
        %v2700 = vpop.f32.mrb[0].mxu0
        %v2701 = vpop.f32.mrb[0].mxu0
        %v2702 = vpop.f32.mrb[0].mxu0
        %2703 = vdwg.mxu0
        %v2705 = vsel %vm2310, %v2507, 0
        %v2708 = vsel %vm2522, %v1545, 0
        %2710 = vmatprep.subr.bf16.mxu0 0
        %2711 = vmatpush1.bf16.msra.mxu0 %v2708
        %2712 = vmatprep.subr.bf16.mxu0 0
        %2713 = vmatpush1.bf16.msra.mxu0 0
        %2714 = vmatprep.subr.bf16.mxu0 0
        %2715 = vmatpush1.bf16.msra.mxu0 0
        %2716 = vmatprep.subr.bf16.mxu0 0
        %2717 = vmatpush1.bf16.msra.mxu0 0
        %2718 = vmatprep.subr.bf16.mxu0 0
        %2719 = vmatpush1.bf16.msra.mxu0 0
        %2720 = vmatprep.subr.bf16.mxu0 0
        %2721 = vmatpush1.bf16.msra.mxu0 0
        %2722 = vmatprep.subr.bf16.mxu0 0
        %2723 = vmatpush1.bf16.msra.mxu0 0
        %2724 = vmatprep.subr.bf16.mxu0 0
        %2725 = vmatpush1.bf16.msra.mxu0 0
        %2726 = vmatprep.subr.bf16.mxu0 0
        %2727 = vmatpush1.bf16.msra.mxu0 0
        %2728 = vmatprep.subr.bf16.mxu0 0
        %2729 = vmatpush1.bf16.msra.mxu0 0
        %2730 = vmatprep.subr.bf16.mxu0 0
        %2731 = vmatpush1.bf16.msra.mxu0 0
        %2732 = vmatprep.subr.bf16.mxu0 0
        %2733 = vmatpush1.bf16.msra.mxu0 0
        %2734 = vmatprep.subr.bf16.mxu0 0
        %2735 = vmatpush1.bf16.msra.mxu0 0
        %2736 = vmatprep.subr.bf16.mxu0 0
        %2737 = vmatpush1.bf16.msra.mxu0 0
        %2738 = vmatprep.subr.bf16.mxu0 0
        %2739 = vmatpush1.bf16.msra.mxu0 0
        %2740 = vmatprep.subr.bf16.mxu0 0
        %2741 = vmatpush1.bf16.msra.mxu0 0
        %2742 = vmatprep.mubr.bf16.mxu0 0
        %2743 = vmatmul.mubr.bf16.gmra.mrb[0].mxu0 %v2705
        %v2744 = vpop.f32.mrb[0].mxu0
        %v2745 = vadd.f32 0.0, %v2744
        %v2746 = vpop.f32.mrb[0].mxu0
        %v2747 = vpop.f32.mrb[0].mxu0
        %v2748 = vpop.f32.mrb[0].mxu0
        %2749 = vdwg.mxu0
        %v2751 = vsel %vm2310, %v2508, 0
        %v2754 = vsel %vm2522, %v1546, 0
        %2756 = vmatprep.subr.bf16.mxu0 0
        %2757 = vmatpush1.bf16.msra.mxu0 %v2754
        %2758 = vmatprep.subr.bf16.mxu0 0
        %2759 = vmatpush1.bf16.msra.mxu0 0
        %2760 = vmatprep.subr.bf16.mxu0 0
        %2761 = vmatpush1.bf16.msra.mxu0 0
        %2762 = vmatprep.subr.bf16.mxu0 0
        %2763 = vmatpush1.bf16.msra.mxu0 0
        %2764 = vmatprep.subr.bf16.mxu0 0
        %2765 = vmatpush1.bf16.msra.mxu0 0
        %2766 = vmatprep.subr.bf16.mxu0 0
        %2767 = vmatpush1.bf16.msra.mxu0 0
        %2768 = vmatprep.subr.bf16.mxu0 0
        %2769 = vmatpush1.bf16.msra.mxu0 0
        %2770 = vmatprep.subr.bf16.mxu0 0
        %2771 = vmatpush1.bf16.msra.mxu0 0
        %2772 = vmatprep.subr.bf16.mxu0 0
        %2773 = vmatpush1.bf16.msra.mxu0 0
        %2774 = vmatprep.subr.bf16.mxu0 0
        %2775 = vmatpush1.bf16.msra.mxu0 0
        %2776 = vmatprep.subr.bf16.mxu0 0
        %2777 = vmatpush1.bf16.msra.mxu0 0
        %2778 = vmatprep.subr.bf16.mxu0 0
        %2779 = vmatpush1.bf16.msra.mxu0 0
        %2780 = vmatprep.subr.bf16.mxu0 0
        %2781 = vmatpush1.bf16.msra.mxu0 0
        %2782 = vmatprep.subr.bf16.mxu0 0
        %2783 = vmatpush1.bf16.msra.mxu0 0
        %2784 = vmatprep.subr.bf16.mxu0 0
        %2785 = vmatpush1.bf16.msra.mxu0 0
        %2786 = vmatprep.subr.bf16.mxu0 0
        %2787 = vmatpush1.bf16.msra.mxu0 0
        %2788 = vmatprep.mubr.bf16.mxu0 0
        %2789 = vmatmul.mubr.bf16.gmra.mrb[0].mxu0 %v2751
        %v2790 = vpop.f32.mrb[0].mxu0
        %v2791 = vadd.f32 0.0, %v2790
        %v2792 = vpop.f32.mrb[0].mxu0
        %v2793 = vpop.f32.mrb[0].mxu0
        %v2794 = vpop.f32.mrb[0].mxu0
        %2795 = vdwg.mxu0
        %v2797 = vsel %vm2310, %v2509, 0
        %v2800 = vsel %vm2522, %v1547, 0
        %2802 = vmatprep.subr.bf16.mxu0 0
        %2803 = vmatpush1.bf16.msra.mxu0 %v2800
        %2804 = vmatprep.subr.bf16.mxu0 0
        %2805 = vmatpush1.bf16.msra.mxu0 0
        %2806 = vmatprep.subr.bf16.mxu0 0
        %2807 = vmatpush1.bf16.msra.mxu0 0
        %2808 = vmatprep.subr.bf16.mxu0 0
        %2809 = vmatpush1.bf16.msra.mxu0 0
        %2810 = vmatprep.subr.bf16.mxu0 0
        %2811 = vmatpush1.bf16.msra.mxu0 0
        %2812 = vmatprep.subr.bf16.mxu0 0
        %2813 = vmatpush1.bf16.msra.mxu0 0
        %2814 = vmatprep.subr.bf16.mxu0 0
        %2815 = vmatpush1.bf16.msra.mxu0 0
        %2816 = vmatprep.subr.bf16.mxu0 0
        %2817 = vmatpush1.bf16.msra.mxu0 0
        %2818 = vmatprep.subr.bf16.mxu0 0
        %2819 = vmatpush1.bf16.msra.mxu0 0
        %2820 = vmatprep.subr.bf16.mxu0 0
        %2821 = vmatpush1.bf16.msra.mxu0 0
        %2822 = vmatprep.subr.bf16.mxu0 0
        %2823 = vmatpush1.bf16.msra.mxu0 0
        %2824 = vmatprep.subr.bf16.mxu0 0
        %2825 = vmatpush1.bf16.msra.mxu0 0
        %2826 = vmatprep.subr.bf16.mxu0 0
        %2827 = vmatpush1.bf16.msra.mxu0 0
        %2828 = vmatprep.subr.bf16.mxu0 0
        %2829 = vmatpush1.bf16.msra.mxu0 0
        %2830 = vmatprep.subr.bf16.mxu0 0
        %2831 = vmatpush1.bf16.msra.mxu0 0
        %2832 = vmatprep.subr.bf16.mxu0 0
        %2833 = vmatpush1.bf16.msra.mxu0 0
        %2834 = vmatprep.mubr.bf16.mxu0 0
        %2835 = vmatmul.mubr.bf16.gmra.mrb[0].mxu0 %v2797
        %v2836 = vpop.f32.mrb[0].mxu0
        %v2837 = vadd.f32 0.0, %v2836
        %v2838 = vpop.f32.mrb[0].mxu0
        %v2839 = vpop.f32.mrb[0].mxu0
        %v2840 = vpop.f32.mrb[0].mxu0
        %2841 = vdwg.mxu0
        %v2843 = vsel %vm2310, %v2510, 0
        %v2846 = vsel %vm2522, %v1548, 0
        %2848 = vmatprep.subr.bf16.mxu0 0
        %2849 = vmatpush1.bf16.msra.mxu0 %v2846
        %2850 = vmatprep.subr.bf16.mxu0 0
        %2851 = vmatpush1.bf16.msra.mxu0 0
        %2852 = vmatprep.subr.bf16.mxu0 0
        %2853 = vmatpush1.bf16.msra.mxu0 0
        %2854 = vmatprep.subr.bf16.mxu0 0
        %2855 = vmatpush1.bf16.msra.mxu0 0
        %2856 = vmatprep.subr.bf16.mxu0 0
        %2857 = vmatpush1.bf16.msra.mxu0 0
        %2858 = vmatprep.subr.bf16.mxu0 0
        %2859 = vmatpush1.bf16.msra.mxu0 0
        %2860 = vmatprep.subr.bf16.mxu0 0
        %2861 = vmatpush1.bf16.msra.mxu0 0
        %2862 = vmatprep.subr.bf16.mxu0 0
        %2863 = vmatpush1.bf16.msra.mxu0 0
        %2864 = vmatprep.subr.bf16.mxu0 0
        %2865 = vmatpush1.bf16.msra.mxu0 0
        %2866 = vmatprep.subr.bf16.mxu0 0
        %2867 = vmatpush1.bf16.msra.mxu0 0
        %2868 = vmatprep.subr.bf16.mxu0 0
        %2869 = vmatpush1.bf16.msra.mxu0 0
        %2870 = vmatprep.subr.bf16.mxu0 0
        %2871 = vmatpush1.bf16.msra.mxu0 0
        %2872 = vmatprep.subr.bf16.mxu0 0
        %2873 = vmatpush1.bf16.msra.mxu0 0
        %2874 = vmatprep.subr.bf16.mxu0 0
        %2875 = vmatpush1.bf16.msra.mxu0 0
        %2876 = vmatprep.subr.bf16.mxu0 0
        %2877 = vmatpush1.bf16.msra.mxu0 0
        %2878 = vmatprep.subr.bf16.mxu0 0
        %2879 = vmatpush1.bf16.msra.mxu0 0
        %2880 = vmatprep.mubr.bf16.mxu0 0
        %2881 = vmatmul.mubr.bf16.gmra.mrb[0].mxu0 %v2843
        %v2882 = vpop.f32.mrb[0].mxu0
        %v2883 = vadd.f32 0.0, %v2882
        %v2884 = vpop.f32.mrb[0].mxu0
        %v2885 = vpop.f32.mrb[0].mxu0
        %v2886 = vpop.f32.mrb[0].mxu0
        %2887 = vdwg.mxu0
        %v2889 = vsel %vm2310, %v2511, 0
        %v2892 = vsel %vm2522, %v1549, 0
        %2894 = vmatprep.subr.bf16.mxu0 0
        %2895 = vmatpush1.bf16.msra.mxu0 %v2892
        %2896 = vmatprep.subr.bf16.mxu0 0
        %2897 = vmatpush1.bf16.msra.mxu0 0
        %2898 = vmatprep.subr.bf16.mxu0 0
        %2899 = vmatpush1.bf16.msra.mxu0 0
        %2900 = vmatprep.subr.bf16.mxu0 0
        %2901 = vmatpush1.bf16.msra.mxu0 0
        %2902 = vmatprep.subr.bf16.mxu0 0
        %2903 = vmatpush1.bf16.msra.mxu0 0
        %2904 = vmatprep.subr.bf16.mxu0 0
        %2905 = vmatpush1.bf16.msra.mxu0 0
        %2906 = vmatprep.subr.bf16.mxu0 0
        %2907 = vmatpush1.bf16.msra.mxu0 0
        %2908 = vmatprep.subr.bf16.mxu0 0
        %2909 = vmatpush1.bf16.msra.mxu0 0
        %2910 = vmatprep.subr.bf16.mxu0 0
        %2911 = vmatpush1.bf16.msra.mxu0 0
        %2912 = vmatprep.subr.bf16.mxu0 0
        %2913 = vmatpush1.bf16.msra.mxu0 0
        %2914 = vmatprep.subr.bf16.mxu0 0
        %2915 = vmatpush1.bf16.msra.mxu0 0
        %2916 = vmatprep.subr.bf16.mxu0 0
        %2917 = vmatpush1.bf16.msra.mxu0 0
        %2918 = vmatprep.subr.bf16.mxu0 0
        %2919 = vmatpush1.bf16.msra.mxu0 0
        %2920 = vmatprep.subr.bf16.mxu0 0
        %2921 = vmatpush1.bf16.msra.mxu0 0
        %2922 = vmatprep.subr.bf16.mxu0 0
        %2923 = vmatpush1.bf16.msra.mxu0 0
        %2924 = vmatprep.subr.bf16.mxu0 0
        %2925 = vmatpush1.bf16.msra.mxu0 0
        %2926 = vmatprep.mubr.bf16.mxu0 0
        %2927 = vmatmul.mubr.bf16.gmra.mrb[0].mxu0 %v2889
        %v2928 = vpop.f32.mrb[0].mxu0
        %v2929 = vadd.f32 0.0, %v2928
        %v2930 = vpop.f32.mrb[0].mxu0
        %v2931 = vpop.f32.mrb[0].mxu0
        %v2932 = vpop.f32.mrb[0].mxu0
        %2933 = vdwg.mxu0
        %v2935 = vsel %vm2310, %v2512, 0
        %v2938 = vsel %vm2522, %v1550, 0
        %2940 = vmatprep.subr.bf16.mxu0 0
        %2941 = vmatpush1.bf16.msra.mxu0 %v2938
        %2942 = vmatprep.subr.bf16.mxu0 0
        %2943 = vmatpush1.bf16.msra.mxu0 0
        %2944 = vmatprep.subr.bf16.mxu0 0
        %2945 = vmatpush1.bf16.msra.mxu0 0
        %2946 = vmatprep.subr.bf16.mxu0 0
        %2947 = vmatpush1.bf16.msra.mxu0 0
        %2948 = vmatprep.subr.bf16.mxu0 0
        %2949 = vmatpush1.bf16.msra.mxu0 0
        %2950 = vmatprep.subr.bf16.mxu0 0
        %2951 = vmatpush1.bf16.msra.mxu0 0
        %2952 = vmatprep.subr.bf16.mxu0 0
        %2953 = vmatpush1.bf16.msra.mxu0 0
        %2954 = vmatprep.subr.bf16.mxu0 0
        %2955 = vmatpush1.bf16.msra.mxu0 0
        %2956 = vmatprep.subr.bf16.mxu0 0
        %2957 = vmatpush1.bf16.msra.mxu0 0
        %2958 = vmatprep.subr.bf16.mxu0 0
        %2959 = vmatpush1.bf16.msra.mxu0 0
        %2960 = vmatprep.subr.bf16.mxu0 0
        %2961 = vmatpush1.bf16.msra.mxu0 0
        %2962 = vmatprep.subr.bf16.mxu0 0
        %2963 = vmatpush1.bf16.msra.mxu0 0
        %2964 = vmatprep.subr.bf16.mxu0 0
        %2965 = vmatpush1.bf16.msra.mxu0 0
        %2966 = vmatprep.subr.bf16.mxu0 0
        %2967 = vmatpush1.bf16.msra.mxu0 0
        %2968 = vmatprep.subr.bf16.mxu0 0
        %2969 = vmatpush1.bf16.msra.mxu0 0
        %2970 = vmatprep.subr.bf16.mxu0 0
        %2971 = vmatpush1.bf16.msra.mxu0 0
        %2972 = vmatprep.mubr.bf16.mxu0 0
        %2973 = vmatmul.mubr.bf16.gmra.mrb[0].mxu0 %v2935
        %v2974 = vpop.f32.mrb[0].mxu0
        %v2975 = vadd.f32 0.0, %v2974
        %v2976 = vpop.f32.mrb[0].mxu0
        %v2977 = vpop.f32.mrb[0].mxu0
        %v2978 = vpop.f32.mrb[0].mxu0
        %2979 = vdwg.mxu0
        %v2981 = vsel %vm2310, %v2513, 0
        %v2984 = vsel %vm2522, %v1551, 0
        %2986 = vmatprep.subr.bf16.mxu0 0
        %2987 = vmatpush1.bf16.msra.mxu0 %v2984
        %2988 = vmatprep.subr.bf16.mxu0 0
        %2989 = vmatpush1.bf16.msra.mxu0 0
        %2990 = vmatprep.subr.bf16.mxu0 0
        %2991 = vmatpush1.bf16.msra.mxu0 0
        %2992 = vmatprep.subr.bf16.mxu0 0
        %2993 = vmatpush1.bf16.msra.mxu0 0
        %2994 = vmatprep.subr.bf16.mxu0 0
        %2995 = vmatpush1.bf16.msra.mxu0 0
        %2996 = vmatprep.subr.bf16.mxu0 0
        %2997 = vmatpush1.bf16.msra.mxu0 0
        %2998 = vmatprep.subr.bf16.mxu0 0
        %2999 = vmatpush1.bf16.msra.mxu0 0
        %3000 = vmatprep.subr.bf16.mxu0 0
        %3001 = vmatpush1.bf16.msra.mxu0 0
        %3002 = vmatprep.subr.bf16.mxu0 0
        %3003 = vmatpush1.bf16.msra.mxu0 0
        %3004 = vmatprep.subr.bf16.mxu0 0
        %3005 = vmatpush1.bf16.msra.mxu0 0
        %3006 = vmatprep.subr.bf16.mxu0 0
        %3007 = vmatpush1.bf16.msra.mxu0 0
        %3008 = vmatprep.subr.bf16.mxu0 0
        %3009 = vmatpush1.bf16.msra.mxu0 0
        %3010 = vmatprep.subr.bf16.mxu0 0
        %3011 = vmatpush1.bf16.msra.mxu0 0
        %3012 = vmatprep.subr.bf16.mxu0 0
        %3013 = vmatpush1.bf16.msra.mxu0 0
        %3014 = vmatprep.subr.bf16.mxu0 0
        %3015 = vmatpush1.bf16.msra.mxu0 0
        %3016 = vmatprep.subr.bf16.mxu0 0
        %3017 = vmatpush1.bf16.msra.mxu0 0
        %3018 = vmatprep.mubr.bf16.mxu0 0
        %3019 = vmatmul.mubr.bf16.gmra.mrb[0].mxu0 %v2981
        %v3020 = vpop.f32.mrb[0].mxu0
        %v3021 = vadd.f32 0.0, %v3020
        %v3022 = vpop.f32.mrb[0].mxu0
        %v3023 = vpop.f32.mrb[0].mxu0
        %v3024 = vpop.f32.mrb[0].mxu0
        %3025 = vdwg.mxu0
        %v3027 = vsel %vm2310, %v2514, 0
        %v3030 = vsel %vm2522, %v1552, 0
        %3032 = vmatprep.subr.bf16.mxu0 0
        %3033 = vmatpush1.bf16.msra.mxu0 %v3030
        %3034 = vmatprep.subr.bf16.mxu0 0
        %3035 = vmatpush1.bf16.msra.mxu0 0
        %3036 = vmatprep.subr.bf16.mxu0 0
        %3037 = vmatpush1.bf16.msra.mxu0 0
        %3038 = vmatprep.subr.bf16.mxu0 0
        %3039 = vmatpush1.bf16.msra.mxu0 0
        %3040 = vmatprep.subr.bf16.mxu0 0
        %3041 = vmatpush1.bf16.msra.mxu0 0
        %3042 = vmatprep.subr.bf16.mxu0 0
        %3043 = vmatpush1.bf16.msra.mxu0 0
        %3044 = vmatprep.subr.bf16.mxu0 0
        %3045 = vmatpush1.bf16.msra.mxu0 0
        %3046 = vmatprep.subr.bf16.mxu0 0
        %3047 = vmatpush1.bf16.msra.mxu0 0
        %3048 = vmatprep.subr.bf16.mxu0 0
        %3049 = vmatpush1.bf16.msra.mxu0 0
        %3050 = vmatprep.subr.bf16.mxu0 0
        %3051 = vmatpush1.bf16.msra.mxu0 0
        %3052 = vmatprep.subr.bf16.mxu0 0
        %3053 = vmatpush1.bf16.msra.mxu0 0
        %3054 = vmatprep.subr.bf16.mxu0 0
        %3055 = vmatpush1.bf16.msra.mxu0 0
        %3056 = vmatprep.subr.bf16.mxu0 0
        %3057 = vmatpush1.bf16.msra.mxu0 0
        %3058 = vmatprep.subr.bf16.mxu0 0
        %3059 = vmatpush1.bf16.msra.mxu0 0
        %3060 = vmatprep.subr.bf16.mxu0 0
        %3061 = vmatpush1.bf16.msra.mxu0 0
        %3062 = vmatprep.subr.bf16.mxu0 0
        %3063 = vmatpush1.bf16.msra.mxu0 0
        %3064 = vmatprep.mubr.bf16.mxu0 0
        %3065 = vmatmul.mubr.bf16.gmra.mrb[0].mxu0 %v3027
        %v3066 = vpop.f32.mrb[0].mxu0
        %v3067 = vadd.f32 0.0, %v3066
        %v3068 = vpop.f32.mrb[0].mxu0
        %v3069 = vpop.f32.mrb[0].mxu0
        %v3070 = vpop.f32.mrb[0].mxu0
        %3071 = vdwg.mxu0
        %v3073 = vsel %vm2310, %v2515, 0
        %v3076 = vsel %vm2522, %v1553, 0
        %3078 = vmatprep.subr.bf16.mxu0 0
        %3079 = vmatpush1.bf16.msra.mxu0 %v3076
        %3080 = vmatprep.subr.bf16.mxu0 0
        %3081 = vmatpush1.bf16.msra.mxu0 0
        %3082 = vmatprep.subr.bf16.mxu0 0
        %3083 = vmatpush1.bf16.msra.mxu0 0
        %3084 = vmatprep.subr.bf16.mxu0 0
        %3085 = vmatpush1.bf16.msra.mxu0 0
        %3086 = vmatprep.subr.bf16.mxu0 0
        %3087 = vmatpush1.bf16.msra.mxu0 0
        %3088 = vmatprep.subr.bf16.mxu0 0
        %3089 = vmatpush1.bf16.msra.mxu0 0
        %3090 = vmatprep.subr.bf16.mxu0 0
        %3091 = vmatpush1.bf16.msra.mxu0 0
        %3092 = vmatprep.subr.bf16.mxu0 0
        %3093 = vmatpush1.bf16.msra.mxu0 0
        %3094 = vmatprep.subr.bf16.mxu0 0
        %3095 = vmatpush1.bf16.msra.mxu0 0
        %3096 = vmatprep.subr.bf16.mxu0 0
        %3097 = vmatpush1.bf16.msra.mxu0 0
        %3098 = vmatprep.subr.bf16.mxu0 0
        %3099 = vmatpush1.bf16.msra.mxu0 0
        %3100 = vmatprep.subr.bf16.mxu0 0
        %3101 = vmatpush1.bf16.msra.mxu0 0
        %3102 = vmatprep.subr.bf16.mxu0 0
        %3103 = vmatpush1.bf16.msra.mxu0 0
        %3104 = vmatprep.subr.bf16.mxu0 0
        %3105 = vmatpush1.bf16.msra.mxu0 0
        %3106 = vmatprep.subr.bf16.mxu0 0
        %3107 = vmatpush1.bf16.msra.mxu0 0
        %3108 = vmatprep.subr.bf16.mxu0 0
        %3109 = vmatpush1.bf16.msra.mxu0 0
        %3110 = vmatprep.mubr.bf16.mxu0 0
        %3111 = vmatmul.mubr.bf16.gmra.mrb[0].mxu0 %v3073
        %v3112 = vpop.f32.mrb[0].mxu0
        %v3113 = vadd.f32 0.0, %v3112
        %v3114 = vpop.f32.mrb[0].mxu0
        %v3115 = vpop.f32.mrb[0].mxu0
        %v3116 = vpop.f32.mrb[0].mxu0
        %3117 = vdwg.mxu0
        %v3119 = vsel %vm2310, %v2516, 0
        %v3122 = vsel %vm2522, %v1554, 0
        %3124 = vmatprep.subr.bf16.mxu0 0
        %3125 = vmatpush1.bf16.msra.mxu0 %v3122
        %3126 = vmatprep.subr.bf16.mxu0 0
        %3127 = vmatpush1.bf16.msra.mxu0 0
        %3128 = vmatprep.subr.bf16.mxu0 0
        %3129 = vmatpush1.bf16.msra.mxu0 0
        %3130 = vmatprep.subr.bf16.mxu0 0
        %3131 = vmatpush1.bf16.msra.mxu0 0
        %3132 = vmatprep.subr.bf16.mxu0 0
        %3133 = vmatpush1.bf16.msra.mxu0 0
        %3134 = vmatprep.subr.bf16.mxu0 0
        %3135 = vmatpush1.bf16.msra.mxu0 0
        %3136 = vmatprep.subr.bf16.mxu0 0
        %3137 = vmatpush1.bf16.msra.mxu0 0
        %3138 = vmatprep.subr.bf16.mxu0 0
        %3139 = vmatpush1.bf16.msra.mxu0 0
        %3140 = vmatprep.subr.bf16.mxu0 0
        %3141 = vmatpush1.bf16.msra.mxu0 0
        %3142 = vmatprep.subr.bf16.mxu0 0
        %3143 = vmatpush1.bf16.msra.mxu0 0
        %3144 = vmatprep.subr.bf16.mxu0 0
        %3145 = vmatpush1.bf16.msra.mxu0 0
        %3146 = vmatprep.subr.bf16.mxu0 0
        %3147 = vmatpush1.bf16.msra.mxu0 0
        %3148 = vmatprep.subr.bf16.mxu0 0
        %3149 = vmatpush1.bf16.msra.mxu0 0
        %3150 = vmatprep.subr.bf16.mxu0 0
        %3151 = vmatpush1.bf16.msra.mxu0 0
        %3152 = vmatprep.subr.bf16.mxu0 0
        %3153 = vmatpush1.bf16.msra.mxu0 0
        %3154 = vmatprep.subr.bf16.mxu0 0
        %3155 = vmatpush1.bf16.msra.mxu0 0
        %3156 = vmatprep.mubr.bf16.mxu0 0
        %3157 = vmatmul.mubr.bf16.gmra.mrb[0].mxu0 %v3119
        %v3158 = vpop.f32.mrb[0].mxu0
        %v3159 = vadd.f32 0.0, %v3158
        %v3160 = vpop.f32.mrb[0].mxu0
        %v3161 = vpop.f32.mrb[0].mxu0
        %v3162 = vpop.f32.mrb[0].mxu0
        %3163 = vdwg.mxu0
        %v3165 = vsel %vm2310, %v2517, 0
        %v3168 = vsel %vm2522, %v1555, 0
        %3170 = vmatprep.subr.bf16.mxu0 0
        %3171 = vmatpush1.bf16.msra.mxu0 %v3168
        %3172 = vmatprep.subr.bf16.mxu0 0
        %3173 = vmatpush1.bf16.msra.mxu0 0
        %3174 = vmatprep.subr.bf16.mxu0 0
        %3175 = vmatpush1.bf16.msra.mxu0 0
        %3176 = vmatprep.subr.bf16.mxu0 0
        %3177 = vmatpush1.bf16.msra.mxu0 0
        %3178 = vmatprep.subr.bf16.mxu0 0
        %3179 = vmatpush1.bf16.msra.mxu0 0
        %3180 = vmatprep.subr.bf16.mxu0 0
        %3181 = vmatpush1.bf16.msra.mxu0 0
        %3182 = vmatprep.subr.bf16.mxu0 0
        %3183 = vmatpush1.bf16.msra.mxu0 0
        %3184 = vmatprep.subr.bf16.mxu0 0
        %3185 = vmatpush1.bf16.msra.mxu0 0
        %3186 = vmatprep.subr.bf16.mxu0 0
        %3187 = vmatpush1.bf16.msra.mxu0 0
        %3188 = vmatprep.subr.bf16.mxu0 0
        %3189 = vmatpush1.bf16.msra.mxu0 0
        %3190 = vmatprep.subr.bf16.mxu0 0
        %3191 = vmatpush1.bf16.msra.mxu0 0
        %3192 = vmatprep.subr.bf16.mxu0 0
        %3193 = vmatpush1.bf16.msra.mxu0 0
        %3194 = vmatprep.subr.bf16.mxu0 0
        %3195 = vmatpush1.bf16.msra.mxu0 0
        %3196 = vmatprep.subr.bf16.mxu0 0
        %3197 = vmatpush1.bf16.msra.mxu0 0
        %3198 = vmatprep.subr.bf16.mxu0 0
        %3199 = vmatpush1.bf16.msra.mxu0 0
        %3200 = vmatprep.subr.bf16.mxu0 0
        %3201 = vmatpush1.bf16.msra.mxu0 0
        %3202 = vmatprep.mubr.bf16.mxu0 0
        %3203 = vmatmul.mubr.bf16.gmra.mrb[0].mxu0 %v3165
        %v3204 = vpop.f32.mrb[0].mxu0
        %v3205 = vadd.f32 0.0, %v3204
        %v3206 = vpop.f32.mrb[0].mxu0
        %v3207 = vpop.f32.mrb[0].mxu0
        %v3208 = vpop.f32.mrb[0].mxu0
        %3209 = vdwg.mxu0
        %v3211 = vsel %vm2310, %v2518, 0
        %v3214 = vsel %vm2522, %v1556, 0
        %3216 = vmatprep.subr.bf16.mxu0 0
        %3217 = vmatpush1.bf16.msra.mxu0 %v3214
        %3218 = vmatprep.subr.bf16.mxu0 0
        %3219 = vmatpush1.bf16.msra.mxu0 0
        %3220 = vmatprep.subr.bf16.mxu0 0
        %3221 = vmatpush1.bf16.msra.mxu0 0
        %3222 = vmatprep.subr.bf16.mxu0 0
        %3223 = vmatpush1.bf16.msra.mxu0 0
        %3224 = vmatprep.subr.bf16.mxu0 0
        %3225 = vmatpush1.bf16.msra.mxu0 0
        %3226 = vmatprep.subr.bf16.mxu0 0
        %3227 = vmatpush1.bf16.msra.mxu0 0
        %3228 = vmatprep.subr.bf16.mxu0 0
        %3229 = vmatpush1.bf16.msra.mxu0 0
        %3230 = vmatprep.subr.bf16.mxu0 0
        %3231 = vmatpush1.bf16.msra.mxu0 0
        %3232 = vmatprep.subr.bf16.mxu0 0
        %3233 = vmatpush1.bf16.msra.mxu0 0
        %3234 = vmatprep.subr.bf16.mxu0 0
        %3235 = vmatpush1.bf16.msra.mxu0 0
        %3236 = vmatprep.subr.bf16.mxu0 0
        %3237 = vmatpush1.bf16.msra.mxu0 0
        %3238 = vmatprep.subr.bf16.mxu0 0
        %3239 = vmatpush1.bf16.msra.mxu0 0
        %3240 = vmatprep.subr.bf16.mxu0 0
        %3241 = vmatpush1.bf16.msra.mxu0 0
        %3242 = vmatprep.subr.bf16.mxu0 0
        %3243 = vmatpush1.bf16.msra.mxu0 0
        %3244 = vmatprep.subr.bf16.mxu0 0
        %3245 = vmatpush1.bf16.msra.mxu0 0
        %3246 = vmatprep.subr.bf16.mxu0 0
        %3247 = vmatpush1.bf16.msra.mxu0 0
        %3248 = vmatprep.mubr.bf16.mxu0 0
        %3249 = vmatmul.mubr.bf16.gmra.mrb[0].mxu0 %v3211
        %v3250 = vpop.f32.mrb[0].mxu0
        %v3251 = vadd.f32 0.0, %v3250
        %v3252 = vpop.f32.mrb[0].mxu0
        %v3253 = vpop.f32.mrb[0].mxu0
        %v3254 = vpop.f32.mrb[0].mxu0
        %3255 = vdwg.mxu0
        %3258 = vrot.lane.b32.xlu0 %v2607, 16
        %v3259 = vpop.permute.xlu0 %3258
        %3260 = vrot.lane.b32.xlu0 %v2975, 16
        %v3261 = vpop.permute.xlu0 %3260
        %3266 = vrot.lane.b32.xlu0 %v2653, 32
        %v3267 = vpop.permute.xlu0 %3266
        %3268 = vrot.lane.b32.xlu0 %v3021, 32
        %v3269 = vpop.permute.xlu0 %3268
        %3274 = vrot.lane.b32.xlu0 %v2699, 48
        %v3275 = vpop.permute.xlu0 %3274
        %3276 = vrot.lane.b32.xlu0 %v3067, 48
        %v3277 = vpop.permute.xlu0 %3276
        %3282 = vrot.lane.b32.xlu0 %v2745, 64
        %v3283 = vpop.permute.xlu0 %3282
        %3284 = vrot.lane.b32.xlu0 %v3113, 64
        %v3285 = vpop.permute.xlu0 %3284
        %3290 = vrot.lane.b32.xlu0 %v2791, 80
        %v3291 = vpop.permute.xlu0 %3290
        %3292 = vrot.lane.b32.xlu0 %v3159, 80
        %v3293 = vpop.permute.xlu0 %3292
        %3298 = vrot.lane.b32.xlu0 %v2837, 96
        %v3299 = vpop.permute.xlu0 %3298
        %3300 = vrot.lane.b32.xlu0 %v3205, 96
        %v3301 = vpop.permute.xlu0 %3300
        %3306 = vrot.lane.b32.xlu0 %v2883, 112
        %v3307 = vpop.permute.xlu0 %3306
        %3308 = vrot.lane.b32.xlu0 %v3251, 112
        %v3309 = vpop.permute.xlu0 %3308
        %v3312 = vsel %vm1557, %v2561, %v3259
        %v3313 = vsel %vm1557, %v2929, %v3261
        %vm3314 = vcmask 261120
        %v3315 = vsel %vm3314, %v3312, %v3267
        %v3316 = vsel %vm3314, %v3313, %v3269
        %vm3317 = vcmask 392192
        %v3318 = vsel %vm3317, %v3315, %v3275
        %v3319 = vsel %vm3317, %v3316, %v3277
        %vm3320 = vcmask 523264
        %v3321 = vsel %vm3320, %v3318, %v3283
        %v3322 = vsel %vm3320, %v3319, %v3285
        %vm3323 = vcmask 654336
        %v3324 = vsel %vm3323, %v3321, %v3291
        %v3325 = vsel %vm3323, %v3322, %v3293
        %vm3326 = vcmask 785408
        %v3327 = vsel %vm3326, %v3324, %v3299
        %v3328 = vsel %vm3326, %v3325, %v3301
        %vm3329 = vcmask 916480
        %v3330 = vsel %vm3329, %v3327, %v3307
        %v3331 = vsel %vm3329, %v3328, %v3309
        %v3332 = vld [vmem:[%s921] sm:$0xf]
        %v3333 = vld [vmem:[%s921 + $0x4] sm:$0xf]
        %v3334 = vld [vmem:[%s921 + $0x8] sm:$0xf]
        %v3335 = vld [vmem:[%s921 + $0xc] sm:$0xf]
        %v3336 = vld [vmem:[%s921 + $0x10] sm:$0xf]
        %v3337 = vld [vmem:[%s921 + $0x14] sm:$0xf]
        %v3338 = vld [vmem:[%s921 + $0x18] sm:$0xf]
        %v3339 = vld [vmem:[%s921 + $0x1c] sm:$0xf]
        %v3340 = vld [vmem:[%s921 + $0x20] sm:$0xf]
        %v3341 = vld [vmem:[%s921 + $0x24] sm:$0xf]
        %v3342 = vld [vmem:[%s921 + $0x28] sm:$0xf]
        %v3343 = vld [vmem:[%s921 + $0x2c] sm:$0xf]
        %v3344 = vld [vmem:[%s921 + $0x30] sm:$0xf]
        %v3345 = vld [vmem:[%s921 + $0x34] sm:$0xf]
        %v3346 = vld [vmem:[%s921 + $0x38] sm:$0xf]
        %v3347 = vld [vmem:[%s921 + $0x3c] sm:$0xf]
        %v3348 = vpack.c.bf16 %v3331, %v3330
        %v3349 = vld [vmem:[%s924] sm:$0x1]
        %v3351 = vlaneseq
        %v3352 = vshrl.u32 %v3351, 7
        %v3353 = vsub.s32 0, %v3352
        %v3354 = vrot.slane %v3349, %v3353
        %v3372 = vunpack.c.l.b16 %v3332
        %v3373 = vunpack.c.l.b16 %v3333
        %v3374 = vunpack.c.l.b16 %v3334
        %v3375 = vunpack.c.l.b16 %v3335
        %v3376 = vunpack.c.l.b16 %v3336
        %v3377 = vunpack.c.l.b16 %v3337
        %v3378 = vunpack.c.l.b16 %v3338
        %v3379 = vunpack.c.l.b16 %v3339
        %v3380 = vunpack.c.l.b16 %v3340
        %v3381 = vunpack.c.l.b16 %v3341
        %v3382 = vunpack.c.l.b16 %v3342
        %v3383 = vunpack.c.l.b16 %v3343
        %v3384 = vunpack.c.l.b16 %v3344
        %v3385 = vunpack.c.l.b16 %v3345
        %v3386 = vunpack.c.l.b16 %v3346
        %v3387 = vunpack.c.l.b16 %v3347
        %v3388 = vpack.c.b16 %v3373, %v3372
        %v3389 = vpack.c.b16 %v3375, %v3374
        %v3390 = vpack.c.b16 %v3377, %v3376
        %v3391 = vpack.c.b16 %v3379, %v3378
        %v3392 = vpack.c.b16 %v3381, %v3380
        %v3393 = vpack.c.b16 %v3383, %v3382
        %v3394 = vpack.c.b16 %v3385, %v3384
        %v3395 = vpack.c.b16 %v3387, %v3386
        %3404 = vmatprep.subr.bf16.mxu0 0
        %3405 = vmatpush1.bf16.msra.mxu0 %v3388
        %3406 = vmatprep.subr.bf16.mxu0 0
        %3407 = vmatpush1.bf16.msra.mxu0 %v3389
        %3408 = vmatprep.subr.bf16.mxu0 0
        %3409 = vmatpush1.bf16.msra.mxu0 %v3390
        %3410 = vmatprep.subr.bf16.mxu0 0
        %3411 = vmatpush1.bf16.msra.mxu0 %v3391
        %3412 = vmatprep.subr.bf16.mxu0 0
        %3413 = vmatpush1.bf16.msra.mxu0 %v3392
        %3414 = vmatprep.subr.bf16.mxu0 0
        %3415 = vmatpush1.bf16.msra.mxu0 %v3393
        %3416 = vmatprep.subr.bf16.mxu0 0
        %3417 = vmatpush1.bf16.msra.mxu0 %v3394
        %3418 = vmatprep.subr.bf16.mxu0 0
        %3419 = vmatpush1.bf16.msra.mxu0 %v3395
        %3420 = vmatprep.subr.bf16.mxu0 0
        %3421 = vmatpush1.bf16.msra.mxu0 0
        %3422 = vmatprep.subr.bf16.mxu0 0
        %3423 = vmatpush1.bf16.msra.mxu0 0
        %3424 = vmatprep.subr.bf16.mxu0 0
        %3425 = vmatpush1.bf16.msra.mxu0 0
        %3426 = vmatprep.subr.bf16.mxu0 0
        %3427 = vmatpush1.bf16.msra.mxu0 0
        %3428 = vmatprep.subr.bf16.mxu0 0
        %3429 = vmatpush1.bf16.msra.mxu0 0
        %3430 = vmatprep.subr.bf16.mxu0 0
        %3431 = vmatpush1.bf16.msra.mxu0 0
        %3432 = vmatprep.subr.bf16.mxu0 0
        %3433 = vmatpush1.bf16.msra.mxu0 0
        %3434 = vmatprep.subr.bf16.mxu0 0
        %3435 = vmatpush1.bf16.msra.mxu0 0
        %3436 = vmatprep.mubr.bf16.mxu0 0
        %3437 = vmatmul.mubr.bf16.gmra.mrb[0].mxu0 %v3348
        %v3438 = vpop.f32.mrb[0].mxu0
        %v3439 = vadd.f32 %v3354, %v3438
        %v3440 = vpop.f32.mrb[0].mxu0
        %v3441 = vpop.f32.mrb[0].mxu0
        %v3442 = vadd.f32 %v3354, %v3441
        %v3443 = vpop.f32.mrb[0].mxu0
        %3444 = vdwg.mxu0
        %v3445 = vadd.f32 %v1072, %v3439
        %v3446 = vadd.f32 %v1073, %v3442
        %v3447 = vld [vmem:[%s927] sm:$0x1]
        %v3448 = vld [vmem:[%s930] sm:$0x1]
        %3449 = vadd.xlane.f32.xlu0 %v3445
        %v3450 = vpop.xlane.xlu0 %3449
        %3451 = vadd.xlane.f32.xlu0 %v3446
        %v3452 = vpop.xlane.xlu0 %3451
        %v3453 = vmul.f32 %v3450, %v1080
        %v3454 = vmul.f32 %v3452, %v1080
        %v3455 = vsub.f32 %v3445, %v3453
        %v3456 = vsub.f32 %v3446, %v3454
        %v3457 = vmul.f32 %v3455, %v3455
        %v3458 = vmul.f32 %v3456, %v3456
        %3459 = vadd.xlane.f32.xlu0 %v3457
        %v3460 = vpop.xlane.xlu0 %3459
        %3461 = vadd.xlane.f32.xlu0 %v3458
        %v3462 = vpop.xlane.xlu0 %3461
        %v3463 = vmul.f32 %v3460, %v1080
        %v3464 = vmul.f32 %v3462, %v1080
        %v3465 = vadd.f32 %v3463, 1e-05
        %v3466 = vadd.f32 %v3464, 1e-05
        %v3467 = vrsqrt.pop %v3465
        %v3468 = vrsqrt.pop %v3466
        %v3469 = vmul.f32 %v3455, %v3467
        %v3470 = vmul.f32 %v3456, %v3468
        %v3472 = vlaneseq
        %v3473 = vshrl.u32 %v3472, 7
        %v3474 = vsub.s32 0, %v3473
        %v3475 = vrot.slane %v3447, %v3474
        %v3477 = vmul.f32 %v3469, %v3475
        %v3478 = vmul.f32 %v3470, %v3475
        %v3480 = vlaneseq
        %v3481 = vshrl.u32 %v3480, 7
        %v3482 = vsub.s32 0, %v3481
        %v3483 = vrot.slane %v3448, %v3482
        %v3485 = vadd.f32 %v3477, %v3483
        %v3486 = vadd.f32 %v3478, %v3483
        %v3487 = vld [vmem:[%s794] sm:$0xff]
        %v3488 = vld [vmem:[%s794 + $0x8] sm:$0xff]
        %v3489 = vld [vmem:[%s794 + $0x10] sm:$0xff]
        %v3490 = vld [vmem:[%s794 + $0x18] sm:$0xff]
        %v3491 = vld [vmem:[%s794 + $0x20] sm:$0xff]
        %v3492 = vld [vmem:[%s794 + $0x28] sm:$0xff]
        %v3493 = vld [vmem:[%s794 + $0x30] sm:$0xff]
        %v3494 = vld [vmem:[%s794 + $0x38] sm:$0xff]
        %v3495 = vld [vmem:[%s794 + $0x40] sm:$0xff]
        %v3496 = vld [vmem:[%s794 + $0x48] sm:$0xff]
        %v3497 = vld [vmem:[%s794 + $0x50] sm:$0xff]
        %v3498 = vld [vmem:[%s794 + $0x58] sm:$0xff]
        %v3499 = vld [vmem:[%s794 + $0x60] sm:$0xff]
        %v3500 = vld [vmem:[%s794 + $0x68] sm:$0xff]
        %v3501 = vld [vmem:[%s794 + $0x70] sm:$0xff]
        %v3502 = vld [vmem:[%s794 + $0x78] sm:$0xff]
        %v3503 = vld [vmem:[%s794 + $0x80] sm:$0xff]
        %v3504 = vld [vmem:[%s794 + $0x88] sm:$0xff]
        %v3505 = vld [vmem:[%s794 + $0x90] sm:$0xff]
        %v3506 = vld [vmem:[%s794 + $0x98] sm:$0xff]
        %v3507 = vld [vmem:[%s794 + $0xa0] sm:$0xff]
        %v3508 = vld [vmem:[%s794 + $0xa8] sm:$0xff]
        %v3509 = vld [vmem:[%s794 + $0xb0] sm:$0xff]
        %v3510 = vld [vmem:[%s794 + $0xb8] sm:$0xff]
        %v3511 = vld [vmem:[%s794 + $0xc0] sm:$0xff]
        %v3512 = vld [vmem:[%s794 + $0xc8] sm:$0xff]
        %v3513 = vld [vmem:[%s794 + $0xd0] sm:$0xff]
        %v3514 = vld [vmem:[%s794 + $0xd8] sm:$0xff]
        %v3515 = vld [vmem:[%s794 + $0xe0] sm:$0xff]
        %v3516 = vld [vmem:[%s794 + $0xe8] sm:$0xff]
        %v3517 = vld [vmem:[%s794 + $0xf0] sm:$0xff]
        %v3518 = vld [vmem:[%s794 + $0xf8] sm:$0xff]
        %v3519 = vpack.c.bf16 %v3486, %v3485
        %v3520 = vld [vmem:[%s934] sm:$0xf]
        %v3522 = vlaneseq
        %v3523 = vshrl.u32 %v3522, 7
        %v3524 = vsub.s32 0, %v3523
        %v3525 = vrot.slane %v3520, %v3524
        %v3526 = vlaneseq
        %v3527 = vshrl.u32 %v3526, 7
        %v3528 = vsub.s32 1, %v3527
        %v3529 = vrot.slane %v3520, %v3528
        %v3530 = vlaneseq
        %v3531 = vshrl.u32 %v3530, 7
        %v3532 = vsub.s32 2, %v3531
        %v3533 = vrot.slane %v3520, %v3532
        %v3534 = vlaneseq
        %v3535 = vshrl.u32 %v3534, 7
        %v3536 = vsub.s32 3, %v3535
        %v3537 = vrot.slane %v3520, %v3536
        %v3574 = vunpack.c.l.b16 %v3487
        %v3575 = vunpack.c.h.b16 %v3487
        %v3576 = vunpack.c.l.b16 %v3488
        %v3577 = vunpack.c.h.b16 %v3488
        %v3578 = vunpack.c.l.b16 %v3489
        %v3579 = vunpack.c.h.b16 %v3489
        %v3580 = vunpack.c.l.b16 %v3490
        %v3581 = vunpack.c.h.b16 %v3490
        %v3582 = vunpack.c.l.b16 %v3491
        %v3583 = vunpack.c.h.b16 %v3491
        %v3584 = vunpack.c.l.b16 %v3492
        %v3585 = vunpack.c.h.b16 %v3492
        %v3586 = vunpack.c.l.b16 %v3493
        %v3587 = vunpack.c.h.b16 %v3493
        %v3588 = vunpack.c.l.b16 %v3494
        %v3589 = vunpack.c.h.b16 %v3494
        %v3590 = vunpack.c.l.b16 %v3495
        %v3591 = vunpack.c.h.b16 %v3495
        %v3592 = vunpack.c.l.b16 %v3496
        %v3593 = vunpack.c.h.b16 %v3496
        %v3594 = vunpack.c.l.b16 %v3497
        %v3595 = vunpack.c.h.b16 %v3497
        %v3596 = vunpack.c.l.b16 %v3498
        %v3597 = vunpack.c.h.b16 %v3498
        %v3598 = vunpack.c.l.b16 %v3499
        %v3599 = vunpack.c.h.b16 %v3499
        %v3600 = vunpack.c.l.b16 %v3500
        %v3601 = vunpack.c.h.b16 %v3500
        %v3602 = vunpack.c.l.b16 %v3501
        %v3603 = vunpack.c.h.b16 %v3501
        %v3604 = vunpack.c.l.b16 %v3502
        %v3605 = vunpack.c.h.b16 %v3502
        %v3606 = vunpack.c.l.b16 %v3503
        %v3607 = vunpack.c.h.b16 %v3503
        %v3608 = vunpack.c.l.b16 %v3504
        %v3609 = vunpack.c.h.b16 %v3504
        %v3610 = vunpack.c.l.b16 %v3505
        %v3611 = vunpack.c.h.b16 %v3505
        %v3612 = vunpack.c.l.b16 %v3506
        %v3613 = vunpack.c.h.b16 %v3506
        %v3614 = vunpack.c.l.b16 %v3507
        %v3615 = vunpack.c.h.b16 %v3507
        %v3616 = vunpack.c.l.b16 %v3508
        %v3617 = vunpack.c.h.b16 %v3508
        %v3618 = vunpack.c.l.b16 %v3509
        %v3619 = vunpack.c.h.b16 %v3509
        %v3620 = vunpack.c.l.b16 %v3510
        %v3621 = vunpack.c.h.b16 %v3510
        %v3622 = vunpack.c.l.b16 %v3511
        %v3623 = vunpack.c.h.b16 %v3511
        %v3624 = vunpack.c.l.b16 %v3512
        %v3625 = vunpack.c.h.b16 %v3512
        %v3626 = vunpack.c.l.b16 %v3513
        %v3627 = vunpack.c.h.b16 %v3513
        %v3628 = vunpack.c.l.b16 %v3514
        %v3629 = vunpack.c.h.b16 %v3514
        %v3630 = vunpack.c.l.b16 %v3515
        %v3631 = vunpack.c.h.b16 %v3515
        %v3632 = vunpack.c.l.b16 %v3516
        %v3633 = vunpack.c.h.b16 %v3516
        %v3634 = vunpack.c.l.b16 %v3517
        %v3635 = vunpack.c.h.b16 %v3517
        %v3636 = vunpack.c.l.b16 %v3518
        %v3637 = vunpack.c.h.b16 %v3518
        %v3638 = vpack.c.b16 %v3578, %v3574
        %v3639 = vpack.c.b16 %v3579, %v3575
        %v3640 = vpack.c.b16 %v3580, %v3576
        %v3641 = vpack.c.b16 %v3581, %v3577
        %v3642 = vpack.c.b16 %v3586, %v3582
        %v3643 = vpack.c.b16 %v3587, %v3583
        %v3644 = vpack.c.b16 %v3588, %v3584
        %v3645 = vpack.c.b16 %v3589, %v3585
        %v3646 = vpack.c.b16 %v3594, %v3590
        %v3647 = vpack.c.b16 %v3595, %v3591
        %v3648 = vpack.c.b16 %v3596, %v3592
        %v3649 = vpack.c.b16 %v3597, %v3593
        %v3650 = vpack.c.b16 %v3602, %v3598
        %v3651 = vpack.c.b16 %v3603, %v3599
        %v3652 = vpack.c.b16 %v3604, %v3600
        %v3653 = vpack.c.b16 %v3605, %v3601
        %v3654 = vpack.c.b16 %v3610, %v3606
        %v3655 = vpack.c.b16 %v3611, %v3607
        %v3656 = vpack.c.b16 %v3612, %v3608
        %v3657 = vpack.c.b16 %v3613, %v3609
        %v3658 = vpack.c.b16 %v3618, %v3614
        %v3659 = vpack.c.b16 %v3619, %v3615
        %v3660 = vpack.c.b16 %v3620, %v3616
        %v3661 = vpack.c.b16 %v3621, %v3617
        %v3662 = vpack.c.b16 %v3626, %v3622
        %v3663 = vpack.c.b16 %v3627, %v3623
        %v3664 = vpack.c.b16 %v3628, %v3624
        %v3665 = vpack.c.b16 %v3629, %v3625
        %v3666 = vpack.c.b16 %v3634, %v3630
        %v3667 = vpack.c.b16 %v3635, %v3631
        %v3668 = vpack.c.b16 %v3636, %v3632
        %v3669 = vpack.c.b16 %v3637, %v3633
        %3702 = vmatprep.subr.bf16.mxu0 %v3639
        %3703 = vmatpush1.bf16.msra.mxu0 %v3638
        %3704 = vmatprep.subr.bf16.mxu0 %v3643
        %3705 = vmatpush1.bf16.msra.mxu0 %v3642
        %3706 = vmatprep.subr.bf16.mxu0 %v3647
        %3707 = vmatpush1.bf16.msra.mxu0 %v3646
        %3708 = vmatprep.subr.bf16.mxu0 %v3651
        %3709 = vmatpush1.bf16.msra.mxu0 %v3650
        %3710 = vmatprep.subr.bf16.mxu0 %v3655
        %3711 = vmatpush1.bf16.msra.mxu0 %v3654
        %3712 = vmatprep.subr.bf16.mxu0 %v3659
        %3713 = vmatpush1.bf16.msra.mxu0 %v3658
        %3714 = vmatprep.subr.bf16.mxu0 %v3663
        %3715 = vmatpush1.bf16.msra.mxu0 %v3662
        %3716 = vmatprep.subr.bf16.mxu0 %v3667
        %3717 = vmatpush1.bf16.msra.mxu0 %v3666
        %3718 = vmatprep.subr.bf16.mxu0 0
        %3719 = vmatpush1.bf16.msra.mxu0 0
        %3720 = vmatprep.subr.bf16.mxu0 0
        %3721 = vmatpush1.bf16.msra.mxu0 0
        %3722 = vmatprep.subr.bf16.mxu0 0
        %3723 = vmatpush1.bf16.msra.mxu0 0
        %3724 = vmatprep.subr.bf16.mxu0 0
        %3725 = vmatpush1.bf16.msra.mxu0 0
        %3726 = vmatprep.subr.bf16.mxu0 0
        %3727 = vmatpush1.bf16.msra.mxu0 0
        %3728 = vmatprep.subr.bf16.mxu0 0
        %3729 = vmatpush1.bf16.msra.mxu0 0
        %3730 = vmatprep.subr.bf16.mxu0 0
        %3731 = vmatpush1.bf16.msra.mxu0 0
        %3732 = vmatprep.subr.bf16.mxu0 0
        %3733 = vmatpush1.bf16.msra.mxu0 0
        %3734 = vmatprep.mubr.bf16.mxu0 0
        %3735 = vmatmul.mubr.bf16.gmra.mrb[0].mxu0 %v3519
        %v3736 = vpop.f32.mrb[0].mxu0
        %v3737 = vadd.f32 %v3525, %v3736
        %v3738 = vpop.f32.mrb[0].mxu0
        %v3739 = vadd.f32 %v3529, %v3738
        %v3740 = vpop.f32.mrb[0].mxu0
        %v3741 = vadd.f32 %v3525, %v3740
        %v3742 = vpop.f32.mrb[0].mxu0
        %v3743 = vadd.f32 %v3529, %v3742
        %3744 = vdwg.mxu0
        %3745 = vmatprep.subr.bf16.mxu0 %v3641
        %3746 = vmatpush1.bf16.msra.mxu0 %v3640
        %3747 = vmatprep.subr.bf16.mxu0 %v3645
        %3748 = vmatpush1.bf16.msra.mxu0 %v3644
        %3749 = vmatprep.subr.bf16.mxu0 %v3649
        %3750 = vmatpush1.bf16.msra.mxu0 %v3648
        %3751 = vmatprep.subr.bf16.mxu0 %v3653
        %3752 = vmatpush1.bf16.msra.mxu0 %v3652
        %3753 = vmatprep.subr.bf16.mxu0 %v3657
        %3754 = vmatpush1.bf16.msra.mxu0 %v3656
        %3755 = vmatprep.subr.bf16.mxu0 %v3661
        %3756 = vmatpush1.bf16.msra.mxu0 %v3660
        %3757 = vmatprep.subr.bf16.mxu0 %v3665
        %3758 = vmatpush1.bf16.msra.mxu0 %v3664
        %3759 = vmatprep.subr.bf16.mxu0 %v3669
        %3760 = vmatpush1.bf16.msra.mxu0 %v3668
        %3761 = vmatprep.subr.bf16.mxu0 0
        %3762 = vmatpush1.bf16.msra.mxu0 0
        %3763 = vmatprep.subr.bf16.mxu0 0
        %3764 = vmatpush1.bf16.msra.mxu0 0
        %3765 = vmatprep.subr.bf16.mxu0 0
        %3766 = vmatpush1.bf16.msra.mxu0 0
        %3767 = vmatprep.subr.bf16.mxu0 0
        %3768 = vmatpush1.bf16.msra.mxu0 0
        %3769 = vmatprep.subr.bf16.mxu0 0
        %3770 = vmatpush1.bf16.msra.mxu0 0
        %3771 = vmatprep.subr.bf16.mxu0 0
        %3772 = vmatpush1.bf16.msra.mxu0 0
        %3773 = vmatprep.subr.bf16.mxu0 0
        %3774 = vmatpush1.bf16.msra.mxu0 0
        %3775 = vmatprep.subr.bf16.mxu0 0
        %3776 = vmatpush1.bf16.msra.mxu0 0
        %3777 = vmatprep.mubr.bf16.mxu0 0
        %3778 = vmatmul.mubr.bf16.gmra.mrb[0].mxu0 %v3519
        %v3779 = vpop.f32.mrb[0].mxu0
        %v3780 = vadd.f32 %v3533, %v3779
        %v3781 = vpop.f32.mrb[0].mxu0
        %v3782 = vadd.f32 %v3537, %v3781
        %v3783 = vpop.f32.mrb[0].mxu0
        %v3784 = vadd.f32 %v3533, %v3783
        %v3785 = vpop.f32.mrb[0].mxu0
        %v3786 = vadd.f32 %v3537, %v3785
        %3787 = vdwg.mxu0
        %v3788 = vmul.f32 %v3737, 0.5
        %v3789 = vmul.f32 %v3739, 0.5
        %v3790 = vmul.f32 %v3780, 0.5
        %v3791 = vmul.f32 %v3782, 0.5
        %v3792 = vmul.f32 %v3741, 0.5
        %v3793 = vmul.f32 %v3743, 0.5
        %v3794 = vmul.f32 %v3784, 0.5
        %v3795 = vmul.f32 %v3786, 0.5
        %v3796 = vmul.f32 %v3737, 0.70710677
        %v3797 = vmul.f32 %v3739, 0.70710677
        %v3798 = vmul.f32 %v3780, 0.70710677
        %v3799 = vmul.f32 %v3782, 0.70710677
        %v3800 = vmul.f32 %v3741, 0.70710677
        %v3801 = vmul.f32 %v3743, 0.70710677
        %v3802 = vmul.f32 %v3784, 0.70710677
        %v3803 = vmul.f32 %v3786, 0.70710677
        %v3804 = verf.f32.pop %v3796
        %v3805 = verf.f32.pop %v3797
        %v3806 = verf.f32.pop %v3798
        %v3807 = verf.f32.pop %v3799
        %v3808 = verf.f32.pop %v3800
        %v3809 = verf.f32.pop %v3801
        %v3810 = verf.f32.pop %v3802
        %v3811 = verf.f32.pop %v3803
        %v3812 = vadd.f32 %v3804, 1.0
        %v3813 = vadd.f32 %v3805, 1.0
        %v3814 = vadd.f32 %v3806, 1.0
        %v3815 = vadd.f32 %v3807, 1.0
        %v3816 = vadd.f32 %v3808, 1.0
        %v3817 = vadd.f32 %v3809, 1.0
        %v3818 = vadd.f32 %v3810, 1.0
        %v3819 = vadd.f32 %v3811, 1.0
        %v3820 = vmul.f32 %v3788, %v3812
        %v3821 = vmul.f32 %v3789, %v3813
        %v3822 = vmul.f32 %v3790, %v3814
        %v3823 = vmul.f32 %v3791, %v3815
        %v3824 = vmul.f32 %v3792, %v3816
        %v3825 = vmul.f32 %v3793, %v3817
        %v3826 = vmul.f32 %v3794, %v3818
        %v3827 = vmul.f32 %v3795, %v3819
        %v3828 = vld [vmem:[%s803] sm:$0xf]
        %v3829 = vld [vmem:[%s803 + $0x4] sm:$0xf]
        %v3830 = vld [vmem:[%s803 + $0x8] sm:$0xf]
        %v3831 = vld [vmem:[%s803 + $0xc] sm:$0xf]
        %v3832 = vld [vmem:[%s803 + $0x10] sm:$0xf]
        %v3833 = vld [vmem:[%s803 + $0x14] sm:$0xf]
        %v3834 = vld [vmem:[%s803 + $0x18] sm:$0xf]
        %v3835 = vld [vmem:[%s803 + $0x1c] sm:$0xf]
        %v3836 = vld [vmem:[%s803 + $0x20] sm:$0xf]
        %v3837 = vld [vmem:[%s803 + $0x24] sm:$0xf]
        %v3838 = vld [vmem:[%s803 + $0x28] sm:$0xf]
        %v3839 = vld [vmem:[%s803 + $0x2c] sm:$0xf]
        %v3840 = vld [vmem:[%s803 + $0x30] sm:$0xf]
        %v3841 = vld [vmem:[%s803 + $0x34] sm:$0xf]
        %v3842 = vld [vmem:[%s803 + $0x38] sm:$0xf]
        %v3843 = vld [vmem:[%s803 + $0x3c] sm:$0xf]
        %v3844 = vld [vmem:[%s803 + $0x40] sm:$0xf]
        %v3845 = vld [vmem:[%s803 + $0x44] sm:$0xf]
        %v3846 = vld [vmem:[%s803 + $0x48] sm:$0xf]
        %v3847 = vld [vmem:[%s803 + $0x4c] sm:$0xf]
        %v3848 = vld [vmem:[%s803 + $0x50] sm:$0xf]
        %v3849 = vld [vmem:[%s803 + $0x54] sm:$0xf]
        %v3850 = vld [vmem:[%s803 + $0x58] sm:$0xf]
        %v3851 = vld [vmem:[%s803 + $0x5c] sm:$0xf]
        %v3852 = vld [vmem:[%s803 + $0x60] sm:$0xf]
        %v3853 = vld [vmem:[%s803 + $0x64] sm:$0xf]
        %v3854 = vld [vmem:[%s803 + $0x68] sm:$0xf]
        %v3855 = vld [vmem:[%s803 + $0x6c] sm:$0xf]
        %v3856 = vld [vmem:[%s803 + $0x70] sm:$0xf]
        %v3857 = vld [vmem:[%s803 + $0x74] sm:$0xf]
        %v3858 = vld [vmem:[%s803 + $0x78] sm:$0xf]
        %v3859 = vld [vmem:[%s803 + $0x7c] sm:$0xf]
        %v3860 = vld [vmem:[%s803 + $0x80] sm:$0xf]
        %v3861 = vld [vmem:[%s803 + $0x84] sm:$0xf]
        %v3862 = vld [vmem:[%s803 + $0x88] sm:$0xf]
        %v3863 = vld [vmem:[%s803 + $0x8c] sm:$0xf]
        %v3864 = vld [vmem:[%s803 + $0x90] sm:$0xf]
        %v3865 = vld [vmem:[%s803 + $0x94] sm:$0xf]
        %v3866 = vld [vmem:[%s803 + $0x98] sm:$0xf]
        %v3867 = vld [vmem:[%s803 + $0x9c] sm:$0xf]
        %v3868 = vld [vmem:[%s803 + $0xa0] sm:$0xf]
        %v3869 = vld [vmem:[%s803 + $0xa4] sm:$0xf]
        %v3870 = vld [vmem:[%s803 + $0xa8] sm:$0xf]
        %v3871 = vld [vmem:[%s803 + $0xac] sm:$0xf]
        %v3872 = vld [vmem:[%s803 + $0xb0] sm:$0xf]
        %v3873 = vld [vmem:[%s803 + $0xb4] sm:$0xf]
        %v3874 = vld [vmem:[%s803 + $0xb8] sm:$0xf]
        %v3875 = vld [vmem:[%s803 + $0xbc] sm:$0xf]
        %v3876 = vld [vmem:[%s803 + $0xc0] sm:$0xf]
        %v3877 = vld [vmem:[%s803 + $0xc4] sm:$0xf]
        %v3878 = vld [vmem:[%s803 + $0xc8] sm:$0xf]
        %v3879 = vld [vmem:[%s803 + $0xcc] sm:$0xf]
        %v3880 = vld [vmem:[%s803 + $0xd0] sm:$0xf]
        %v3881 = vld [vmem:[%s803 + $0xd4] sm:$0xf]
        %v3882 = vld [vmem:[%s803 + $0xd8] sm:$0xf]
        %v3883 = vld [vmem:[%s803 + $0xdc] sm:$0xf]
        %v3884 = vld [vmem:[%s803 + $0xe0] sm:$0xf]
        %v3885 = vld [vmem:[%s803 + $0xe4] sm:$0xf]
        %v3886 = vld [vmem:[%s803 + $0xe8] sm:$0xf]
        %v3887 = vld [vmem:[%s803 + $0xec] sm:$0xf]
        %v3888 = vld [vmem:[%s803 + $0xf0] sm:$0xf]
        %v3889 = vld [vmem:[%s803 + $0xf4] sm:$0xf]
        %v3890 = vld [vmem:[%s803 + $0xf8] sm:$0xf]
        %v3891 = vld [vmem:[%s803 + $0xfc] sm:$0xf]
        %v3892 = vpack.c.bf16 %v3824, %v3820
        %v3893 = vpack.c.bf16 %v3825, %v3821
        %v3894 = vpack.c.bf16 %v3826, %v3822
        %v3895 = vpack.c.bf16 %v3827, %v3823
        %v3896 = vld [vmem:[%s937] sm:$0x1]
        %v3898 = vlaneseq
        %v3899 = vshrl.u32 %v3898, 7
        %v3900 = vsub.s32 0, %v3899
        %v3901 = vrot.slane %v3896, %v3900
        %v3967 = vunpack.c.l.b16 %v3828
        %v3968 = vunpack.c.l.b16 %v3829
        %v3969 = vunpack.c.l.b16 %v3830
        %v3970 = vunpack.c.l.b16 %v3831
        %v3971 = vunpack.c.l.b16 %v3832
        %v3972 = vunpack.c.l.b16 %v3833
        %v3973 = vunpack.c.l.b16 %v3834
        %v3974 = vunpack.c.l.b16 %v3835
        %v3975 = vunpack.c.l.b16 %v3836
        %v3976 = vunpack.c.l.b16 %v3837
        %v3977 = vunpack.c.l.b16 %v3838
        %v3978 = vunpack.c.l.b16 %v3839
        %v3979 = vunpack.c.l.b16 %v3840
        %v3980 = vunpack.c.l.b16 %v3841
        %v3981 = vunpack.c.l.b16 %v3842
        %v3982 = vunpack.c.l.b16 %v3843
        %v3983 = vunpack.c.l.b16 %v3844
        %v3984 = vunpack.c.l.b16 %v3845
        %v3985 = vunpack.c.l.b16 %v3846
        %v3986 = vunpack.c.l.b16 %v3847
        %v3987 = vunpack.c.l.b16 %v3848
        %v3988 = vunpack.c.l.b16 %v3849
        %v3989 = vunpack.c.l.b16 %v3850
        %v3990 = vunpack.c.l.b16 %v3851
        %v3991 = vunpack.c.l.b16 %v3852
        %v3992 = vunpack.c.l.b16 %v3853
        %v3993 = vunpack.c.l.b16 %v3854
        %v3994 = vunpack.c.l.b16 %v3855
        %v3995 = vunpack.c.l.b16 %v3856
        %v3996 = vunpack.c.l.b16 %v3857
        %v3997 = vunpack.c.l.b16 %v3858
        %v3998 = vunpack.c.l.b16 %v3859
        %v3999 = vunpack.c.l.b16 %v3860
        %v4000 = vunpack.c.l.b16 %v3861
        %v4001 = vunpack.c.l.b16 %v3862
        %v4002 = vunpack.c.l.b16 %v3863
        %v4003 = vunpack.c.l.b16 %v3864
        %v4004 = vunpack.c.l.b16 %v3865
        %v4005 = vunpack.c.l.b16 %v3866
        %v4006 = vunpack.c.l.b16 %v3867
        %v4007 = vunpack.c.l.b16 %v3868
        %v4008 = vunpack.c.l.b16 %v3869
        %v4009 = vunpack.c.l.b16 %v3870
        %v4010 = vunpack.c.l.b16 %v3871
        %v4011 = vunpack.c.l.b16 %v3872
        %v4012 = vunpack.c.l.b16 %v3873
        %v4013 = vunpack.c.l.b16 %v3874
        %v4014 = vunpack.c.l.b16 %v3875
        %v4015 = vunpack.c.l.b16 %v3876
        %v4016 = vunpack.c.l.b16 %v3877
        %v4017 = vunpack.c.l.b16 %v3878
        %v4018 = vunpack.c.l.b16 %v3879
        %v4019 = vunpack.c.l.b16 %v3880
        %v4020 = vunpack.c.l.b16 %v3881
        %v4021 = vunpack.c.l.b16 %v3882
        %v4022 = vunpack.c.l.b16 %v3883
        %v4023 = vunpack.c.l.b16 %v3884
        %v4024 = vunpack.c.l.b16 %v3885
        %v4025 = vunpack.c.l.b16 %v3886
        %v4026 = vunpack.c.l.b16 %v3887
        %v4027 = vunpack.c.l.b16 %v3888
        %v4028 = vunpack.c.l.b16 %v3889
        %v4029 = vunpack.c.l.b16 %v3890
        %v4030 = vunpack.c.l.b16 %v3891
        %v4031 = vpack.c.b16 %v3968, %v3967
        %v4032 = vpack.c.b16 %v3970, %v3969
        %v4033 = vpack.c.b16 %v3972, %v3971
        %v4034 = vpack.c.b16 %v3974, %v3973
        %v4035 = vpack.c.b16 %v3976, %v3975
        %v4036 = vpack.c.b16 %v3978, %v3977
        %v4037 = vpack.c.b16 %v3980, %v3979
        %v4038 = vpack.c.b16 %v3982, %v3981
        %v4039 = vpack.c.b16 %v3984, %v3983
        %v4040 = vpack.c.b16 %v3986, %v3985
        %v4041 = vpack.c.b16 %v3988, %v3987
        %v4042 = vpack.c.b16 %v3990, %v3989
        %v4043 = vpack.c.b16 %v3992, %v3991
        %v4044 = vpack.c.b16 %v3994, %v3993
        %v4045 = vpack.c.b16 %v3996, %v3995
        %v4046 = vpack.c.b16 %v3998, %v3997
        %v4047 = vpack.c.b16 %v4000, %v3999
        %v4048 = vpack.c.b16 %v4002, %v4001
        %v4049 = vpack.c.b16 %v4004, %v4003
        %v4050 = vpack.c.b16 %v4006, %v4005
        %v4051 = vpack.c.b16 %v4008, %v4007
        %v4052 = vpack.c.b16 %v4010, %v4009
        %v4053 = vpack.c.b16 %v4012, %v4011
        %v4054 = vpack.c.b16 %v4014, %v4013
        %v4055 = vpack.c.b16 %v4016, %v4015
        %v4056 = vpack.c.b16 %v4018, %v4017
        %v4057 = vpack.c.b16 %v4020, %v4019
        %v4058 = vpack.c.b16 %v4022, %v4021
        %v4059 = vpack.c.b16 %v4024, %v4023
        %v4060 = vpack.c.b16 %v4026, %v4025
        %v4061 = vpack.c.b16 %v4028, %v4027
        %v4062 = vpack.c.b16 %v4030, %v4029
        %4095 = vmatprep.subr.bf16.mxu0 0
        %4096 = vmatpush1.bf16.msra.mxu0 %v4031
        %4097 = vmatprep.subr.bf16.mxu0 0
        %4098 = vmatpush1.bf16.msra.mxu0 %v4032
        %4099 = vmatprep.subr.bf16.mxu0 0
        %4100 = vmatpush1.bf16.msra.mxu0 %v4033
        %4101 = vmatprep.subr.bf16.mxu0 0
        %4102 = vmatpush1.bf16.msra.mxu0 %v4034
        %4103 = vmatprep.subr.bf16.mxu0 0
        %4104 = vmatpush1.bf16.msra.mxu0 %v4035
        %4105 = vmatprep.subr.bf16.mxu0 0
        %4106 = vmatpush1.bf16.msra.mxu0 %v4036
        %4107 = vmatprep.subr.bf16.mxu0 0
        %4108 = vmatpush1.bf16.msra.mxu0 %v4037
        %4109 = vmatprep.subr.bf16.mxu0 0
        %4110 = vmatpush1.bf16.msra.mxu0 %v4038
        %4111 = vmatprep.subr.bf16.mxu0 0
        %4112 = vmatpush1.bf16.msra.mxu0 %v4039
        %4113 = vmatprep.subr.bf16.mxu0 0
        %4114 = vmatpush1.bf16.msra.mxu0 %v4040
        %4115 = vmatprep.subr.bf16.mxu0 0
        %4116 = vmatpush1.bf16.msra.mxu0 %v4041
        %4117 = vmatprep.subr.bf16.mxu0 0
        %4118 = vmatpush1.bf16.msra.mxu0 %v4042
        %4119 = vmatprep.subr.bf16.mxu0 0
        %4120 = vmatpush1.bf16.msra.mxu0 %v4043
        %4121 = vmatprep.subr.bf16.mxu0 0
        %4122 = vmatpush1.bf16.msra.mxu0 %v4044
        %4123 = vmatprep.subr.bf16.mxu0 0
        %4124 = vmatpush1.bf16.msra.mxu0 %v4045
        %4125 = vmatprep.subr.bf16.mxu0 0
        %4126 = vmatpush1.bf16.msra.mxu0 %v4046
        %4127 = vmatprep.mubr.bf16.mxu0 %v3893
        %4128 = vmatmul.mubr.bf16.gmra.mrb[0].mxu0 %v3892
        %v4129 = vpop.f32.mrb[0].mxu0
        %v4130 = vadd.f32 %v3901, %v4129
        %v4131 = vpop.f32.mrb[0].mxu0
        %v4132 = vpop.f32.mrb[0].mxu0
        %v4133 = vadd.f32 %v3901, %v4132
        %v4134 = vpop.f32.mrb[0].mxu0
        %4135 = vdwg.mxu0
        %4136 = vmatprep.subr.bf16.mxu0 0
        %4137 = vmatpush1.bf16.msra.mxu0 %v4047
        %4138 = vmatprep.subr.bf16.mxu0 0
        %4139 = vmatpush1.bf16.msra.mxu0 %v4048
        %4140 = vmatprep.subr.bf16.mxu0 0
        %4141 = vmatpush1.bf16.msra.mxu0 %v4049
        %4142 = vmatprep.subr.bf16.mxu0 0
        %4143 = vmatpush1.bf16.msra.mxu0 %v4050
        %4144 = vmatprep.subr.bf16.mxu0 0
        %4145 = vmatpush1.bf16.msra.mxu0 %v4051
        %4146 = vmatprep.subr.bf16.mxu0 0
        %4147 = vmatpush1.bf16.msra.mxu0 %v4052
        %4148 = vmatprep.subr.bf16.mxu0 0
        %4149 = vmatpush1.bf16.msra.mxu0 %v4053
        %4150 = vmatprep.subr.bf16.mxu0 0
        %4151 = vmatpush1.bf16.msra.mxu0 %v4054
        %4152 = vmatprep.subr.bf16.mxu0 0
        %4153 = vmatpush1.bf16.msra.mxu0 %v4055
        %4154 = vmatprep.subr.bf16.mxu0 0
        %4155 = vmatpush1.bf16.msra.mxu0 %v4056
        %4156 = vmatprep.subr.bf16.mxu0 0
        %4157 = vmatpush1.bf16.msra.mxu0 %v4057
        %4158 = vmatprep.subr.bf16.mxu0 0
        %4159 = vmatpush1.bf16.msra.mxu0 %v4058
        %4160 = vmatprep.subr.bf16.mxu0 0
        %4161 = vmatpush1.bf16.msra.mxu0 %v4059
        %4162 = vmatprep.subr.bf16.mxu0 0
        %4163 = vmatpush1.bf16.msra.mxu0 %v4060
        %4164 = vmatprep.subr.bf16.mxu0 0
        %4165 = vmatpush1.bf16.msra.mxu0 %v4061
        %4166 = vmatprep.subr.bf16.mxu0 0
        %4167 = vmatpush1.bf16.msra.mxu0 %v4062
        %4168 = vmatprep.mubr.bf16.mxu0 %v3895
        %4169 = vmatmul.mubr.bf16.gmra.mrb[0].mxu0 %v3894
        %v4170 = vpop.f32.mrb[0].mxu0
        %v4171 = vadd.f32 %v4130, %v4170
        %v4172 = vpop.f32.mrb[0].mxu0
        %v4173 = vpop.f32.mrb[0].mxu0
        %v4174 = vadd.f32 %v4133, %v4173
        %v4175 = vpop.f32.mrb[0].mxu0
        %4176 = vdwg.mxu0
        %v4177 = vadd.f32 %v3445, %v4171
        %v4178 = vadd.f32 %v3446, %v4174
        %4179 = vst [vmem:[#allocation2] sm:$0xff] %v4177
        %4180 = vst [vmem:[#allocation2 + $0x8] sm:$0xff] %v4178
        %p4181 = scmp.eq.s32.totalorder %s43, 2
        // Predicated region
        $region121: #{advanced_neural_model.1} parent=103 // pred_check
          %p4182 = pneg %p4181
        $region122: #{advanced_neural_model.1} parent=103 // pred_check_branch
          %4184 = sbr.rel (%p4182) target = $region124
        $region123: #{advanced_neural_model.1} parent=103 // pred_region
          %v4185 = vld [vmem:[#allocation2] ss:$8 sm:$0x3]
          %4186 = vst [vmem:[#allocation10] sm:$0x3] %v4185
          %v4187 = vld [vmem:[%s17] sm:$0x1]
          %v4188 = vld [vmem:[%s18] sm:$0x1]
          %vm4189 = vcmask 1041408
          %v4190 = vsel %vm4189, %v4185, 0.0
          %4191 = vadd.xlane.f32.xlu0 %v4190
          %v4192 = vpop.xlane.xlu0 %4191
          %v4193 = vmul.f32 %v4192, %v1080
          %v4194 = vsub.f32 %v4185, %v4193
          %v4195 = vmul.f32 %v4194, %v4194
          %v4196 = vsel %vm4189, %v4195, 0.0
          %4197 = vadd.xlane.f32.xlu0 %v4196
          %v4198 = vpop.xlane.xlu0 %4197
          %v4199 = vmul.f32 %v4198, %v1080
          %v4200 = vadd.f32 %v4199, 1e-05
          %v4201 = vrsqrt.pop %v4200
          %v4202 = vmul.f32 %v4194, %v4201
          %v4204 = vlaneseq
          %v4205 = vshrl.u32 %v4204, 7
          %v4206 = vsub.s32 0, %v4205
          %v4207 = vrot.slane %v4187, %v4206
          %v4209 = vmul.f32 %v4202, %v4207
          %v4211 = vlaneseq
          %v4212 = vshrl.u32 %v4211, 7
          %v4213 = vsub.s32 0, %v4212
          %v4214 = vrot.slane %v4188, %v4213
          %v4216 = vadd.f32 %v4209, %v4214
          %v4217 = vld [vmem:[%s19] sm:$0xf]
          %v4218 = vld [vmem:[%s19 + $0x4] sm:$0xf]
          %v4219 = vld [vmem:[%s19 + $0x8] sm:$0xf]
          %v4220 = vld [vmem:[%s19 + $0xc] sm:$0xf]
          %v4221 = vld [vmem:[%s19 + $0x10] sm:$0xf]
          %v4222 = vld [vmem:[%s19 + $0x14] sm:$0xf]
          %v4223 = vld [vmem:[%s19 + $0x18] sm:$0xf]
          %v4224 = vld [vmem:[%s19 + $0x1c] sm:$0xf]
          %v4225 = vld [vmem:[%s19 + $0x20] sm:$0xf]
          %v4226 = vld [vmem:[%s19 + $0x24] sm:$0xf]
          %v4227 = vld [vmem:[%s19 + $0x28] sm:$0xf]
          %v4228 = vld [vmem:[%s19 + $0x2c] sm:$0xf]
          %v4229 = vld [vmem:[%s19 + $0x30] sm:$0xf]
          %v4230 = vld [vmem:[%s19 + $0x34] sm:$0xf]
          %v4231 = vld [vmem:[%s19 + $0x38] sm:$0xf]
          %v4232 = vld [vmem:[%s19 + $0x3c] sm:$0xf]
          %v4233 = vpack.c.bf16 %v4216, %v4216
          %v4234 = vld [vmem:[%s20] sm:$0x1]
          %v4236 = vlaneseq
          %v4237 = vshrl.u32 %v4236, 7
          %v4238 = vsub.s32 0, %v4237
          %v4239 = vrot.slane %v4234, %v4238
          %v4257 = vunpack.c.l.b16 %v4217
          %v4258 = vunpack.c.l.b16 %v4218
          %v4259 = vunpack.c.l.b16 %v4219
          %v4260 = vunpack.c.l.b16 %v4220
          %v4261 = vunpack.c.l.b16 %v4221
          %v4262 = vunpack.c.l.b16 %v4222
          %v4263 = vunpack.c.l.b16 %v4223
          %v4264 = vunpack.c.l.b16 %v4224
          %v4265 = vunpack.c.l.b16 %v4225
          %v4266 = vunpack.c.l.b16 %v4226
          %v4267 = vunpack.c.l.b16 %v4227
          %v4268 = vunpack.c.l.b16 %v4228
          %v4269 = vunpack.c.l.b16 %v4229
          %v4270 = vunpack.c.l.b16 %v4230
          %v4271 = vunpack.c.l.b16 %v4231
          %v4272 = vunpack.c.l.b16 %v4232
          %v4273 = vpack.c.b16 %v4258, %v4257
          %v4274 = vpack.c.b16 %v4260, %v4259
          %v4275 = vpack.c.b16 %v4262, %v4261
          %v4276 = vpack.c.b16 %v4264, %v4263
          %v4277 = vpack.c.b16 %v4266, %v4265
          %v4278 = vpack.c.b16 %v4268, %v4267
          %v4279 = vpack.c.b16 %v4270, %v4269
          %v4280 = vpack.c.b16 %v4272, %v4271
          %4289 = vmatprep.subr.bf16.mxu0 0
          %4290 = vmatpush1.bf16.msra.mxu0 %v4273
          %4291 = vmatprep.subr.bf16.mxu0 0
          %4292 = vmatpush1.bf16.msra.mxu0 %v4274
          %4293 = vmatprep.subr.bf16.mxu0 0
          %4294 = vmatpush1.bf16.msra.mxu0 %v4275
          %4295 = vmatprep.subr.bf16.mxu0 0
          %4296 = vmatpush1.bf16.msra.mxu0 %v4276
          %4297 = vmatprep.subr.bf16.mxu0 0
          %4298 = vmatpush1.bf16.msra.mxu0 %v4277
          %4299 = vmatprep.subr.bf16.mxu0 0
          %4300 = vmatpush1.bf16.msra.mxu0 %v4278
          %4301 = vmatprep.subr.bf16.mxu0 0
          %4302 = vmatpush1.bf16.msra.mxu0 %v4279
          %4303 = vmatprep.subr.bf16.mxu0 0
          %4304 = vmatpush1.bf16.msra.mxu0 %v4280
          %4305 = vmatprep.subr.bf16.mxu0 0
          %4306 = vmatpush1.bf16.msra.mxu0 0
          %4307 = vmatprep.subr.bf16.mxu0 0
          %4308 = vmatpush1.bf16.msra.mxu0 0
          %4309 = vmatprep.subr.bf16.mxu0 0
          %4310 = vmatpush1.bf16.msra.mxu0 0
          %4311 = vmatprep.subr.bf16.mxu0 0
          %4312 = vmatpush1.bf16.msra.mxu0 0
          %4313 = vmatprep.subr.bf16.mxu0 0
          %4314 = vmatpush1.bf16.msra.mxu0 0
          %4315 = vmatprep.subr.bf16.mxu0 0
          %4316 = vmatpush1.bf16.msra.mxu0 0
          %4317 = vmatprep.subr.bf16.mxu0 0
          %4318 = vmatpush1.bf16.msra.mxu0 0
          %4319 = vmatprep.subr.bf16.mxu0 0
          %4320 = vmatpush1.bf16.msra.mxu0 0
          %4321 = vmatprep.mubr.bf16.mxu0 0
          %4322 = vmatmul.mubr.bf16.gmra.mrb[0].mxu0 %v4233
          %v4323 = vpop.f32.mrb[0].mxu0
          %v4324 = vadd.f32 %v4239, %v4323
          %v4325 = vpop.f32.mrb[0].mxu0
          %v4326 = vpop.f32.mrb[0].mxu0
          %v4327 = vpop.f32.mrb[0].mxu0
          %4328 = vdwg.mxu0
          %4329 = vst [vmem:[#allocation9] sm:$0x3] %v4324
        $region124: #{advanced_neural_model.1} parent=103 // pred_fallthru
          _
        %p4330 = scmp.lt.s32.totalorder %s43, 2
        %s4331 = scalar_select %p4330, %s43, 2
        %s4332 = smul.addr %s4331, 16
        %s4333 = smul.addr %s4332, 8
        %s4334 = scalar_lea.vmem %s23, %s4333
        // Predicated region
        $region125: #{advanced_neural_model.1} parent=103 // pred_check
          %p4335 = pneg %p557
        $region126: #{advanced_neural_model.1} parent=103 // pred_check_branch
          %4337 = sbr.rel (%p4335) target = $region128
        $region127: #{advanced_neural_model.1} parent=103 // pred_region
          %s4339 = ssub.s32 32, 32
          %4340 = vsyncadd [#allocation5], %s4339
          %s4342 = sshll.u32 [#allocation9], 4
          %s4343 = int_to_ptr.vmem [resolvable:$true] %s4342
          %4345 = dma.vmem_to_hbm [thread:$0]  %s4343, 32, %s21, [#allocation5]
        $region128: #{advanced_neural_model.1} parent=103 // pred_fallthru
          _
        // Predicated region
        $region129: #{advanced_neural_model.1} parent=103 // pred_check
          %p4346 = pneg %p578
        $region130: #{advanced_neural_model.1} parent=103 // pred_check_branch
          %4348 = sbr.rel (%p4346) target = $region132
        $region131: #{advanced_neural_model.1} parent=103 // pred_region
          %s4350 = ssub.s32 32, 32
          %4351 = vsyncadd [#allocation11], %s4350
          %s4353 = sshll.u32 [#allocation10], 4
          %s4354 = int_to_ptr.vmem [resolvable:$true] %s4353
          %4356 = dma.vmem_to_hbm [thread:$0]  %s4354, 32, %s22, [#allocation11]
        $region132: #{advanced_neural_model.1} parent=103 // pred_fallthru
          _
        // Predicated region
        $region133: #{advanced_neural_model.1} parent=103 // pred_check
          %p4357 = pneg %p604
        $region134: #{advanced_neural_model.1} parent=103 // pred_check_branch
          %4359 = sbr.rel (%p4357) target = $region136
        $region135: #{advanced_neural_model.1} parent=103 // pred_region
          _
        $region136: #{advanced_neural_model.1} parent=103 // pred_fallthru
          _
        // Predicated region
        $region137: #{advanced_neural_model.1} parent=103 // pred_check
          %p4360 = pneg %p557
        $region138: #{advanced_neural_model.1} parent=103 // pred_check_branch
          %4362 = sbr.rel (%p4360) target = $region140
        $region139: #{advanced_neural_model.1} parent=103 // pred_region
          %4363 = dma.done [#allocation5], 32
        $region140: #{advanced_neural_model.1} parent=103 // pred_fallthru
          _
        // Predicated region
        $region141: #{advanced_neural_model.1} parent=103 // pred_check
          %p4364 = pneg %p578
        $region142: #{advanced_neural_model.1} parent=103 // pred_check_branch
          %4366 = sbr.rel (%p4364) target = $region144
        $region143: #{advanced_neural_model.1} parent=103 // pred_region
          %4367 = dma.done [#allocation11], 32
        $region144: #{advanced_neural_model.1} parent=103 // pred_fallthru
          _
      $region104: #{advanced_neural_model.1} parent=5 // pred_fallthru
        _
      %p4368 = scmp.le.s32.totalorder 2, %s38
      // Predicated region
      $region145: #{advanced_neural_model.1} parent=5 // pred_check
        %p4369 = pneg %p4368
      $region146: #{advanced_neural_model.1} parent=5 // pred_check_branch
        %4371 = sbr.rel (%p4369) target = $region148
      $region147: #{advanced_neural_model.1} parent=5 // pred_region
        %s4372 = ssub.s32 %s38, 2
        // Predicated region
        $region149: #{advanced_neural_model.1} parent=147 // pred_check
          %p4373 = pneg %p610
        $region150: #{advanced_neural_model.1} parent=147 // pred_check_branch
          %4375 = sbr.rel (%p4373) target = $region152
        $region151: #{advanced_neural_model.1} parent=147 // pred_region
          %p4376 = scmp.lt.s32.totalorder %s44, 2
          %s4377 = scalar_select %p4376, %s44, 2
          %s4378 = smul.addr %s4377, 16
          %s4379 = smul.addr %s4378, 8
          %s4380 = scalar_lea.vmem %s23, %s4379
        $region152: #{advanced_neural_model.1} parent=147 // pred_fallthru
          _
      $region148: #{advanced_neural_model.1} parent=5 // pred_fallthru
        _
    $region6: #{advanced_neural_model.1} parent=1 // loop_footer
      %s42 = sadd.s32 1, %s38
    $region7: #{advanced_neural_model.1} parent=1 // loop_footer_branch
      %37 = sbr.rel target = $region3
    $region8: #{advanced_neural_model.1} parent=1 // loop_exit
      _
    %4381 = vsyncpa [#allocation4], 1
    %s4382 = scalar_lea.sflag [#allocation4], 1
    %4383 = vsyncpa %s4382, 1
    %4384 = vsyncpa [#allocation7], 1
    %s4385 = scalar_lea.sflag [#allocation7], 1
    %4386 = vsyncpa %s4385, 1
    %4387 = vsyncpa [#allocation5], 1
    %s4388 = scalar_lea.sflag [#allocation5], 1
    %4389 = vsyncpa %s4388, 1
    %4390 = vsyncpa [#allocation11], 1

</llo_original>
